<compile_context>
chip_gen: v6e
topology: v6e:2x2x1
jax: 0.10.0
libtpu: 0.0.40
codegen_flags: <defaults>
</compile_context>

<pallas_src>
import functools

import jax
import jax.numpy as jnp
from jax import lax
from jax.experimental import pallas as pl
from jax.experimental.pallas import tpu as pltpu

# -----------------------------------------------------------------------------
# Model hyper-parameters (small, but hidden=768 is fixed by fcl's input size).
# -----------------------------------------------------------------------------
BATCH = 2
SEQ = 8
VOCAB = 64
HIDDEN = 768          # BERT hidden size (fcl expects 768 inputs)
NUM_HEADS = 12
HEAD_DIM = HIDDEN // NUM_HEADS
INTERMEDIATE = 1024
FC1_OUT = 1024
NUM_CLASS = 4
NUM_CLASS_PAD = 8     # small sublane-friendly padded class dimension


# -----------------------------------------------------------------------------
# Pallas kernel: BERT pooler + dropout + fcl + relu + dropout + fc2 + log_softmax
# -----------------------------------------------------------------------------
def head_kernel(cls_ref, wp_ref, bp_ref, b1_ref, b2_ref, w1_hbm, w2_hbm,
                out_ref, w1_vmem, w2_vmem, sem):
    # Kick off the fcl / fc2 weight DMAs immediately so they overlap the pooler
    # matmul + tanh below (w1 is 1.5 MiB, w2 is 16 KiB).
    w1_cp = pltpu.make_async_copy(w1_hbm, w1_vmem, sem.at[0])
    w2_cp = pltpu.make_async_copy(w2_hbm, w2_vmem, sem.at[1])
    w1_cp.start()
    w2_cp.start()

    cls_tok = cls_ref[...]                                       # [B, 768] bf16

    # BERT pooler: dense(768 -> 768) + tanh on the CLS token (f32 accumulate).
    pooled = jnp.tanh(
        jnp.dot(cls_tok, wp_ref[...], preferred_element_type=jnp.float32)
        + bp_ref[...]
    )                                                            # [B, 768] f32

    # dropout1 (p=0.3): identity in eval / inference mode.
    # fcl: 768 -> 1024, then ReLU.  Feed the MXU bf16, accumulate f32.
    w1_cp.wait()
    h = (jnp.dot(pooled.astype(jnp.bfloat16), w1_vmem[...],
                 preferred_element_type=jnp.float32)
         + b1_ref[...])
    h = jnp.maximum(h, 0.0)                                      # [B, 1024] f32

    # dropout2 (p=0.3): identity in eval / inference mode.
    # fc2: 1024 -> num_class (zero-padded to 8 lanes; padded lanes carry the
    # -1e30 bias baked into b2, so no explicit mask is needed).
    w2_cp.wait()
    logits = (jnp.dot(h.astype(jnp.bfloat16), w2_vmem[...],
                      preferred_element_type=jnp.float32)
              + b2_ref[...])                                     # [B, 8] f32

    # LogSoftmax(dim=-1), numerically stable.  Padded lanes are ~-1e30 and are
    # sliced away in the wrapper (exp(-1e30) == 0, so they don't perturb lse).
    m = jnp.max(logits, axis=-1, keepdims=True)
    shifted = logits - m
    lse = jnp.log(jnp.sum(jnp.exp(shifted), axis=-1, keepdims=True))
    out_ref[...] = shifted - lse


def run_head(cls_tok, wp, bp, w1, b1, w2, b2):
    B = cls_tok.shape[0]
    vmem = pl.BlockSpec(memory_space=pltpu.MemorySpace.VMEM)
    hbm = pl.BlockSpec(memory_space=pl.ANY)   # manual DMA inside the kernel

    # Advisory cost hint so XLA can overlap this custom call with the tail of
    # the plain-JAX encoder.
    bytes_accessed = (
        cls_tok.size * 2 + wp.size * 2 + w1.size * 2 + w2.size * 2   # bf16
        + bp.size * 4 + b1.size * 4 + b2.size * 4                    # f32 biases
        + B * NUM_CLASS_PAD * 4                                      # f32 output
    )
    flops = 2 * B * (HIDDEN * HIDDEN + HIDDEN * FC1_OUT + FC1_OUT * NUM_CLASS_PAD)
    transcendentals = B * (HIDDEN + NUM_CLASS_PAD)                   # tanh + exp

    out_padded = pl.pallas_call(
        head_kernel,
        out_shape=jax.ShapeDtypeStruct((B, NUM_CLASS_PAD), jnp.float32),
        in_specs=[vmem, vmem, vmem, vmem, vmem, hbm, hbm],
        out_specs=vmem,
        scratch_shapes=[
            pltpu.VMEM((HIDDEN, FC1_OUT), jnp.bfloat16),       # w1 staging
            pltpu.VMEM((FC1_OUT, NUM_CLASS_PAD), jnp.bfloat16),  # w2 staging
            pltpu.SemaphoreType.DMA((2,)),
        ],
        compiler_params=pltpu.CompilerParams(
            vmem_limit_bytes=32 * 1024 * 1024,   # guard (v7x has 64 MiB VMEM)
        ),
        cost_estimate=pl.CostEstimate(
            flops=flops,
            transcendentals=transcendentals,
            bytes_accessed=bytes_accessed,
        ),
    )(cls_tok, wp, bp, b1, b2, w1, w2)
    # Slice the real classes; padded lanes carry ~-1e30-derived garbage.
    return out_padded[:, :NUM_CLASS]


# -----------------------------------------------------------------------------
# Synthetic single-layer BERT encoder (plain-JAX glue for the external `bert`
# submodule); produces the sequence output whose CLS token feeds the kernel.
# -----------------------------------------------------------------------------
def layernorm(x, gamma, beta, eps=1e-12):
    mu = jnp.mean(x, axis=-1, keepdims=True)
    var = jnp.mean((x - mu) ** 2, axis=-1, keepdims=True)
    return (x - mu) * jax.lax.rsqrt(var + eps) * gamma + beta


def bert_encoder(p, input_ids, attention_mask):
    B, S = input_ids.shape
    x = p["tok_emb"][input_ids] + p["pos_emb"][jnp.arange(S)][None, :, :]
    x = layernorm(x, p["ln_emb_g"], p["ln_emb_b"])

    # --- self attention ---
    def proj(x, w, b):
        return (x @ w + b).reshape(B, S, NUM_HEADS, HEAD_DIM).transpose(0, 2, 1, 3)

    q = proj(x, p["wq"], p["bq"])
    k = proj(x, p["wk"], p["bk"])
    v = proj(x, p["wv"], p["bv"])
    scores = jnp.einsum("bhqd,bhkd->bhqk", q, k) / jnp.sqrt(float(HEAD_DIM))
    mask_bias = (1.0 - attention_mask.astype(jnp.float32))[:, None, None, :] * -1e9
    attn = jax.nn.softmax(scores + mask_bias, axis=-1)
    ctx = jnp.einsum("bhqk,bhkd->bhqd", attn, v)
    ctx = ctx.transpose(0, 2, 1, 3).reshape(B, S, HIDDEN)
    x = layernorm(x + ctx @ p["wo"] + p["bo"], p["ln1_g"], p["ln1_b"])

    # --- feed forward ---
    ff = jax.nn.gelu(x @ p["w_ff1"] + p["b_ff1"]) @ p["w_ff2"] + p["b_ff2"]
    x = layernorm(x + ff, p["ln2_g"], p["ln2_b"])
    return x  # [B, S, HIDDEN] sequence output


# -----------------------------------------------------------------------------
# Deterministic parameter initialization.
# -----------------------------------------------------------------------------
def init_params(key):
    keys = jax.random.split(key, 20)
    n = lambda k, shape, s=0.02: (s * jax.random.normal(k, shape)).astype(jnp.float32)

    # fc2 weight zero-padded on the output (lane) axis: 4 -> 8 columns.  The
    # padded bias lanes carry -1e30, which (with the zero padded weight columns)
    # acts as the log_softmax mask — no explicit masking needed in the kernel.
    w2_real = n(keys[10], (FC1_OUT, NUM_CLASS))
    w2_pad = jnp.zeros((FC1_OUT, NUM_CLASS_PAD), jnp.float32).at[:, :NUM_CLASS].set(w2_real)
    b2_pad = jnp.full((1, NUM_CLASS_PAD), -1e30, jnp.float32).at[:, :NUM_CLASS].set(0.0)

    p = {
        # embeddings
        "tok_emb": n(keys[0], (VOCAB, HIDDEN)),
        "pos_emb": n(keys[1], (SEQ, HIDDEN)),
        "ln_emb_g": jnp.ones((HIDDEN,), jnp.float32),
        "ln_emb_b": jnp.zeros((HIDDEN,), jnp.float32),
        # attention
        "wq": n(keys[2], (HIDDEN, HIDDEN)), "bq": jnp.zeros((HIDDEN,), jnp.float32),
        "wk": n(keys[3], (HIDDEN, HIDDEN)), "bk": jnp.zeros((HIDDEN,), jnp.float32),
        "wv": n(keys[4], (HIDDEN, HIDDEN)), "bv": jnp.zeros((HIDDEN,), jnp.float32),
        "wo": n(keys[5], (HIDDEN, HIDDEN)), "bo": jnp.zeros((HIDDEN,), jnp.float32),
        "ln1_g": jnp.ones((HIDDEN,), jnp.float32),
        "ln1_b": jnp.zeros((HIDDEN,), jnp.float32),
        # FFN
        "w_ff1": n(keys[6], (HIDDEN, INTERMEDIATE)),
        "b_ff1": jnp.zeros((INTERMEDIATE,), jnp.float32),
        "w_ff2": n(keys[7], (INTERMEDIATE, HIDDEN)),
        "b_ff2": jnp.zeros((HIDDEN,), jnp.float32),
        "ln2_g": jnp.ones((HIDDEN,), jnp.float32),
        "ln2_b": jnp.zeros((HIDDEN,), jnp.float32),
        # pooler (part of bert) — fed to the Pallas kernel; big weights in bf16,
        # biases kept f32 (elementwise math stays f32).
        "wp": n(keys[8], (HIDDEN, HIDDEN)).astype(jnp.bfloat16),
        "bp": jnp.zeros((1, HIDDEN), jnp.float32),
        # classifier head (HateSpeechBERTModel.fcl / fc2)
        "w1": n(keys[9], (HIDDEN, FC1_OUT)).astype(jnp.bfloat16),
        "b1": jnp.zeros((1, FC1_OUT), jnp.float32),
        "w2": w2_pad.astype(jnp.bfloat16),
        "b2": b2_pad,
    }
    return p


@functools.partial(jax.jit, static_argnums=())
def hate_speech_bert_forward(params, input_ids, attention_mask):
    seq_out = bert_encoder(params, input_ids, attention_mask)   # [B, S, H] f32
    cls_tok = seq_out[:, 0, :].astype(jnp.bfloat16)             # [B, H] -> pooler input
    return run_head(cls_tok, params["wp"], params["bp"],
                    params["w1"], params["b1"],
                    params["w2"], params["b2"])                 # [B, NUM_CLASS] log-probs


if __name__ == "__main__":
    key = jax.random.PRNGKey(0)
    k_param, k_ids = jax.random.split(key)

    params = init_params(k_param)
    input_ids = jax.random.randint(k_ids, (BATCH, SEQ), 0, VOCAB, dtype=jnp.int32)
    attention_mask = jnp.ones((BATCH, SEQ), dtype=jnp.int32)

    out = hate_speech_bert_forward(params, input_ids, attention_mask)
    out = jax.block_until_ready(out)

    assert out.shape == (BATCH, NUM_CLASS), out.shape
    # log_softmax rows must (log-)sum to ~1
    row_sums = jnp.sum(jnp.exp(out), axis=-1)
    assert jnp.allclose(row_sums, 1.0, atol=1e-3), row_sums

    print("KERNEL_OK")
</pallas_src>

<mosaic_0001>
module attributes {stable_mosaic.version = 11 : i64} {
  func.func @head_kernel(%arg0: memref<2x768xbf16, #tpu.memory_space<vmem>>, %arg1: memref<768x768xbf16, #tpu.memory_space<vmem>>, %arg2: memref<1x768xf32, #tpu.memory_space<vmem>>, %arg3: memref<1x1024xf32, #tpu.memory_space<vmem>>, %arg4: memref<1x8xf32, #tpu.memory_space<vmem>>, %arg5: memref<768x1024xbf16, #tpu.memory_space<any>>, %arg6: memref<1024x8xbf16, #tpu.memory_space<any>>, %arg7: memref<2x8xf32, #tpu.memory_space<vmem>>, %arg8: memref<768x1024xbf16, #tpu.memory_space<vmem>>, %arg9: memref<1024x8xbf16, #tpu.memory_space<vmem>>, %arg10: memref<2x!tpu.dma_semaphore, #tpu.memory_space<semaphore_mem>>) attributes {dimension_semantics = [], scalar_prefetch = 0 : i64, scratch_operands = 3 : i64, tpu.core_type = #tpu.core_type<tc>} {
    %c0_i32 = arith.constant 0 : i32
    %0 = tpu.memref_slice %arg10[%c0_i32] : memref<2x!tpu.dma_semaphore, #tpu.memory_space<semaphore_mem>> -> memref<1x!tpu.dma_semaphore, #tpu.memory_space<semaphore_mem>>
    %1 = tpu.memref_squeeze %0 : memref<1x!tpu.dma_semaphore, #tpu.memory_space<semaphore_mem>> -> memref<!tpu.dma_semaphore, #tpu.memory_space<semaphore_mem>>
    tpu.enqueue_dma source(%arg5 : memref<768x1024xbf16, #tpu.memory_space<any>>) target(%arg8 : memref<768x1024xbf16, #tpu.memory_space<vmem>>) target_semaphore(%1 : memref<!tpu.dma_semaphore, #tpu.memory_space<semaphore_mem>>)
    %c1_i32 = arith.constant 1 : i32
    %2 = tpu.memref_slice %arg10[%c1_i32] : memref<2x!tpu.dma_semaphore, #tpu.memory_space<semaphore_mem>> -> memref<1x!tpu.dma_semaphore, #tpu.memory_space<semaphore_mem>>
    %3 = tpu.memref_squeeze %2 : memref<1x!tpu.dma_semaphore, #tpu.memory_space<semaphore_mem>> -> memref<!tpu.dma_semaphore, #tpu.memory_space<semaphore_mem>>
    tpu.enqueue_dma source(%arg6 : memref<1024x8xbf16, #tpu.memory_space<any>>) target(%arg9 : memref<1024x8xbf16, #tpu.memory_space<vmem>>) target_semaphore(%3 : memref<!tpu.dma_semaphore, #tpu.memory_space<semaphore_mem>>)
    %c0 = arith.constant 0 : index
    %c0_0 = arith.constant 0 : index
    %4 = vector.load %arg0[%c0, %c0_0] : memref<2x768xbf16, #tpu.memory_space<vmem>>, vector<2x768xbf16>
    %c0_1 = arith.constant 0 : index
    %c0_2 = arith.constant 0 : index
    %5 = vector.load %arg1[%c0_1, %c0_2] : memref<768x768xbf16, #tpu.memory_space<vmem>>, vector<768x768xbf16>
    %cst = arith.constant dense<0.000000e+00> : vector<2x768xf32>
    %6 = tpu.matmul %4, %5, %cst {dimension_numbers = #tpu.dot_dimension_numbers<[1], [0], [0], [1], [0, 0, 1, 1], [], []>} : vector<2x768xbf16>, vector<768x768xbf16>, vector<2x768xf32> -> vector<2x768xf32>
    %c0_3 = arith.constant 0 : index
    %c0_4 = arith.constant 0 : index
    %7 = vector.load %arg2[%c0_3, %c0_4] : memref<1x768xf32, #tpu.memory_space<vmem>>, vector<1x768xf32>
    %8 = vector.broadcast %7 : vector<1x768xf32> to vector<2x768xf32>
    %9 = arith.addf %6, %8 : vector<2x768xf32>
    %10 = math.tanh %9 : vector<2x768xf32>
    %c0_i32_5 = arith.constant 0 : i32
    %11 = tpu.memref_slice %arg10[%c0_i32_5] : memref<2x!tpu.dma_semaphore, #tpu.memory_space<semaphore_mem>> -> memref<1x!tpu.dma_semaphore, #tpu.memory_space<semaphore_mem>>
    %12 = tpu.memref_squeeze %11 : memref<1x!tpu.dma_semaphore, #tpu.memory_space<semaphore_mem>> -> memref<!tpu.dma_semaphore, #tpu.memory_space<semaphore_mem>>
    tpu.wait_dma2 semaphore(%12 : memref<!tpu.dma_semaphore, #tpu.memory_space<semaphore_mem>>) src(%arg5 : memref<768x1024xbf16, #tpu.memory_space<any>>) dst(%arg8 : memref<768x1024xbf16, #tpu.memory_space<vmem>>)
    %13 = arith.truncf %10 : vector<2x768xf32> to vector<2x768xbf16>
    %c0_6 = arith.constant 0 : index
    %c0_7 = arith.constant 0 : index
    %14 = vector.load %arg8[%c0_6, %c0_7] : memref<768x1024xbf16, #tpu.memory_space<vmem>>, vector<768x1024xbf16>
    %cst_8 = arith.constant dense<0.000000e+00> : vector<2x1024xf32>
    %15 = tpu.matmul %13, %14, %cst_8 {dimension_numbers = #tpu.dot_dimension_numbers<[1], [0], [0], [1], [0, 0, 1, 1], [], []>} : vector<2x768xbf16>, vector<768x1024xbf16>, vector<2x1024xf32> -> vector<2x1024xf32>
    %c0_9 = arith.constant 0 : index
    %c0_10 = arith.constant 0 : index
    %16 = vector.load %arg3[%c0_9, %c0_10] : memref<1x1024xf32, #tpu.memory_space<vmem>>, vector<1x1024xf32>
    %17 = vector.broadcast %16 : vector<1x1024xf32> to vector<2x1024xf32>
    %18 = arith.addf %15, %17 : vector<2x1024xf32>
    %cst_11 = arith.constant 0.000000e+00 : f32
    %19 = vector.broadcast %cst_11 : f32 to vector<2x1024xf32>
    %20 = arith.maximumf %18, %19 : vector<2x1024xf32>
    %c1_i32_12 = arith.constant 1 : i32
    %21 = tpu.memref_slice %arg10[%c1_i32_12] : memref<2x!tpu.dma_semaphore, #tpu.memory_space<semaphore_mem>> -> memref<1x!tpu.dma_semaphore, #tpu.memory_space<semaphore_mem>>
    %22 = tpu.memref_squeeze %21 : memref<1x!tpu.dma_semaphore, #tpu.memory_space<semaphore_mem>> -> memref<!tpu.dma_semaphore, #tpu.memory_space<semaphore_mem>>
    tpu.wait_dma2 semaphore(%22 : memref<!tpu.dma_semaphore, #tpu.memory_space<semaphore_mem>>) src(%arg6 : memref<1024x8xbf16, #tpu.memory_space<any>>) dst(%arg9 : memref<1024x8xbf16, #tpu.memory_space<vmem>>)
    %23 = arith.truncf %20 : vector<2x1024xf32> to vector<2x1024xbf16>
    %c0_13 = arith.constant 0 : index
    %c0_14 = arith.constant 0 : index
    %24 = vector.load %arg9[%c0_13, %c0_14] : memref<1024x8xbf16, #tpu.memory_space<vmem>>, vector<1024x8xbf16>
    %cst_15 = arith.constant dense<0.000000e+00> : vector<2x8xf32>
    %25 = tpu.matmul %23, %24, %cst_15 {dimension_numbers = #tpu.dot_dimension_numbers<[1], [0], [0], [1], [0, 0, 1, 1], [], []>} : vector<2x1024xbf16>, vector<1024x8xbf16>, vector<2x8xf32> -> vector<2x8xf32>
    %c0_16 = arith.constant 0 : index
    %c0_17 = arith.constant 0 : index
    %26 = vector.load %arg4[%c0_16, %c0_17] : memref<1x8xf32, #tpu.memory_space<vmem>>, vector<1x8xf32>
    %27 = vector.broadcast %26 : vector<1x8xf32> to vector<2x8xf32>
    %28 = arith.addf %25, %27 : vector<2x8xf32>
    %cst_18 = arith.constant dense<0xFF800000> : vector<2xf32>
    %29 = vector.multi_reduction <maximumf>, %28, %cst_18 [1] : vector<2x8xf32> to vector<2xf32>
    %30 = vector.shape_cast %29 : vector<2xf32> to vector<2x1xf32>
    %31 = vector.broadcast %30 : vector<2x1xf32> to vector<2x8xf32>
    %32 = arith.subf %28, %31 : vector<2x8xf32>
    %33 = math.exp %32 : vector<2x8xf32>
    %cst_19 = arith.constant dense<0.000000e+00> : vector<2xf32>
    %34 = vector.multi_reduction <add>, %33, %cst_19 [1] : vector<2x8xf32> to vector<2xf32>
    %35 = vector.shape_cast %34 : vector<2xf32> to vector<2x1xf32>
    %36 = math.log %35 : vector<2x1xf32>
    %37 = vector.broadcast %36 : vector<2x1xf32> to vector<2x8xf32>
    %38 = arith.subf %32, %37 : vector<2x8xf32>
    %c0_20 = arith.constant 0 : index
    %c0_21 = arith.constant 0 : index
    %39 = vector.load %arg7[%c0_20, %c0_21] : memref<2x8xf32, #tpu.memory_space<vmem>>, vector<2x8xf32>
    tpu.vector_store %arg7[%c0_20, %c0_21], %38 {strides = array<i32>} : memref<2x8xf32, #tpu.memory_space<vmem>>, vector<2x8xf32>,
    return
  }
}

</mosaic_0001>

<llo_original>
// kernel: hate_speech_bert_forward.1
$region0: #{hate_speech_bert_forward.1}
  #allocation0 [shape = 'u32[]', space=smem, size = 0x4, offset = 0x4, fixed_abs, tag = 'smem constant byte address 0x4 - core index']
  #allocation1 [shape = 'u32[144,128]{1,0:T(1,128)}', space=vmem, size = 0x12000, scoped, tag = 'internal scratch']
  #allocation2 [shape = 'bf16[768,1024]{1,0:T(8,128)(2,1)}', space=vmem, size = 0x180000, scoped, tag = 'scratch operand']
  #allocation3 [shape = 'bf16[1024,8]{1,0:T(8,128)(2,1)}', space=vmem, size = 0x40000, scoped, tag = 'scratch operand']
  #allocation4 [shape = 's32[2]{0}', space=sflag, size = 0x8, scoped, tag = 'scratch operand']
  #allocation7 [shape = 's32[]', space=sflag, size = 0x4, offset = 0, fixed_abs, tag = 'sflag constant byte address 0x0 - dummy sync flag']
  #allocation8 [shape = 's32[]', space=sflag, size = 0x4, offset = 0, fixed_abs, tag = 'sflag constant byte address 0x0 - dummy sync flag']
  %s0 = inlined_call_operand.vmem [shape: bf16[2,768], index: 0, kind: input, shape index: {}]
  %s1 = inlined_call_operand.vmem [shape: bf16[768,768], index: 1, kind: input, shape index: {}]
  %s2 = inlined_call_operand.vmem [shape: f32[1,768], index: 2, kind: input, shape index: {}]
  %s3 = inlined_call_operand.vmem [shape: f32[1,1024], index: 3, kind: input, shape index: {}]
  %s4 = inlined_call_operand.vmem [shape: f32[1,8], index: 4, kind: input, shape index: {}]
  %s5 = inlined_call_operand.vmem [shape: bf16[768,1024], index: 5, kind: input, shape index: {}]
  %s6 = inlined_call_operand.vmem [shape: bf16[1024,8], index: 6, kind: input, shape index: {}]
  %s7 = inlined_call_operand.hbm [shape: f32[2,8], index: 7, kind: output, shape index: {}]
  %s8 = sld [smem:[#allocation0]]
  $region98: #{hate_speech_bert_forward.1} parent=0
    _
  %s10 = ssub.s32 1, %s8
  %s11 = scalar_select 0, %s10, %s8
  $region1: #{hate_speech_bert_forward.1} parent=0
    #allocation5 [shape = 'u8[1024]{0}', space=vmem, size = 0x400, scoped, tag = 'output window, operand 0, single buffered']
    #allocation6 [shape = 's32[1]{0}', space=sflag, size = 0x4, scoped, tag = 'scoped memory for hate_speech_bert_forward.1']
    %12 = vsyncpa [#allocation6], 0
    // Predicated region
    $region2: #{hate_speech_bert_forward.1} parent=1 // pred_check
      _
    $region3: #{hate_speech_bert_forward.1} parent=1 // pred_check_branch
      %14 = sbr.rel (0) target = $region5
    $region4: #{hate_speech_bert_forward.1} parent=1 // pred_region
      _
    $region5: #{hate_speech_bert_forward.1} parent=1 // pred_fallthru
      _
    // Predicated region
    $region6: #{hate_speech_bert_forward.1} parent=1 // pred_check
      _
    $region7: #{hate_speech_bert_forward.1} parent=1 // pred_check_branch
      %16 = sbr.rel (0) target = $region9
    $region8: #{hate_speech_bert_forward.1} parent=1 // pred_region
      _
    $region9: #{hate_speech_bert_forward.1} parent=1 // pred_fallthru
      _
    // Predicated region
    $region10: #{hate_speech_bert_forward.1} parent=1 // pred_check
      _
    $region11: #{hate_speech_bert_forward.1} parent=1 // pred_check_branch
      %18 = sbr.rel (0) target = $region13
    $region12: #{hate_speech_bert_forward.1} parent=1 // pred_region
      _
    $region13: #{hate_speech_bert_forward.1} parent=1 // pred_fallthru
      _
    // Predicated region
    $region14: #{hate_speech_bert_forward.1} parent=1 // pred_check
      _
    $region15: #{hate_speech_bert_forward.1} parent=1 // pred_check_branch
      %20 = sbr.rel (0) target = $region17
    $region16: #{hate_speech_bert_forward.1} parent=1 // pred_region
      _
    $region17: #{hate_speech_bert_forward.1} parent=1 // pred_fallthru
      _
    // Predicated region
    $region18: #{hate_speech_bert_forward.1} parent=1 // pred_check
      _
    $region19: #{hate_speech_bert_forward.1} parent=1 // pred_check_branch
      %22 = sbr.rel (0) target = $region21
    $region20: #{hate_speech_bert_forward.1} parent=1 // pred_region
      _
    $region21: #{hate_speech_bert_forward.1} parent=1 // pred_fallthru
      _
    %p25 = scmp.lt.u32.totalorder 3072, 8
    %p26 = pneg %p25
    // Predicated region
    $region22: #{hate_speech_bert_forward.1} parent=1 // pred_check
      _
    $region23: #{hate_speech_bert_forward.1} parent=1 // pred_check_branch
      %28 = sbr.rel (%p25) target = $region25
    $region24: #{hate_speech_bert_forward.1} parent=1 // pred_region
      %s44 = sand.u32 3072, 7
      %p45 = scmp.eq.s32.totalorder %s44, 0
      // Predicated region
      $region37: #{hate_speech_bert_forward.1} parent=24 // pred_check
        %p46 = pneg %p45
      $region38: #{hate_speech_bert_forward.1} parent=24 // pred_check_branch
        %48 = sbr.rel (%p46) target = $region40
      $region39: #{hate_speech_bert_forward.1} parent=24 // pred_region
        loop: start=0, step=1, limit=1
        $region41: #{hate_speech_bert_forward.1} parent=39 // loop_pre_header
          _
        $region42: #{hate_speech_bert_forward.1} parent=39 // loop_header
          %s50 = sphi 0, %s54
          %p51 = scmp.ge.s32.totalorder %s50, 1
          %s55 = sphi %s5, %s5
          %s56 = sphi [#allocation2], [#allocation2]
        $region43: #{hate_speech_bert_forward.1} parent=39 // loop_header_branch
          %53 = sbr.rel (%p51) target = $region47
        $region44: #{hate_speech_bert_forward.1} parent=39 // loop_body
          %v57 = vld [vmem:[%s55] sm:$0xff]
          %58 = vst [vmem:[%s56] sm:$0xff] %v57
          %v59 = vld [vmem:[%s55 + $0x8] sm:$0xff]
          %60 = vst [vmem:[%s56 + $0x8] sm:$0xff] %v59
          %v61 = vld [vmem:[%s55 + $0x10] sm:$0xff]
          %62 = vst [vmem:[%s56 + $0x10] sm:$0xff] %v61
          %v63 = vld [vmem:[%s55 + $0x18] sm:$0xff]
          %64 = vst [vmem:[%s56 + $0x18] sm:$0xff] %v63
          %v65 = vld [vmem:[%s55 + $0x20] sm:$0xff]
          %66 = vst [vmem:[%s56 + $0x20] sm:$0xff] %v65
          %v67 = vld [vmem:[%s55 + $0x28] sm:$0xff]
          %68 = vst [vmem:[%s56 + $0x28] sm:$0xff] %v67
          %v69 = vld [vmem:[%s55 + $0x30] sm:$0xff]
          %70 = vst [vmem:[%s56 + $0x30] sm:$0xff] %v69
          %v71 = vld [vmem:[%s55 + $0x38] sm:$0xff]
          %72 = vst [vmem:[%s56 + $0x38] sm:$0xff] %v71
          %v73 = vld [vmem:[%s55 + $0x40] sm:$0xff]
          %74 = vst [vmem:[%s56 + $0x40] sm:$0xff] %v73
          %v75 = vld [vmem:[%s55 + $0x48] sm:$0xff]
          %76 = vst [vmem:[%s56 + $0x48] sm:$0xff] %v75
          %v77 = vld [vmem:[%s55 + $0x50] sm:$0xff]
          %78 = vst [vmem:[%s56 + $0x50] sm:$0xff] %v77
          %v79 = vld [vmem:[%s55 + $0x58] sm:$0xff]
          %80 = vst [vmem:[%s56 + $0x58] sm:$0xff] %v79
          %v81 = vld [vmem:[%s55 + $0x60] sm:$0xff]
          %82 = vst [vmem:[%s56 + $0x60] sm:$0xff] %v81
          %v83 = vld [vmem:[%s55 + $0x68] sm:$0xff]
          %84 = vst [vmem:[%s56 + $0x68] sm:$0xff] %v83
          %v85 = vld [vmem:[%s55 + $0x70] sm:$0xff]
          %86 = vst [vmem:[%s56 + $0x70] sm:$0xff] %v85
          %v87 = vld [vmem:[%s55 + $0x78] sm:$0xff]
          %88 = vst [vmem:[%s56 + $0x78] sm:$0xff] %v87
          %v89 = vld [vmem:[%s55 + $0x80] sm:$0xff]
          %90 = vst [vmem:[%s56 + $0x80] sm:$0xff] %v89
          %v91 = vld [vmem:[%s55 + $0x88] sm:$0xff]
          %92 = vst [vmem:[%s56 + $0x88] sm:$0xff] %v91
          %v93 = vld [vmem:[%s55 + $0x90] sm:$0xff]
          %94 = vst [vmem:[%s56 + $0x90] sm:$0xff] %v93
          %v95 = vld [vmem:[%s55 + $0x98] sm:$0xff]
          %96 = vst [vmem:[%s56 + $0x98] sm:$0xff] %v95
          %v97 = vld [vmem:[%s55 + $0xa0] sm:$0xff]
          %98 = vst [vmem:[%s56 + $0xa0] sm:$0xff] %v97
          %v99 = vld [vmem:[%s55 + $0xa8] sm:$0xff]
          %100 = vst [vmem:[%s56 + $0xa8] sm:$0xff] %v99
          %v101 = vld [vmem:[%s55 + $0xb0] sm:$0xff]
          %102 = vst [vmem:[%s56 + $0xb0] sm:$0xff] %v101
          %v103 = vld [vmem:[%s55 + $0xb8] sm:$0xff]
          %104 = vst [vmem:[%s56 + $0xb8] sm:$0xff] %v103
          %v105 = vld [vmem:[%s55 + $0xc0] sm:$0xff]
          %106 = vst [vmem:[%s56 + $0xc0] sm:$0xff] %v105
          %v107 = vld [vmem:[%s55 + $0xc8] sm:$0xff]
          %108 = vst [vmem:[%s56 + $0xc8] sm:$0xff] %v107
          %v109 = vld [vmem:[%s55 + $0xd0] sm:$0xff]
          %110 = vst [vmem:[%s56 + $0xd0] sm:$0xff] %v109
          %v111 = vld [vmem:[%s55 + $0xd8] sm:$0xff]
          %112 = vst [vmem:[%s56 + $0xd8] sm:$0xff] %v111
          %v113 = vld [vmem:[%s55 + $0xe0] sm:$0xff]
          %114 = vst [vmem:[%s56 + $0xe0] sm:$0xff] %v113
          %v115 = vld [vmem:[%s55 + $0xe8] sm:$0xff]
          %116 = vst [vmem:[%s56 + $0xe8] sm:$0xff] %v115
          %v117 = vld [vmem:[%s55 + $0xf0] sm:$0xff]
          %118 = vst [vmem:[%s56 + $0xf0] sm:$0xff] %v117
          %v119 = vld [vmem:[%s55 + $0xf8] sm:$0xff]
          %120 = vst [vmem:[%s56 + $0xf8] sm:$0xff] %v119
          %v121 = vld [vmem:[%s55 + $0x100] sm:$0xff]
          %122 = vst [vmem:[%s56 + $0x100] sm:$0xff] %v121
          %v123 = vld [vmem:[%s55 + $0x108] sm:$0xff]
          %124 = vst [vmem:[%s56 + $0x108] sm:$0xff] %v123
          %v125 = vld [vmem:[%s55 + $0x110] sm:$0xff]
          %126 = vst [vmem:[%s56 + $0x110] sm:$0xff] %v125
          %v127 = vld [vmem:[%s55 + $0x118] sm:$0xff]
          %128 = vst [vmem:[%s56 + $0x118] sm:$0xff] %v127
          %v129 = vld [vmem:[%s55 + $0x120] sm:$0xff]
          %130 = vst [vmem:[%s56 + $0x120] sm:$0xff] %v129
          %v131 = vld [vmem:[%s55 + $0x128] sm:$0xff]
          %132 = vst [vmem:[%s56 + $0x128] sm:$0xff] %v131
          %v133 = vld [vmem:[%s55 + $0x130] sm:$0xff]
          %134 = vst [vmem:[%s56 + $0x130] sm:$0xff] %v133
          %v135 = vld [vmem:[%s55 + $0x138] sm:$0xff]
          %136 = vst [vmem:[%s56 + $0x138] sm:$0xff] %v135
          %v137 = vld [vmem:[%s55 + $0x140] sm:$0xff]
          %138 = vst [vmem:[%s56 + $0x140] sm:$0xff] %v137
          %v139 = vld [vmem:[%s55 + $0x148] sm:$0xff]
          %140 = vst [vmem:[%s56 + $0x148] sm:$0xff] %v139
          %v141 = vld [vmem:[%s55 + $0x150] sm:$0xff]
          %142 = vst [vmem:[%s56 + $0x150] sm:$0xff] %v141
          %v143 = vld [vmem:[%s55 + $0x158] sm:$0xff]
          %144 = vst [vmem:[%s56 + $0x158] sm:$0xff] %v143
          %v145 = vld [vmem:[%s55 + $0x160] sm:$0xff]
          %146 = vst [vmem:[%s56 + $0x160] sm:$0xff] %v145
          %v147 = vld [vmem:[%s55 + $0x168] sm:$0xff]
          %148 = vst [vmem:[%s56 + $0x168] sm:$0xff] %v147
          %v149 = vld [vmem:[%s55 + $0x170] sm:$0xff]
          %150 = vst [vmem:[%s56 + $0x170] sm:$0xff] %v149
          %v151 = vld [vmem:[%s55 + $0x178] sm:$0xff]
          %152 = vst [vmem:[%s56 + $0x178] sm:$0xff] %v151
          %v153 = vld [vmem:[%s55 + $0x180] sm:$0xff]
          %154 = vst [vmem:[%s56 + $0x180] sm:$0xff] %v153
          %v155 = vld [vmem:[%s55 + $0x188] sm:$0xff]
          %156 = vst [vmem:[%s56 + $0x188] sm:$0xff] %v155
          %v157 = vld [vmem:[%s55 + $0x190] sm:$0xff]
          %158 = vst [vmem:[%s56 + $0x190] sm:$0xff] %v157
          %v159 = vld [vmem:[%s55 + $0x198] sm:$0xff]
          %160 = vst [vmem:[%s56 + $0x198] sm:$0xff] %v159
          %v161 = vld [vmem:[%s55 + $0x1a0] sm:$0xff]
          %162 = vst [vmem:[%s56 + $0x1a0] sm:$0xff] %v161
          %v163 = vld [vmem:[%s55 + $0x1a8] sm:$0xff]
          %164 = vst [vmem:[%s56 + $0x1a8] sm:$0xff] %v163
          %v165 = vld [vmem:[%s55 + $0x1b0] sm:$0xff]
          %166 = vst [vmem:[%s56 + $0x1b0] sm:$0xff] %v165
          %v167 = vld [vmem:[%s55 + $0x1b8] sm:$0xff]
          %168 = vst [vmem:[%s56 + $0x1b8] sm:$0xff] %v167
          %v169 = vld [vmem:[%s55 + $0x1c0] sm:$0xff]
          %170 = vst [vmem:[%s56 + $0x1c0] sm:$0xff] %v169
          %v171 = vld [vmem:[%s55 + $0x1c8] sm:$0xff]
          %172 = vst [vmem:[%s56 + $0x1c8] sm:$0xff] %v171
          %v173 = vld [vmem:[%s55 + $0x1d0] sm:$0xff]
          %174 = vst [vmem:[%s56 + $0x1d0] sm:$0xff] %v173
          %v175 = vld [vmem:[%s55 + $0x1d8] sm:$0xff]
          %176 = vst [vmem:[%s56 + $0x1d8] sm:$0xff] %v175
          %v177 = vld [vmem:[%s55 + $0x1e0] sm:$0xff]
          %178 = vst [vmem:[%s56 + $0x1e0] sm:$0xff] %v177
          %v179 = vld [vmem:[%s55 + $0x1e8] sm:$0xff]
          %180 = vst [vmem:[%s56 + $0x1e8] sm:$0xff] %v179
          %v181 = vld [vmem:[%s55 + $0x1f0] sm:$0xff]
          %182 = vst [vmem:[%s56 + $0x1f0] sm:$0xff] %v181
          %v183 = vld [vmem:[%s55 + $0x1f8] sm:$0xff]
          %184 = vst [vmem:[%s56 + $0x1f8] sm:$0xff] %v183
          %v185 = vld [vmem:[%s55 + $0x200] sm:$0xff]
          %186 = vst [vmem:[%s56 + $0x200] sm:$0xff] %v185
          %v187 = vld [vmem:[%s55 + $0x208] sm:$0xff]
          %188 = vst [vmem:[%s56 + $0x208] sm:$0xff] %v187
          %v189 = vld [vmem:[%s55 + $0x210] sm:$0xff]
          %190 = vst [vmem:[%s56 + $0x210] sm:$0xff] %v189
          %v191 = vld [vmem:[%s55 + $0x218] sm:$0xff]
          %192 = vst [vmem:[%s56 + $0x218] sm:$0xff] %v191
          %v193 = vld [vmem:[%s55 + $0x220] sm:$0xff]
          %194 = vst [vmem:[%s56 + $0x220] sm:$0xff] %v193
          %v195 = vld [vmem:[%s55 + $0x228] sm:$0xff]
          %196 = vst [vmem:[%s56 + $0x228] sm:$0xff] %v195
          %v197 = vld [vmem:[%s55 + $0x230] sm:$0xff]
          %198 = vst [vmem:[%s56 + $0x230] sm:$0xff] %v197
          %v199 = vld [vmem:[%s55 + $0x238] sm:$0xff]
          %200 = vst [vmem:[%s56 + $0x238] sm:$0xff] %v199
          %v201 = vld [vmem:[%s55 + $0x240] sm:$0xff]
          %202 = vst [vmem:[%s56 + $0x240] sm:$0xff] %v201
          %v203 = vld [vmem:[%s55 + $0x248] sm:$0xff]
          %204 = vst [vmem:[%s56 + $0x248] sm:$0xff] %v203
          %v205 = vld [vmem:[%s55 + $0x250] sm:$0xff]
          %206 = vst [vmem:[%s56 + $0x250] sm:$0xff] %v205
          %v207 = vld [vmem:[%s55 + $0x258] sm:$0xff]
          %208 = vst [vmem:[%s56 + $0x258] sm:$0xff] %v207
          %v209 = vld [vmem:[%s55 + $0x260] sm:$0xff]
          %210 = vst [vmem:[%s56 + $0x260] sm:$0xff] %v209
          %v211 = vld [vmem:[%s55 + $0x268] sm:$0xff]
          %212 = vst [vmem:[%s56 + $0x268] sm:$0xff] %v211
          %v213 = vld [vmem:[%s55 + $0x270] sm:$0xff]
          %214 = vst [vmem:[%s56 + $0x270] sm:$0xff] %v213
          %v215 = vld [vmem:[%s55 + $0x278] sm:$0xff]
          %216 = vst [vmem:[%s56 + $0x278] sm:$0xff] %v215
          %v217 = vld [vmem:[%s55 + $0x280] sm:$0xff]
          %218 = vst [vmem:[%s56 + $0x280] sm:$0xff] %v217
          %v219 = vld [vmem:[%s55 + $0x288] sm:$0xff]
          %220 = vst [vmem:[%s56 + $0x288] sm:$0xff] %v219
          %v221 = vld [vmem:[%s55 + $0x290] sm:$0xff]
          %222 = vst [vmem:[%s56 + $0x290] sm:$0xff] %v221
          %v223 = vld [vmem:[%s55 + $0x298] sm:$0xff]
          %224 = vst [vmem:[%s56 + $0x298] sm:$0xff] %v223
          %v225 = vld [vmem:[%s55 + $0x2a0] sm:$0xff]
          %226 = vst [vmem:[%s56 + $0x2a0] sm:$0xff] %v225
          %v227 = vld [vmem:[%s55 + $0x2a8] sm:$0xff]
          %228 = vst [vmem:[%s56 + $0x2a8] sm:$0xff] %v227
          %v229 = vld [vmem:[%s55 + $0x2b0] sm:$0xff]
          %230 = vst [vmem:[%s56 + $0x2b0] sm:$0xff] %v229
          %v231 = vld [vmem:[%s55 + $0x2b8] sm:$0xff]
          %232 = vst [vmem:[%s56 + $0x2b8] sm:$0xff] %v231
          %v233 = vld [vmem:[%s55 + $0x2c0] sm:$0xff]
          %234 = vst [vmem:[%s56 + $0x2c0] sm:$0xff] %v233
          %v235 = vld [vmem:[%s55 + $0x2c8] sm:$0xff]
          %236 = vst [vmem:[%s56 + $0x2c8] sm:$0xff] %v235
          %v237 = vld [vmem:[%s55 + $0x2d0] sm:$0xff]
          %238 = vst [vmem:[%s56 + $0x2d0] sm:$0xff] %v237
          %v239 = vld [vmem:[%s55 + $0x2d8] sm:$0xff]
          %240 = vst [vmem:[%s56 + $0x2d8] sm:$0xff] %v239
          %v241 = vld [vmem:[%s55 + $0x2e0] sm:$0xff]
          %242 = vst [vmem:[%s56 + $0x2e0] sm:$0xff] %v241
          %v243 = vld [vmem:[%s55 + $0x2e8] sm:$0xff]
          %244 = vst [vmem:[%s56 + $0x2e8] sm:$0xff] %v243
          %v245 = vld [vmem:[%s55 + $0x2f0] sm:$0xff]
          %246 = vst [vmem:[%s56 + $0x2f0] sm:$0xff] %v245
          %v247 = vld [vmem:[%s55 + $0x2f8] sm:$0xff]
          %248 = vst [vmem:[%s56 + $0x2f8] sm:$0xff] %v247
          %v249 = vld [vmem:[%s55 + $0x300] sm:$0xff]
          %250 = vst [vmem:[%s56 + $0x300] sm:$0xff] %v249
          %v251 = vld [vmem:[%s55 + $0x308] sm:$0xff]
          %252 = vst [vmem:[%s56 + $0x308] sm:$0xff] %v251
          %v253 = vld [vmem:[%s55 + $0x310] sm:$0xff]
          %254 = vst [vmem:[%s56 + $0x310] sm:$0xff] %v253
          %v255 = vld [vmem:[%s55 + $0x318] sm:$0xff]
          %256 = vst [vmem:[%s56 + $0x318] sm:$0xff] %v255
          %v257 = vld [vmem:[%s55 + $0x320] sm:$0xff]
          %258 = vst [vmem:[%s56 + $0x320] sm:$0xff] %v257
          %v259 = vld [vmem:[%s55 + $0x328] sm:$0xff]
          %260 = vst [vmem:[%s56 + $0x328] sm:$0xff] %v259
          %v261 = vld [vmem:[%s55 + $0x330] sm:$0xff]
          %262 = vst [vmem:[%s56 + $0x330] sm:$0xff] %v261
          %v263 = vld [vmem:[%s55 + $0x338] sm:$0xff]
          %264 = vst [vmem:[%s56 + $0x338] sm:$0xff] %v263
          %v265 = vld [vmem:[%s55 + $0x340] sm:$0xff]
          %266 = vst [vmem:[%s56 + $0x340] sm:$0xff] %v265
          %v267 = vld [vmem:[%s55 + $0x348] sm:$0xff]
          %268 = vst [vmem:[%s56 + $0x348] sm:$0xff] %v267
          %v269 = vld [vmem:[%s55 + $0x350] sm:$0xff]
          %270 = vst [vmem:[%s56 + $0x350] sm:$0xff] %v269
          %v271 = vld [vmem:[%s55 + $0x358] sm:$0xff]
          %272 = vst [vmem:[%s56 + $0x358] sm:$0xff] %v271
          %v273 = vld [vmem:[%s55 + $0x360] sm:$0xff]
          %274 = vst [vmem:[%s56 + $0x360] sm:$0xff] %v273
          %v275 = vld [vmem:[%s55 + $0x368] sm:$0xff]
          %276 = vst [vmem:[%s56 + $0x368] sm:$0xff] %v275
          %v277 = vld [vmem:[%s55 + $0x370] sm:$0xff]
          %278 = vst [vmem:[%s56 + $0x370] sm:$0xff] %v277
          %v279 = vld [vmem:[%s55 + $0x378] sm:$0xff]
          %280 = vst [vmem:[%s56 + $0x378] sm:$0xff] %v279
          %v281 = vld [vmem:[%s55 + $0x380] sm:$0xff]
          %282 = vst [vmem:[%s56 + $0x380] sm:$0xff] %v281
          %v283 = vld [vmem:[%s55 + $0x388] sm:$0xff]
          %284 = vst [vmem:[%s56 + $0x388] sm:$0xff] %v283
          %v285 = vld [vmem:[%s55 + $0x390] sm:$0xff]
          %286 = vst [vmem:[%s56 + $0x390] sm:$0xff] %v285
          %v287 = vld [vmem:[%s55 + $0x398] sm:$0xff]
          %288 = vst [vmem:[%s56 + $0x398] sm:$0xff] %v287
          %v289 = vld [vmem:[%s55 + $0x3a0] sm:$0xff]
          %290 = vst [vmem:[%s56 + $0x3a0] sm:$0xff] %v289
          %v291 = vld [vmem:[%s55 + $0x3a8] sm:$0xff]
          %292 = vst [vmem:[%s56 + $0x3a8] sm:$0xff] %v291
          %v293 = vld [vmem:[%s55 + $0x3b0] sm:$0xff]
          %294 = vst [vmem:[%s56 + $0x3b0] sm:$0xff] %v293
          %v295 = vld [vmem:[%s55 + $0x3b8] sm:$0xff]
          %296 = vst [vmem:[%s56 + $0x3b8] sm:$0xff] %v295
          %v297 = vld [vmem:[%s55 + $0x3c0] sm:$0xff]
          %298 = vst [vmem:[%s56 + $0x3c0] sm:$0xff] %v297
          %v299 = vld [vmem:[%s55 + $0x3c8] sm:$0xff]
          %300 = vst [vmem:[%s56 + $0x3c8] sm:$0xff] %v299
          %v301 = vld [vmem:[%s55 + $0x3d0] sm:$0xff]
          %302 = vst [vmem:[%s56 + $0x3d0] sm:$0xff] %v301
          %v303 = vld [vmem:[%s55 + $0x3d8] sm:$0xff]
          %304 = vst [vmem:[%s56 + $0x3d8] sm:$0xff] %v303
          %v305 = vld [vmem:[%s55 + $0x3e0] sm:$0xff]
          %306 = vst [vmem:[%s56 + $0x3e0] sm:$0xff] %v305
          %v307 = vld [vmem:[%s55 + $0x3e8] sm:$0xff]
          %308 = vst [vmem:[%s56 + $0x3e8] sm:$0xff] %v307
          %v309 = vld [vmem:[%s55 + $0x3f0] sm:$0xff]
          %310 = vst [vmem:[%s56 + $0x3f0] sm:$0xff] %v309
          %v311 = vld [vmem:[%s55 + $0x3f8] sm:$0xff]
          %312 = vst [vmem:[%s56 + $0x3f8] sm:$0xff] %v311
          %v313 = vld [vmem:[%s55 + $0x400] sm:$0xff]
          %314 = vst [vmem:[%s56 + $0x400] sm:$0xff] %v313
          %v315 = vld [vmem:[%s55 + $0x408] sm:$0xff]
          %316 = vst [vmem:[%s56 + $0x408] sm:$0xff] %v315
          %v317 = vld [vmem:[%s55 + $0x410] sm:$0xff]
          %318 = vst [vmem:[%s56 + $0x410] sm:$0xff] %v317
          %v319 = vld [vmem:[%s55 + $0x418] sm:$0xff]
          %320 = vst [vmem:[%s56 + $0x418] sm:$0xff] %v319
          %v321 = vld [vmem:[%s55 + $0x420] sm:$0xff]
          %322 = vst [vmem:[%s56 + $0x420] sm:$0xff] %v321
          %v323 = vld [vmem:[%s55 + $0x428] sm:$0xff]
          %324 = vst [vmem:[%s56 + $0x428] sm:$0xff] %v323
          %v325 = vld [vmem:[%s55 + $0x430] sm:$0xff]
          %326 = vst [vmem:[%s56 + $0x430] sm:$0xff] %v325
          %v327 = vld [vmem:[%s55 + $0x438] sm:$0xff]
          %328 = vst [vmem:[%s56 + $0x438] sm:$0xff] %v327
          %v329 = vld [vmem:[%s55 + $0x440] sm:$0xff]
          %330 = vst [vmem:[%s56 + $0x440] sm:$0xff] %v329
          %v331 = vld [vmem:[%s55 + $0x448] sm:$0xff]
          %332 = vst [vmem:[%s56 + $0x448] sm:$0xff] %v331
          %v333 = vld [vmem:[%s55 + $0x450] sm:$0xff]
          %334 = vst [vmem:[%s56 + $0x450] sm:$0xff] %v333
          %v335 = vld [vmem:[%s55 + $0x458] sm:$0xff]
          %336 = vst [vmem:[%s56 + $0x458] sm:$0xff] %v335
          %v337 = vld [vmem:[%s55 + $0x460] sm:$0xff]
          %338 = vst [vmem:[%s56 + $0x460] sm:$0xff] %v337
          %v339 = vld [vmem:[%s55 + $0x468] sm:$0xff]
          %340 = vst [vmem:[%s56 + $0x468] sm:$0xff] %v339
          %v341 = vld [vmem:[%s55 + $0x470] sm:$0xff]
          %342 = vst [vmem:[%s56 + $0x470] sm:$0xff] %v341
          %v343 = vld [vmem:[%s55 + $0x478] sm:$0xff]
          %344 = vst [vmem:[%s56 + $0x478] sm:$0xff] %v343
          %v345 = vld [vmem:[%s55 + $0x480] sm:$0xff]
          %346 = vst [vmem:[%s56 + $0x480] sm:$0xff] %v345
          %v347 = vld [vmem:[%s55 + $0x488] sm:$0xff]
          %348 = vst [vmem:[%s56 + $0x488] sm:$0xff] %v347
          %v349 = vld [vmem:[%s55 + $0x490] sm:$0xff]
          %350 = vst [vmem:[%s56 + $0x490] sm:$0xff] %v349
          %v351 = vld [vmem:[%s55 + $0x498] sm:$0xff]
          %352 = vst [vmem:[%s56 + $0x498] sm:$0xff] %v351
          %v353 = vld [vmem:[%s55 + $0x4a0] sm:$0xff]
          %354 = vst [vmem:[%s56 + $0x4a0] sm:$0xff] %v353
          %v355 = vld [vmem:[%s55 + $0x4a8] sm:$0xff]
          %356 = vst [vmem:[%s56 + $0x4a8] sm:$0xff] %v355
          %v357 = vld [vmem:[%s55 + $0x4b0] sm:$0xff]
          %358 = vst [vmem:[%s56 + $0x4b0] sm:$0xff] %v357
          %v359 = vld [vmem:[%s55 + $0x4b8] sm:$0xff]
          %360 = vst [vmem:[%s56 + $0x4b8] sm:$0xff] %v359
          %v361 = vld [vmem:[%s55 + $0x4c0] sm:$0xff]
          %362 = vst [vmem:[%s56 + $0x4c0] sm:$0xff] %v361
          %v363 = vld [vmem:[%s55 + $0x4c8] sm:$0xff]
          %364 = vst [vmem:[%s56 + $0x4c8] sm:$0xff] %v363
          %v365 = vld [vmem:[%s55 + $0x4d0] sm:$0xff]
          %366 = vst [vmem:[%s56 + $0x4d0] sm:$0xff] %v365
          %v367 = vld [vmem:[%s55 + $0x4d8] sm:$0xff]
          %368 = vst [vmem:[%s56 + $0x4d8] sm:$0xff] %v367
          %v369 = vld [vmem:[%s55 + $0x4e0] sm:$0xff]
          %370 = vst [vmem:[%s56 + $0x4e0] sm:$0xff] %v369
          %v371 = vld [vmem:[%s55 + $0x4e8] sm:$0xff]
          %372 = vst [vmem:[%s56 + $0x4e8] sm:$0xff] %v371
          %v373 = vld [vmem:[%s55 + $0x4f0] sm:$0xff]
          %374 = vst [vmem:[%s56 + $0x4f0] sm:$0xff] %v373
          %v375 = vld [vmem:[%s55 + $0x4f8] sm:$0xff]
          %376 = vst [vmem:[%s56 + $0x4f8] sm:$0xff] %v375
          %v377 = vld [vmem:[%s55 + $0x500] sm:$0xff]
          %378 = vst [vmem:[%s56 + $0x500] sm:$0xff] %v377
          %v379 = vld [vmem:[%s55 + $0x508] sm:$0xff]
          %380 = vst [vmem:[%s56 + $0x508] sm:$0xff] %v379
          %v381 = vld [vmem:[%s55 + $0x510] sm:$0xff]
          %382 = vst [vmem:[%s56 + $0x510] sm:$0xff] %v381
          %v383 = vld [vmem:[%s55 + $0x518] sm:$0xff]
          %384 = vst [vmem:[%s56 + $0x518] sm:$0xff] %v383
          %v385 = vld [vmem:[%s55 + $0x520] sm:$0xff]
          %386 = vst [vmem:[%s56 + $0x520] sm:$0xff] %v385
          %v387 = vld [vmem:[%s55 + $0x528] sm:$0xff]
          %388 = vst [vmem:[%s56 + $0x528] sm:$0xff] %v387
          %v389 = vld [vmem:[%s55 + $0x530] sm:$0xff]
          %390 = vst [vmem:[%s56 + $0x530] sm:$0xff] %v389
          %v391 = vld [vmem:[%s55 + $0x538] sm:$0xff]
          %392 = vst [vmem:[%s56 + $0x538] sm:$0xff] %v391
          %v393 = vld [vmem:[%s55 + $0x540] sm:$0xff]
          %394 = vst [vmem:[%s56 + $0x540] sm:$0xff] %v393
          %v395 = vld [vmem:[%s55 + $0x548] sm:$0xff]
          %396 = vst [vmem:[%s56 + $0x548] sm:$0xff] %v395
          %v397 = vld [vmem:[%s55 + $0x550] sm:$0xff]
          %398 = vst [vmem:[%s56 + $0x550] sm:$0xff] %v397
          %v399 = vld [vmem:[%s55 + $0x558] sm:$0xff]
          %400 = vst [vmem:[%s56 + $0x558] sm:$0xff] %v399
          %v401 = vld [vmem:[%s55 + $0x560] sm:$0xff]
          %402 = vst [vmem:[%s56 + $0x560] sm:$0xff] %v401
          %v403 = vld [vmem:[%s55 + $0x568] sm:$0xff]
          %404 = vst [vmem:[%s56 + $0x568] sm:$0xff] %v403
          %v405 = vld [vmem:[%s55 + $0x570] sm:$0xff]
          %406 = vst [vmem:[%s56 + $0x570] sm:$0xff] %v405
          %v407 = vld [vmem:[%s55 + $0x578] sm:$0xff]
          %408 = vst [vmem:[%s56 + $0x578] sm:$0xff] %v407
          %v409 = vld [vmem:[%s55 + $0x580] sm:$0xff]
          %410 = vst [vmem:[%s56 + $0x580] sm:$0xff] %v409
          %v411 = vld [vmem:[%s55 + $0x588] sm:$0xff]
          %412 = vst [vmem:[%s56 + $0x588] sm:$0xff] %v411
          %v413 = vld [vmem:[%s55 + $0x590] sm:$0xff]
          %414 = vst [vmem:[%s56 + $0x590] sm:$0xff] %v413
          %v415 = vld [vmem:[%s55 + $0x598] sm:$0xff]
          %416 = vst [vmem:[%s56 + $0x598] sm:$0xff] %v415
          %v417 = vld [vmem:[%s55 + $0x5a0] sm:$0xff]
          %418 = vst [vmem:[%s56 + $0x5a0] sm:$0xff] %v417
          %v419 = vld [vmem:[%s55 + $0x5a8] sm:$0xff]
          %420 = vst [vmem:[%s56 + $0x5a8] sm:$0xff] %v419
          %v421 = vld [vmem:[%s55 + $0x5b0] sm:$0xff]
          %422 = vst [vmem:[%s56 + $0x5b0] sm:$0xff] %v421
          %v423 = vld [vmem:[%s55 + $0x5b8] sm:$0xff]
          %424 = vst [vmem:[%s56 + $0x5b8] sm:$0xff] %v423
          %v425 = vld [vmem:[%s55 + $0x5c0] sm:$0xff]
          %426 = vst [vmem:[%s56 + $0x5c0] sm:$0xff] %v425
          %v427 = vld [vmem:[%s55 + $0x5c8] sm:$0xff]
          %428 = vst [vmem:[%s56 + $0x5c8] sm:$0xff] %v427
          %v429 = vld [vmem:[%s55 + $0x5d0] sm:$0xff]
          %430 = vst [vmem:[%s56 + $0x5d0] sm:$0xff] %v429
          %v431 = vld [vmem:[%s55 + $0x5d8] sm:$0xff]
          %432 = vst [vmem:[%s56 + $0x5d8] sm:$0xff] %v431
          %v433 = vld [vmem:[%s55 + $0x5e0] sm:$0xff]
          %434 = vst [vmem:[%s56 + $0x5e0] sm:$0xff] %v433
          %v435 = vld [vmem:[%s55 + $0x5e8] sm:$0xff]
          %436 = vst [vmem:[%s56 + $0x5e8] sm:$0xff] %v435
          %v437 = vld [vmem:[%s55 + $0x5f0] sm:$0xff]
          %438 = vst [vmem:[%s56 + $0x5f0] sm:$0xff] %v437
          %v439 = vld [vmem:[%s55 + $0x5f8] sm:$0xff]
          %440 = vst [vmem:[%s56 + $0x5f8] sm:$0xff] %v439
          %v441 = vld [vmem:[%s55 + $0x600] sm:$0xff]
          %442 = vst [vmem:[%s56 + $0x600] sm:$0xff] %v441
          %v443 = vld [vmem:[%s55 + $0x608] sm:$0xff]
          %444 = vst [vmem:[%s56 + $0x608] sm:$0xff] %v443
          %v445 = vld [vmem:[%s55 + $0x610] sm:$0xff]
          %446 = vst [vmem:[%s56 + $0x610] sm:$0xff] %v445
          %v447 = vld [vmem:[%s55 + $0x618] sm:$0xff]
          %448 = vst [vmem:[%s56 + $0x618] sm:$0xff] %v447
          %v449 = vld [vmem:[%s55 + $0x620] sm:$0xff]
          %450 = vst [vmem:[%s56 + $0x620] sm:$0xff] %v449
          %v451 = vld [vmem:[%s55 + $0x628] sm:$0xff]
          %452 = vst [vmem:[%s56 + $0x628] sm:$0xff] %v451
          %v453 = vld [vmem:[%s55 + $0x630] sm:$0xff]
          %454 = vst [vmem:[%s56 + $0x630] sm:$0xff] %v453
          %v455 = vld [vmem:[%s55 + $0x638] sm:$0xff]
          %456 = vst [vmem:[%s56 + $0x638] sm:$0xff] %v455
          %v457 = vld [vmem:[%s55 + $0x640] sm:$0xff]
          %458 = vst [vmem:[%s56 + $0x640] sm:$0xff] %v457
          %v459 = vld [vmem:[%s55 + $0x648] sm:$0xff]
          %460 = vst [vmem:[%s56 + $0x648] sm:$0xff] %v459
          %v461 = vld [vmem:[%s55 + $0x650] sm:$0xff]
          %462 = vst [vmem:[%s56 + $0x650] sm:$0xff] %v461
          %v463 = vld [vmem:[%s55 + $0x658] sm:$0xff]
          %464 = vst [vmem:[%s56 + $0x658] sm:$0xff] %v463
          %v465 = vld [vmem:[%s55 + $0x660] sm:$0xff]
          %466 = vst [vmem:[%s56 + $0x660] sm:$0xff] %v465
          %v467 = vld [vmem:[%s55 + $0x668] sm:$0xff]
          %468 = vst [vmem:[%s56 + $0x668] sm:$0xff] %v467
          %v469 = vld [vmem:[%s55 + $0x670] sm:$0xff]
          %470 = vst [vmem:[%s56 + $0x670] sm:$0xff] %v469
          %v471 = vld [vmem:[%s55 + $0x678] sm:$0xff]
          %472 = vst [vmem:[%s56 + $0x678] sm:$0xff] %v471
          %v473 = vld [vmem:[%s55 + $0x680] sm:$0xff]
          %474 = vst [vmem:[%s56 + $0x680] sm:$0xff] %v473
          %v475 = vld [vmem:[%s55 + $0x688] sm:$0xff]
          %476 = vst [vmem:[%s56 + $0x688] sm:$0xff] %v475
          %v477 = vld [vmem:[%s55 + $0x690] sm:$0xff]
          %478 = vst [vmem:[%s56 + $0x690] sm:$0xff] %v477
          %v479 = vld [vmem:[%s55 + $0x698] sm:$0xff]
          %480 = vst [vmem:[%s56 + $0x698] sm:$0xff] %v479
          %v481 = vld [vmem:[%s55 + $0x6a0] sm:$0xff]
          %482 = vst [vmem:[%s56 + $0x6a0] sm:$0xff] %v481
          %v483 = vld [vmem:[%s55 + $0x6a8] sm:$0xff]
          %484 = vst [vmem:[%s56 + $0x6a8] sm:$0xff] %v483
          %v485 = vld [vmem:[%s55 + $0x6b0] sm:$0xff]
          %486 = vst [vmem:[%s56 + $0x6b0] sm:$0xff] %v485
          %v487 = vld [vmem:[%s55 + $0x6b8] sm:$0xff]
          %488 = vst [vmem:[%s56 + $0x6b8] sm:$0xff] %v487
          %v489 = vld [vmem:[%s55 + $0x6c0] sm:$0xff]
          %490 = vst [vmem:[%s56 + $0x6c0] sm:$0xff] %v489
          %v491 = vld [vmem:[%s55 + $0x6c8] sm:$0xff]
          %492 = vst [vmem:[%s56 + $0x6c8] sm:$0xff] %v491
          %v493 = vld [vmem:[%s55 + $0x6d0] sm:$0xff]
          %494 = vst [vmem:[%s56 + $0x6d0] sm:$0xff] %v493
          %v495 = vld [vmem:[%s55 + $0x6d8] sm:$0xff]
          %496 = vst [vmem:[%s56 + $0x6d8] sm:$0xff] %v495
          %v497 = vld [vmem:[%s55 + $0x6e0] sm:$0xff]
          %498 = vst [vmem:[%s56 + $0x6e0] sm:$0xff] %v497
          %v499 = vld [vmem:[%s55 + $0x6e8] sm:$0xff]
          %500 = vst [vmem:[%s56 + $0x6e8] sm:$0xff] %v499
          %v501 = vld [vmem:[%s55 + $0x6f0] sm:$0xff]
          %502 = vst [vmem:[%s56 + $0x6f0] sm:$0xff] %v501
          %v503 = vld [vmem:[%s55 + $0x6f8] sm:$0xff]
          %504 = vst [vmem:[%s56 + $0x6f8] sm:$0xff] %v503
          %v505 = vld [vmem:[%s55 + $0x700] sm:$0xff]
          %506 = vst [vmem:[%s56 + $0x700] sm:$0xff] %v505
          %v507 = vld [vmem:[%s55 + $0x708] sm:$0xff]
          %508 = vst [vmem:[%s56 + $0x708] sm:$0xff] %v507
          %v509 = vld [vmem:[%s55 + $0x710] sm:$0xff]
          %510 = vst [vmem:[%s56 + $0x710] sm:$0xff] %v509
          %v511 = vld [vmem:[%s55 + $0x718] sm:$0xff]
          %512 = vst [vmem:[%s56 + $0x718] sm:$0xff] %v511
          %v513 = vld [vmem:[%s55 + $0x720] sm:$0xff]
          %514 = vst [vmem:[%s56 + $0x720] sm:$0xff] %v513
          %v515 = vld [vmem:[%s55 + $0x728] sm:$0xff]
          %516 = vst [vmem:[%s56 + $0x728] sm:$0xff] %v515
          %v517 = vld [vmem:[%s55 + $0x730] sm:$0xff]
          %518 = vst [vmem:[%s56 + $0x730] sm:$0xff] %v517
          %v519 = vld [vmem:[%s55 + $0x738] sm:$0xff]
          %520 = vst [vmem:[%s56 + $0x738] sm:$0xff] %v519
          %v521 = vld [vmem:[%s55 + $0x740] sm:$0xff]
          %522 = vst [vmem:[%s56 + $0x740] sm:$0xff] %v521
          %v523 = vld [vmem:[%s55 + $0x748] sm:$0xff]
          %524 = vst [vmem:[%s56 + $0x748] sm:$0xff] %v523
          %v525 = vld [vmem:[%s55 + $0x750] sm:$0xff]
          %526 = vst [vmem:[%s56 + $0x750] sm:$0xff] %v525
          %v527 = vld [vmem:[%s55 + $0x758] sm:$0xff]
          %528 = vst [vmem:[%s56 + $0x758] sm:$0xff] %v527
          %v529 = vld [vmem:[%s55 + $0x760] sm:$0xff]
          %530 = vst [vmem:[%s56 + $0x760] sm:$0xff] %v529
          %v531 = vld [vmem:[%s55 + $0x768] sm:$0xff]
          %532 = vst [vmem:[%s56 + $0x768] sm:$0xff] %v531
          %v533 = vld [vmem:[%s55 + $0x770] sm:$0xff]
          %534 = vst [vmem:[%s56 + $0x770] sm:$0xff] %v533
          %v535 = vld [vmem:[%s55 + $0x778] sm:$0xff]
          %536 = vst [vmem:[%s56 + $0x778] sm:$0xff] %v535
          %v537 = vld [vmem:[%s55 + $0x780] sm:$0xff]
          %538 = vst [vmem:[%s56 + $0x780] sm:$0xff] %v537
          %v539 = vld [vmem:[%s55 + $0x788] sm:$0xff]
          %540 = vst [vmem:[%s56 + $0x788] sm:$0xff] %v539
          %v541 = vld [vmem:[%s55 + $0x790] sm:$0xff]
          %542 = vst [vmem:[%s56 + $0x790] sm:$0xff] %v541
          %v543 = vld [vmem:[%s55 + $0x798] sm:$0xff]
          %544 = vst [vmem:[%s56 + $0x798] sm:$0xff] %v543
          %v545 = vld [vmem:[%s55 + $0x7a0] sm:$0xff]
          %546 = vst [vmem:[%s56 + $0x7a0] sm:$0xff] %v545
          %v547 = vld [vmem:[%s55 + $0x7a8] sm:$0xff]
          %548 = vst [vmem:[%s56 + $0x7a8] sm:$0xff] %v547
          %v549 = vld [vmem:[%s55 + $0x7b0] sm:$0xff]
          %550 = vst [vmem:[%s56 + $0x7b0] sm:$0xff] %v549
          %v551 = vld [vmem:[%s55 + $0x7b8] sm:$0xff]
          %552 = vst [vmem:[%s56 + $0x7b8] sm:$0xff] %v551
          %v553 = vld [vmem:[%s55 + $0x7c0] sm:$0xff]
          %554 = vst [vmem:[%s56 + $0x7c0] sm:$0xff] %v553
          %v555 = vld [vmem:[%s55 + $0x7c8] sm:$0xff]
          %556 = vst [vmem:[%s56 + $0x7c8] sm:$0xff] %v555
          %v557 = vld [vmem:[%s55 + $0x7d0] sm:$0xff]
          %558 = vst [vmem:[%s56 + $0x7d0] sm:$0xff] %v557
          %v559 = vld [vmem:[%s55 + $0x7d8] sm:$0xff]
          %560 = vst [vmem:[%s56 + $0x7d8] sm:$0xff] %v559
          %v561 = vld [vmem:[%s55 + $0x7e0] sm:$0xff]
          %562 = vst [vmem:[%s56 + $0x7e0] sm:$0xff] %v561
          %v563 = vld [vmem:[%s55 + $0x7e8] sm:$0xff]
          %564 = vst [vmem:[%s56 + $0x7e8] sm:$0xff] %v563
          %v565 = vld [vmem:[%s55 + $0x7f0] sm:$0xff]
          %566 = vst [vmem:[%s56 + $0x7f0] sm:$0xff] %v565
          %v567 = vld [vmem:[%s55 + $0x7f8] sm:$0xff]
          %568 = vst [vmem:[%s56 + $0x7f8] sm:$0xff] %v567
          %v569 = vld [vmem:[%s55 + $0x800] sm:$0xff]
          %570 = vst [vmem:[%s56 + $0x800] sm:$0xff] %v569
          %v571 = vld [vmem:[%s55 + $0x808] sm:$0xff]
          %572 = vst [vmem:[%s56 + $0x808] sm:$0xff] %v571
          %v573 = vld [vmem:[%s55 + $0x810] sm:$0xff]
          %574 = vst [vmem:[%s56 + $0x810] sm:$0xff] %v573
          %v575 = vld [vmem:[%s55 + $0x818] sm:$0xff]
          %576 = vst [vmem:[%s56 + $0x818] sm:$0xff] %v575
          %v577 = vld [vmem:[%s55 + $0x820] sm:$0xff]
          %578 = vst [vmem:[%s56 + $0x820] sm:$0xff] %v577
          %v579 = vld [vmem:[%s55 + $0x828] sm:$0xff]
          %580 = vst [vmem:[%s56 + $0x828] sm:$0xff] %v579
          %v581 = vld [vmem:[%s55 + $0x830] sm:$0xff]
          %582 = vst [vmem:[%s56 + $0x830] sm:$0xff] %v581
          %v583 = vld [vmem:[%s55 + $0x838] sm:$0xff]
          %584 = vst [vmem:[%s56 + $0x838] sm:$0xff] %v583
          %v585 = vld [vmem:[%s55 + $0x840] sm:$0xff]
          %586 = vst [vmem:[%s56 + $0x840] sm:$0xff] %v585
          %v587 = vld [vmem:[%s55 + $0x848] sm:$0xff]
          %588 = vst [vmem:[%s56 + $0x848] sm:$0xff] %v587
          %v589 = vld [vmem:[%s55 + $0x850] sm:$0xff]
          %590 = vst [vmem:[%s56 + $0x850] sm:$0xff] %v589
          %v591 = vld [vmem:[%s55 + $0x858] sm:$0xff]
          %592 = vst [vmem:[%s56 + $0x858] sm:$0xff] %v591
          %v593 = vld [vmem:[%s55 + $0x860] sm:$0xff]
          %594 = vst [vmem:[%s56 + $0x860] sm:$0xff] %v593
          %v595 = vld [vmem:[%s55 + $0x868] sm:$0xff]
          %596 = vst [vmem:[%s56 + $0x868] sm:$0xff] %v595
          %v597 = vld [vmem:[%s55 + $0x870] sm:$0xff]
          %598 = vst [vmem:[%s56 + $0x870] sm:$0xff] %v597
          %v599 = vld [vmem:[%s55 + $0x878] sm:$0xff]
          %600 = vst [vmem:[%s56 + $0x878] sm:$0xff] %v599
          %v601 = vld [vmem:[%s55 + $0x880] sm:$0xff]
          %602 = vst [vmem:[%s56 + $0x880] sm:$0xff] %v601
          %v603 = vld [vmem:[%s55 + $0x888] sm:$0xff]
          %604 = vst [vmem:[%s56 + $0x888] sm:$0xff] %v603
          %v605 = vld [vmem:[%s55 + $0x890] sm:$0xff]
          %606 = vst [vmem:[%s56 + $0x890] sm:$0xff] %v605
          %v607 = vld [vmem:[%s55 + $0x898] sm:$0xff]
          %608 = vst [vmem:[%s56 + $0x898] sm:$0xff] %v607
          %v609 = vld [vmem:[%s55 + $0x8a0] sm:$0xff]
          %610 = vst [vmem:[%s56 + $0x8a0] sm:$0xff] %v609
          %v611 = vld [vmem:[%s55 + $0x8a8] sm:$0xff]
          %612 = vst [vmem:[%s56 + $0x8a8] sm:$0xff] %v611
          %v613 = vld [vmem:[%s55 + $0x8b0] sm:$0xff]
          %614 = vst [vmem:[%s56 + $0x8b0] sm:$0xff] %v613
          %v615 = vld [vmem:[%s55 + $0x8b8] sm:$0xff]
          %616 = vst [vmem:[%s56 + $0x8b8] sm:$0xff] %v615
          %v617 = vld [vmem:[%s55 + $0x8c0] sm:$0xff]
          %618 = vst [vmem:[%s56 + $0x8c0] sm:$0xff] %v617
          %v619 = vld [vmem:[%s55 + $0x8c8] sm:$0xff]
          %620 = vst [vmem:[%s56 + $0x8c8] sm:$0xff] %v619
          %v621 = vld [vmem:[%s55 + $0x8d0] sm:$0xff]
          %622 = vst [vmem:[%s56 + $0x8d0] sm:$0xff] %v621
          %v623 = vld [vmem:[%s55 + $0x8d8] sm:$0xff]
          %624 = vst [vmem:[%s56 + $0x8d8] sm:$0xff] %v623
          %v625 = vld [vmem:[%s55 + $0x8e0] sm:$0xff]
          %626 = vst [vmem:[%s56 + $0x8e0] sm:$0xff] %v625
          %v627 = vld [vmem:[%s55 + $0x8e8] sm:$0xff]
          %628 = vst [vmem:[%s56 + $0x8e8] sm:$0xff] %v627
          %v629 = vld [vmem:[%s55 + $0x8f0] sm:$0xff]
          %630 = vst [vmem:[%s56 + $0x8f0] sm:$0xff] %v629
          %v631 = vld [vmem:[%s55 + $0x8f8] sm:$0xff]
          %632 = vst [vmem:[%s56 + $0x8f8] sm:$0xff] %v631
          %v633 = vld [vmem:[%s55 + $0x900] sm:$0xff]
          %634 = vst [vmem:[%s56 + $0x900] sm:$0xff] %v633
          %v635 = vld [vmem:[%s55 + $0x908] sm:$0xff]
          %636 = vst [vmem:[%s56 + $0x908] sm:$0xff] %v635
          %v637 = vld [vmem:[%s55 + $0x910] sm:$0xff]
          %638 = vst [vmem:[%s56 + $0x910] sm:$0xff] %v637
          %v639 = vld [vmem:[%s55 + $0x918] sm:$0xff]
          %640 = vst [vmem:[%s56 + $0x918] sm:$0xff] %v639
          %v641 = vld [vmem:[%s55 + $0x920] sm:$0xff]
          %642 = vst [vmem:[%s56 + $0x920] sm:$0xff] %v641
          %v643 = vld [vmem:[%s55 + $0x928] sm:$0xff]
          %644 = vst [vmem:[%s56 + $0x928] sm:$0xff] %v643
          %v645 = vld [vmem:[%s55 + $0x930] sm:$0xff]
          %646 = vst [vmem:[%s56 + $0x930] sm:$0xff] %v645
          %v647 = vld [vmem:[%s55 + $0x938] sm:$0xff]
          %648 = vst [vmem:[%s56 + $0x938] sm:$0xff] %v647
          %v649 = vld [vmem:[%s55 + $0x940] sm:$0xff]
          %650 = vst [vmem:[%s56 + $0x940] sm:$0xff] %v649
          %v651 = vld [vmem:[%s55 + $0x948] sm:$0xff]
          %652 = vst [vmem:[%s56 + $0x948] sm:$0xff] %v651
          %v653 = vld [vmem:[%s55 + $0x950] sm:$0xff]
          %654 = vst [vmem:[%s56 + $0x950] sm:$0xff] %v653
          %v655 = vld [vmem:[%s55 + $0x958] sm:$0xff]
          %656 = vst [vmem:[%s56 + $0x958] sm:$0xff] %v655
          %v657 = vld [vmem:[%s55 + $0x960] sm:$0xff]
          %658 = vst [vmem:[%s56 + $0x960] sm:$0xff] %v657
          %v659 = vld [vmem:[%s55 + $0x968] sm:$0xff]
          %660 = vst [vmem:[%s56 + $0x968] sm:$0xff] %v659
          %v661 = vld [vmem:[%s55 + $0x970] sm:$0xff]
          %662 = vst [vmem:[%s56 + $0x970] sm:$0xff] %v661
          %v663 = vld [vmem:[%s55 + $0x978] sm:$0xff]
          %664 = vst [vmem:[%s56 + $0x978] sm:$0xff] %v663
          %v665 = vld [vmem:[%s55 + $0x980] sm:$0xff]
          %666 = vst [vmem:[%s56 + $0x980] sm:$0xff] %v665
          %v667 = vld [vmem:[%s55 + $0x988] sm:$0xff]
          %668 = vst [vmem:[%s56 + $0x988] sm:$0xff] %v667
          %v669 = vld [vmem:[%s55 + $0x990] sm:$0xff]
          %670 = vst [vmem:[%s56 + $0x990] sm:$0xff] %v669
          %v671 = vld [vmem:[%s55 + $0x998] sm:$0xff]
          %672 = vst [vmem:[%s56 + $0x998] sm:$0xff] %v671
          %v673 = vld [vmem:[%s55 + $0x9a0] sm:$0xff]
          %674 = vst [vmem:[%s56 + $0x9a0] sm:$0xff] %v673
          %v675 = vld [vmem:[%s55 + $0x9a8] sm:$0xff]
          %676 = vst [vmem:[%s56 + $0x9a8] sm:$0xff] %v675
          %v677 = vld [vmem:[%s55 + $0x9b0] sm:$0xff]
          %678 = vst [vmem:[%s56 + $0x9b0] sm:$0xff] %v677
          %v679 = vld [vmem:[%s55 + $0x9b8] sm:$0xff]
          %680 = vst [vmem:[%s56 + $0x9b8] sm:$0xff] %v679
          %v681 = vld [vmem:[%s55 + $0x9c0] sm:$0xff]
          %682 = vst [vmem:[%s56 + $0x9c0] sm:$0xff] %v681
          %v683 = vld [vmem:[%s55 + $0x9c8] sm:$0xff]
          %684 = vst [vmem:[%s56 + $0x9c8] sm:$0xff] %v683
          %v685 = vld [vmem:[%s55 + $0x9d0] sm:$0xff]
          %686 = vst [vmem:[%s56 + $0x9d0] sm:$0xff] %v685
          %v687 = vld [vmem:[%s55 + $0x9d8] sm:$0xff]
          %688 = vst [vmem:[%s56 + $0x9d8] sm:$0xff] %v687
          %v689 = vld [vmem:[%s55 + $0x9e0] sm:$0xff]
          %690 = vst [vmem:[%s56 + $0x9e0] sm:$0xff] %v689
          %v691 = vld [vmem:[%s55 + $0x9e8] sm:$0xff]
          %692 = vst [vmem:[%s56 + $0x9e8] sm:$0xff] %v691
          %v693 = vld [vmem:[%s55 + $0x9f0] sm:$0xff]
          %694 = vst [vmem:[%s56 + $0x9f0] sm:$0xff] %v693
          %v695 = vld [vmem:[%s55 + $0x9f8] sm:$0xff]
          %696 = vst [vmem:[%s56 + $0x9f8] sm:$0xff] %v695
          %v697 = vld [vmem:[%s55 + $0xa00] sm:$0xff]
          %698 = vst [vmem:[%s56 + $0xa00] sm:$0xff] %v697
          %v699 = vld [vmem:[%s55 + $0xa08] sm:$0xff]
          %700 = vst [vmem:[%s56 + $0xa08] sm:$0xff] %v699
          %v701 = vld [vmem:[%s55 + $0xa10] sm:$0xff]
          %702 = vst [vmem:[%s56 + $0xa10] sm:$0xff] %v701
          %v703 = vld [vmem:[%s55 + $0xa18] sm:$0xff]
          %704 = vst [vmem:[%s56 + $0xa18] sm:$0xff] %v703
          %v705 = vld [vmem:[%s55 + $0xa20] sm:$0xff]
          %706 = vst [vmem:[%s56 + $0xa20] sm:$0xff] %v705
          %v707 = vld [vmem:[%s55 + $0xa28] sm:$0xff]
          %708 = vst [vmem:[%s56 + $0xa28] sm:$0xff] %v707
          %v709 = vld [vmem:[%s55 + $0xa30] sm:$0xff]
          %710 = vst [vmem:[%s56 + $0xa30] sm:$0xff] %v709
          %v711 = vld [vmem:[%s55 + $0xa38] sm:$0xff]
          %712 = vst [vmem:[%s56 + $0xa38] sm:$0xff] %v711
          %v713 = vld [vmem:[%s55 + $0xa40] sm:$0xff]
          %714 = vst [vmem:[%s56 + $0xa40] sm:$0xff] %v713
          %v715 = vld [vmem:[%s55 + $0xa48] sm:$0xff]
          %716 = vst [vmem:[%s56 + $0xa48] sm:$0xff] %v715
          %v717 = vld [vmem:[%s55 + $0xa50] sm:$0xff]
          %718 = vst [vmem:[%s56 + $0xa50] sm:$0xff] %v717
          %v719 = vld [vmem:[%s55 + $0xa58] sm:$0xff]
          %720 = vst [vmem:[%s56 + $0xa58] sm:$0xff] %v719
          %v721 = vld [vmem:[%s55 + $0xa60] sm:$0xff]
          %722 = vst [vmem:[%s56 + $0xa60] sm:$0xff] %v721
          %v723 = vld [vmem:[%s55 + $0xa68] sm:$0xff]
          %724 = vst [vmem:[%s56 + $0xa68] sm:$0xff] %v723
          %v725 = vld [vmem:[%s55 + $0xa70] sm:$0xff]
          %726 = vst [vmem:[%s56 + $0xa70] sm:$0xff] %v725
          %v727 = vld [vmem:[%s55 + $0xa78] sm:$0xff]
          %728 = vst [vmem:[%s56 + $0xa78] sm:$0xff] %v727
          %v729 = vld [vmem:[%s55 + $0xa80] sm:$0xff]
          %730 = vst [vmem:[%s56 + $0xa80] sm:$0xff] %v729
          %v731 = vld [vmem:[%s55 + $0xa88] sm:$0xff]
          %732 = vst [vmem:[%s56 + $0xa88] sm:$0xff] %v731
          %v733 = vld [vmem:[%s55 + $0xa90] sm:$0xff]
          %734 = vst [vmem:[%s56 + $0xa90] sm:$0xff] %v733
          %v735 = vld [vmem:[%s55 + $0xa98] sm:$0xff]
          %736 = vst [vmem:[%s56 + $0xa98] sm:$0xff] %v735
          %v737 = vld [vmem:[%s55 + $0xaa0] sm:$0xff]
          %738 = vst [vmem:[%s56 + $0xaa0] sm:$0xff] %v737
          %v739 = vld [vmem:[%s55 + $0xaa8] sm:$0xff]
          %740 = vst [vmem:[%s56 + $0xaa8] sm:$0xff] %v739
          %v741 = vld [vmem:[%s55 + $0xab0] sm:$0xff]
          %742 = vst [vmem:[%s56 + $0xab0] sm:$0xff] %v741
          %v743 = vld [vmem:[%s55 + $0xab8] sm:$0xff]
          %744 = vst [vmem:[%s56 + $0xab8] sm:$0xff] %v743
          %v745 = vld [vmem:[%s55 + $0xac0] sm:$0xff]
          %746 = vst [vmem:[%s56 + $0xac0] sm:$0xff] %v745
          %v747 = vld [vmem:[%s55 + $0xac8] sm:$0xff]
          %748 = vst [vmem:[%s56 + $0xac8] sm:$0xff] %v747
          %v749 = vld [vmem:[%s55 + $0xad0] sm:$0xff]
          %750 = vst [vmem:[%s56 + $0xad0] sm:$0xff] %v749
          %v751 = vld [vmem:[%s55 + $0xad8] sm:$0xff]
          %752 = vst [vmem:[%s56 + $0xad8] sm:$0xff] %v751
          %v753 = vld [vmem:[%s55 + $0xae0] sm:$0xff]
          %754 = vst [vmem:[%s56 + $0xae0] sm:$0xff] %v753
          %v755 = vld [vmem:[%s55 + $0xae8] sm:$0xff]
          %756 = vst [vmem:[%s56 + $0xae8] sm:$0xff] %v755
          %v757 = vld [vmem:[%s55 + $0xaf0] sm:$0xff]
          %758 = vst [vmem:[%s56 + $0xaf0] sm:$0xff] %v757
          %v759 = vld [vmem:[%s55 + $0xaf8] sm:$0xff]
          %760 = vst [vmem:[%s56 + $0xaf8] sm:$0xff] %v759
          %v761 = vld [vmem:[%s55 + $0xb00] sm:$0xff]
          %762 = vst [vmem:[%s56 + $0xb00] sm:$0xff] %v761
          %v763 = vld [vmem:[%s55 + $0xb08] sm:$0xff]
          %764 = vst [vmem:[%s56 + $0xb08] sm:$0xff] %v763
          %v765 = vld [vmem:[%s55 + $0xb10] sm:$0xff]
          %766 = vst [vmem:[%s56 + $0xb10] sm:$0xff] %v765
          %v767 = vld [vmem:[%s55 + $0xb18] sm:$0xff]
          %768 = vst [vmem:[%s56 + $0xb18] sm:$0xff] %v767
          %v769 = vld [vmem:[%s55 + $0xb20] sm:$0xff]
          %770 = vst [vmem:[%s56 + $0xb20] sm:$0xff] %v769
          %v771 = vld [vmem:[%s55 + $0xb28] sm:$0xff]
          %772 = vst [vmem:[%s56 + $0xb28] sm:$0xff] %v771
          %v773 = vld [vmem:[%s55 + $0xb30] sm:$0xff]
          %774 = vst [vmem:[%s56 + $0xb30] sm:$0xff] %v773
          %v775 = vld [vmem:[%s55 + $0xb38] sm:$0xff]
          %776 = vst [vmem:[%s56 + $0xb38] sm:$0xff] %v775
          %v777 = vld [vmem:[%s55 + $0xb40] sm:$0xff]
          %778 = vst [vmem:[%s56 + $0xb40] sm:$0xff] %v777
          %v779 = vld [vmem:[%s55 + $0xb48] sm:$0xff]
          %780 = vst [vmem:[%s56 + $0xb48] sm:$0xff] %v779
          %v781 = vld [vmem:[%s55 + $0xb50] sm:$0xff]
          %782 = vst [vmem:[%s56 + $0xb50] sm:$0xff] %v781
          %v783 = vld [vmem:[%s55 + $0xb58] sm:$0xff]
          %784 = vst [vmem:[%s56 + $0xb58] sm:$0xff] %v783
          %v785 = vld [vmem:[%s55 + $0xb60] sm:$0xff]
          %786 = vst [vmem:[%s56 + $0xb60] sm:$0xff] %v785
          %v787 = vld [vmem:[%s55 + $0xb68] sm:$0xff]
          %788 = vst [vmem:[%s56 + $0xb68] sm:$0xff] %v787
          %v789 = vld [vmem:[%s55 + $0xb70] sm:$0xff]
          %790 = vst [vmem:[%s56 + $0xb70] sm:$0xff] %v789
          %v791 = vld [vmem:[%s55 + $0xb78] sm:$0xff]
          %792 = vst [vmem:[%s56 + $0xb78] sm:$0xff] %v791
          %v793 = vld [vmem:[%s55 + $0xb80] sm:$0xff]
          %794 = vst [vmem:[%s56 + $0xb80] sm:$0xff] %v793
          %v795 = vld [vmem:[%s55 + $0xb88] sm:$0xff]
          %796 = vst [vmem:[%s56 + $0xb88] sm:$0xff] %v795
          %v797 = vld [vmem:[%s55 + $0xb90] sm:$0xff]
          %798 = vst [vmem:[%s56 + $0xb90] sm:$0xff] %v797
          %v799 = vld [vmem:[%s55 + $0xb98] sm:$0xff]
          %800 = vst [vmem:[%s56 + $0xb98] sm:$0xff] %v799
          %v801 = vld [vmem:[%s55 + $0xba0] sm:$0xff]
          %802 = vst [vmem:[%s56 + $0xba0] sm:$0xff] %v801
          %v803 = vld [vmem:[%s55 + $0xba8] sm:$0xff]
          %804 = vst [vmem:[%s56 + $0xba8] sm:$0xff] %v803
          %v805 = vld [vmem:[%s55 + $0xbb0] sm:$0xff]
          %806 = vst [vmem:[%s56 + $0xbb0] sm:$0xff] %v805
          %v807 = vld [vmem:[%s55 + $0xbb8] sm:$0xff]
          %808 = vst [vmem:[%s56 + $0xbb8] sm:$0xff] %v807
          %v809 = vld [vmem:[%s55 + $0xbc0] sm:$0xff]
          %810 = vst [vmem:[%s56 + $0xbc0] sm:$0xff] %v809
          %v811 = vld [vmem:[%s55 + $0xbc8] sm:$0xff]
          %812 = vst [vmem:[%s56 + $0xbc8] sm:$0xff] %v811
          %v813 = vld [vmem:[%s55 + $0xbd0] sm:$0xff]
          %814 = vst [vmem:[%s56 + $0xbd0] sm:$0xff] %v813
          %v815 = vld [vmem:[%s55 + $0xbd8] sm:$0xff]
          %816 = vst [vmem:[%s56 + $0xbd8] sm:$0xff] %v815
          %v817 = vld [vmem:[%s55 + $0xbe0] sm:$0xff]
          %818 = vst [vmem:[%s56 + $0xbe0] sm:$0xff] %v817
          %v819 = vld [vmem:[%s55 + $0xbe8] sm:$0xff]
          %820 = vst [vmem:[%s56 + $0xbe8] sm:$0xff] %v819
          %v821 = vld [vmem:[%s55 + $0xbf0] sm:$0xff]
          %822 = vst [vmem:[%s56 + $0xbf0] sm:$0xff] %v821
          %v823 = vld [vmem:[%s55 + $0xbf8] sm:$0xff]
          %824 = vst [vmem:[%s56 + $0xbf8] sm:$0xff] %v823
        $region45: #{hate_speech_bert_forward.1} parent=39 // loop_footer
          %s54 = sadd.s32 1, %s50
        $region46: #{hate_speech_bert_forward.1} parent=39 // loop_footer_branch
          %49 = sbr.rel target = $region42
        $region47: #{hate_speech_bert_forward.1} parent=39 // loop_exit
          _
      $region40: #{hate_speech_bert_forward.1} parent=24 // pred_fallthru
        _
      %p825 = pneg %p45
      // Predicated region
      $region48: #{hate_speech_bert_forward.1} parent=24 // pred_check
        _
      $region49: #{hate_speech_bert_forward.1} parent=24 // pred_check_branch
        %827 = sbr.rel (%p45) target = $region51
      $region50: #{hate_speech_bert_forward.1} parent=24 // pred_region
        %s828 = sand.u32 3072, 7
      $region51: #{hate_speech_bert_forward.1} parent=24 // pred_fallthru
        _
    $region25: #{hate_speech_bert_forward.1} parent=1 // pred_fallthru
      _
    // Predicated region
    $region26: #{hate_speech_bert_forward.1} parent=1 // pred_check
      %p29 = pneg %p25
    $region27: #{hate_speech_bert_forward.1} parent=1 // pred_check_branch
      %31 = sbr.rel (%p29) target = $region29
    $region28: #{hate_speech_bert_forward.1} parent=1 // pred_region
      %s32 = sshll.u32 1, 3072
      %s33 = ssub.s32 %s32, 1
      loop: start=0, step=1, limit=1
      $region30: #{hate_speech_bert_forward.1} parent=28 // loop_pre_header
        _
      $region31: #{hate_speech_bert_forward.1} parent=28 // loop_header
        %s35 = sphi 0, %s39
        %p36 = scmp.ge.s32.totalorder %s35, 1
        %s40 = sphi %s5, %s5
        %s41 = sphi [#allocation2], [#allocation2]
      $region32: #{hate_speech_bert_forward.1} parent=28 // loop_header_branch
        %38 = sbr.rel (%p36) target = $region36
      $region33: #{hate_speech_bert_forward.1} parent=28 // loop_body
        %v42 = vld [vmem:[%s40] sm:%s33]
        %43 = vst [vmem:[%s41] sm:%s33] %v42
      $region34: #{hate_speech_bert_forward.1} parent=28 // loop_footer
        %s39 = sadd.s32 1, %s35
      $region35: #{hate_speech_bert_forward.1} parent=28 // loop_footer_branch
        %34 = sbr.rel target = $region31
      $region36: #{hate_speech_bert_forward.1} parent=28 // loop_exit
        _
    $region29: #{hate_speech_bert_forward.1} parent=1 // pred_fallthru
      _
    // Predicated region
    $region52: #{hate_speech_bert_forward.1} parent=1 // pred_check
      _
    $region53: #{hate_speech_bert_forward.1} parent=1 // pred_check_branch
      %831 = sbr.rel (0) target = $region55
    $region54: #{hate_speech_bert_forward.1} parent=1 // pred_region
      %832 = vsyncadd [#allocation4], 49152
    $region55: #{hate_speech_bert_forward.1} parent=1 // pred_fallthru
      _
    %s833 = scalar_lea.sflag [#allocation4], 1
    %p835 = scmp.lt.u32.totalorder 512, 8
    %p836 = pneg %p835
    // Predicated region
    $region56: #{hate_speech_bert_forward.1} parent=1 // pred_check
      _
    $region57: #{hate_speech_bert_forward.1} parent=1 // pred_check_branch
      %838 = sbr.rel (%p835) target = $region59
    $region58: #{hate_speech_bert_forward.1} parent=1 // pred_region
      %s854 = sand.u32 512, 7
      %p855 = scmp.eq.s32.totalorder %s854, 0
      // Predicated region
      $region71: #{hate_speech_bert_forward.1} parent=58 // pred_check
        %p856 = pneg %p855
      $region72: #{hate_speech_bert_forward.1} parent=58 // pred_check_branch
        %858 = sbr.rel (%p856) target = $region74
      $region73: #{hate_speech_bert_forward.1} parent=58 // pred_region
        loop: start=0, step=1, limit=1
        $region75: #{hate_speech_bert_forward.1} parent=73 // loop_pre_header
          _
        $region76: #{hate_speech_bert_forward.1} parent=73 // loop_header
          %s860 = sphi 0, %s864
          %p861 = scmp.ge.s32.totalorder %s860, 1
          %s865 = sphi %s6, %s6
          %s866 = sphi [#allocation3], [#allocation3]
        $region77: #{hate_speech_bert_forward.1} parent=73 // loop_header_branch
          %863 = sbr.rel (%p861) target = $region81
        $region78: #{hate_speech_bert_forward.1} parent=73 // loop_body
          %v867 = vld [vmem:[%s865] sm:$0xff]
          %868 = vst [vmem:[%s866] sm:$0xff] %v867
          %v869 = vld [vmem:[%s865 + $0x8] sm:$0xff]
          %870 = vst [vmem:[%s866 + $0x8] sm:$0xff] %v869
          %v871 = vld [vmem:[%s865 + $0x10] sm:$0xff]
          %872 = vst [vmem:[%s866 + $0x10] sm:$0xff] %v871
          %v873 = vld [vmem:[%s865 + $0x18] sm:$0xff]
          %874 = vst [vmem:[%s866 + $0x18] sm:$0xff] %v873
          %v875 = vld [vmem:[%s865 + $0x20] sm:$0xff]
          %876 = vst [vmem:[%s866 + $0x20] sm:$0xff] %v875
          %v877 = vld [vmem:[%s865 + $0x28] sm:$0xff]
          %878 = vst [vmem:[%s866 + $0x28] sm:$0xff] %v877
          %v879 = vld [vmem:[%s865 + $0x30] sm:$0xff]
          %880 = vst [vmem:[%s866 + $0x30] sm:$0xff] %v879
          %v881 = vld [vmem:[%s865 + $0x38] sm:$0xff]
          %882 = vst [vmem:[%s866 + $0x38] sm:$0xff] %v881
          %v883 = vld [vmem:[%s865 + $0x40] sm:$0xff]
          %884 = vst [vmem:[%s866 + $0x40] sm:$0xff] %v883
          %v885 = vld [vmem:[%s865 + $0x48] sm:$0xff]
          %886 = vst [vmem:[%s866 + $0x48] sm:$0xff] %v885
          %v887 = vld [vmem:[%s865 + $0x50] sm:$0xff]
          %888 = vst [vmem:[%s866 + $0x50] sm:$0xff] %v887
          %v889 = vld [vmem:[%s865 + $0x58] sm:$0xff]
          %890 = vst [vmem:[%s866 + $0x58] sm:$0xff] %v889
          %v891 = vld [vmem:[%s865 + $0x60] sm:$0xff]
          %892 = vst [vmem:[%s866 + $0x60] sm:$0xff] %v891
          %v893 = vld [vmem:[%s865 + $0x68] sm:$0xff]
          %894 = vst [vmem:[%s866 + $0x68] sm:$0xff] %v893
          %v895 = vld [vmem:[%s865 + $0x70] sm:$0xff]
          %896 = vst [vmem:[%s866 + $0x70] sm:$0xff] %v895
          %v897 = vld [vmem:[%s865 + $0x78] sm:$0xff]
          %898 = vst [vmem:[%s866 + $0x78] sm:$0xff] %v897
          %v899 = vld [vmem:[%s865 + $0x80] sm:$0xff]
          %900 = vst [vmem:[%s866 + $0x80] sm:$0xff] %v899
          %v901 = vld [vmem:[%s865 + $0x88] sm:$0xff]
          %902 = vst [vmem:[%s866 + $0x88] sm:$0xff] %v901
          %v903 = vld [vmem:[%s865 + $0x90] sm:$0xff]
          %904 = vst [vmem:[%s866 + $0x90] sm:$0xff] %v903
          %v905 = vld [vmem:[%s865 + $0x98] sm:$0xff]
          %906 = vst [vmem:[%s866 + $0x98] sm:$0xff] %v905
          %v907 = vld [vmem:[%s865 + $0xa0] sm:$0xff]
          %908 = vst [vmem:[%s866 + $0xa0] sm:$0xff] %v907
          %v909 = vld [vmem:[%s865 + $0xa8] sm:$0xff]
          %910 = vst [vmem:[%s866 + $0xa8] sm:$0xff] %v909
          %v911 = vld [vmem:[%s865 + $0xb0] sm:$0xff]
          %912 = vst [vmem:[%s866 + $0xb0] sm:$0xff] %v911
          %v913 = vld [vmem:[%s865 + $0xb8] sm:$0xff]
          %914 = vst [vmem:[%s866 + $0xb8] sm:$0xff] %v913
          %v915 = vld [vmem:[%s865 + $0xc0] sm:$0xff]
          %916 = vst [vmem:[%s866 + $0xc0] sm:$0xff] %v915
          %v917 = vld [vmem:[%s865 + $0xc8] sm:$0xff]
          %918 = vst [vmem:[%s866 + $0xc8] sm:$0xff] %v917
          %v919 = vld [vmem:[%s865 + $0xd0] sm:$0xff]
          %920 = vst [vmem:[%s866 + $0xd0] sm:$0xff] %v919
          %v921 = vld [vmem:[%s865 + $0xd8] sm:$0xff]
          %922 = vst [vmem:[%s866 + $0xd8] sm:$0xff] %v921
          %v923 = vld [vmem:[%s865 + $0xe0] sm:$0xff]
          %924 = vst [vmem:[%s866 + $0xe0] sm:$0xff] %v923
          %v925 = vld [vmem:[%s865 + $0xe8] sm:$0xff]
          %926 = vst [vmem:[%s866 + $0xe8] sm:$0xff] %v925
          %v927 = vld [vmem:[%s865 + $0xf0] sm:$0xff]
          %928 = vst [vmem:[%s866 + $0xf0] sm:$0xff] %v927
          %v929 = vld [vmem:[%s865 + $0xf8] sm:$0xff]
          %930 = vst [vmem:[%s866 + $0xf8] sm:$0xff] %v929
          %v931 = vld [vmem:[%s865 + $0x100] sm:$0xff]
          %932 = vst [vmem:[%s866 + $0x100] sm:$0xff] %v931
          %v933 = vld [vmem:[%s865 + $0x108] sm:$0xff]
          %934 = vst [vmem:[%s866 + $0x108] sm:$0xff] %v933
          %v935 = vld [vmem:[%s865 + $0x110] sm:$0xff]
          %936 = vst [vmem:[%s866 + $0x110] sm:$0xff] %v935
          %v937 = vld [vmem:[%s865 + $0x118] sm:$0xff]
          %938 = vst [vmem:[%s866 + $0x118] sm:$0xff] %v937
          %v939 = vld [vmem:[%s865 + $0x120] sm:$0xff]
          %940 = vst [vmem:[%s866 + $0x120] sm:$0xff] %v939
          %v941 = vld [vmem:[%s865 + $0x128] sm:$0xff]
          %942 = vst [vmem:[%s866 + $0x128] sm:$0xff] %v941
          %v943 = vld [vmem:[%s865 + $0x130] sm:$0xff]
          %944 = vst [vmem:[%s866 + $0x130] sm:$0xff] %v943
          %v945 = vld [vmem:[%s865 + $0x138] sm:$0xff]
          %946 = vst [vmem:[%s866 + $0x138] sm:$0xff] %v945
          %v947 = vld [vmem:[%s865 + $0x140] sm:$0xff]
          %948 = vst [vmem:[%s866 + $0x140] sm:$0xff] %v947
          %v949 = vld [vmem:[%s865 + $0x148] sm:$0xff]
          %950 = vst [vmem:[%s866 + $0x148] sm:$0xff] %v949
          %v951 = vld [vmem:[%s865 + $0x150] sm:$0xff]
          %952 = vst [vmem:[%s866 + $0x150] sm:$0xff] %v951
          %v953 = vld [vmem:[%s865 + $0x158] sm:$0xff]
          %954 = vst [vmem:[%s866 + $0x158] sm:$0xff] %v953
          %v955 = vld [vmem:[%s865 + $0x160] sm:$0xff]
          %956 = vst [vmem:[%s866 + $0x160] sm:$0xff] %v955
          %v957 = vld [vmem:[%s865 + $0x168] sm:$0xff]
          %958 = vst [vmem:[%s866 + $0x168] sm:$0xff] %v957
          %v959 = vld [vmem:[%s865 + $0x170] sm:$0xff]
          %960 = vst [vmem:[%s866 + $0x170] sm:$0xff] %v959
          %v961 = vld [vmem:[%s865 + $0x178] sm:$0xff]
          %962 = vst [vmem:[%s866 + $0x178] sm:$0xff] %v961
          %v963 = vld [vmem:[%s865 + $0x180] sm:$0xff]
          %964 = vst [vmem:[%s866 + $0x180] sm:$0xff] %v963
          %v965 = vld [vmem:[%s865 + $0x188] sm:$0xff]
          %966 = vst [vmem:[%s866 + $0x188] sm:$0xff] %v965
          %v967 = vld [vmem:[%s865 + $0x190] sm:$0xff]
          %968 = vst [vmem:[%s866 + $0x190] sm:$0xff] %v967
          %v969 = vld [vmem:[%s865 + $0x198] sm:$0xff]
          %970 = vst [vmem:[%s866 + $0x198] sm:$0xff] %v969
          %v971 = vld [vmem:[%s865 + $0x1a0] sm:$0xff]
          %972 = vst [vmem:[%s866 + $0x1a0] sm:$0xff] %v971
          %v973 = vld [vmem:[%s865 + $0x1a8] sm:$0xff]
          %974 = vst [vmem:[%s866 + $0x1a8] sm:$0xff] %v973
          %v975 = vld [vmem:[%s865 + $0x1b0] sm:$0xff]
          %976 = vst [vmem:[%s866 + $0x1b0] sm:$0xff] %v975
          %v977 = vld [vmem:[%s865 + $0x1b8] sm:$0xff]
          %978 = vst [vmem:[%s866 + $0x1b8] sm:$0xff] %v977
          %v979 = vld [vmem:[%s865 + $0x1c0] sm:$0xff]
          %980 = vst [vmem:[%s866 + $0x1c0] sm:$0xff] %v979
          %v981 = vld [vmem:[%s865 + $0x1c8] sm:$0xff]
          %982 = vst [vmem:[%s866 + $0x1c8] sm:$0xff] %v981
          %v983 = vld [vmem:[%s865 + $0x1d0] sm:$0xff]
          %984 = vst [vmem:[%s866 + $0x1d0] sm:$0xff] %v983
          %v985 = vld [vmem:[%s865 + $0x1d8] sm:$0xff]
          %986 = vst [vmem:[%s866 + $0x1d8] sm:$0xff] %v985
          %v987 = vld [vmem:[%s865 + $0x1e0] sm:$0xff]
          %988 = vst [vmem:[%s866 + $0x1e0] sm:$0xff] %v987
          %v989 = vld [vmem:[%s865 + $0x1e8] sm:$0xff]
          %990 = vst [vmem:[%s866 + $0x1e8] sm:$0xff] %v989
          %v991 = vld [vmem:[%s865 + $0x1f0] sm:$0xff]
          %992 = vst [vmem:[%s866 + $0x1f0] sm:$0xff] %v991
          %v993 = vld [vmem:[%s865 + $0x1f8] sm:$0xff]
          %994 = vst [vmem:[%s866 + $0x1f8] sm:$0xff] %v993
        $region79: #{hate_speech_bert_forward.1} parent=73 // loop_footer
          %s864 = sadd.s32 1, %s860
        $region80: #{hate_speech_bert_forward.1} parent=73 // loop_footer_branch
          %859 = sbr.rel target = $region76
        $region81: #{hate_speech_bert_forward.1} parent=73 // loop_exit
          _
      $region74: #{hate_speech_bert_forward.1} parent=58 // pred_fallthru
        _
      %p995 = pneg %p855
      // Predicated region
      $region82: #{hate_speech_bert_forward.1} parent=58 // pred_check
        _
      $region83: #{hate_speech_bert_forward.1} parent=58 // pred_check_branch
        %997 = sbr.rel (%p855) target = $region85
      $region84: #{hate_speech_bert_forward.1} parent=58 // pred_region
        %s998 = sand.u32 512, 7
      $region85: #{hate_speech_bert_forward.1} parent=58 // pred_fallthru
        _
    $region59: #{hate_speech_bert_forward.1} parent=1 // pred_fallthru
      _
    // Predicated region
    $region60: #{hate_speech_bert_forward.1} parent=1 // pred_check
      %p839 = pneg %p835
    $region61: #{hate_speech_bert_forward.1} parent=1 // pred_check_branch
      %841 = sbr.rel (%p839) target = $region63
    $region62: #{hate_speech_bert_forward.1} parent=1 // pred_region
      %s842 = sshll.u32 1, 512
      %s843 = ssub.s32 %s842, 1
      loop: start=0, step=1, limit=1
      $region64: #{hate_speech_bert_forward.1} parent=62 // loop_pre_header
        _
      $region65: #{hate_speech_bert_forward.1} parent=62 // loop_header
        %s845 = sphi 0, %s849
        %p846 = scmp.ge.s32.totalorder %s845, 1
        %s850 = sphi %s6, %s6
        %s851 = sphi [#allocation3], [#allocation3]
      $region66: #{hate_speech_bert_forward.1} parent=62 // loop_header_branch
        %848 = sbr.rel (%p846) target = $region70
      $region67: #{hate_speech_bert_forward.1} parent=62 // loop_body
        %v852 = vld [vmem:[%s850] sm:%s843]
        %853 = vst [vmem:[%s851] sm:%s843] %v852
      $region68: #{hate_speech_bert_forward.1} parent=62 // loop_footer
        %s849 = sadd.s32 1, %s845
      $region69: #{hate_speech_bert_forward.1} parent=62 // loop_footer_branch
        %844 = sbr.rel target = $region65
      $region70: #{hate_speech_bert_forward.1} parent=62 // loop_exit
        _
    $region63: #{hate_speech_bert_forward.1} parent=1 // pred_fallthru
      _
    // Predicated region
    $region86: #{hate_speech_bert_forward.1} parent=1 // pred_check
      _
    $region87: #{hate_speech_bert_forward.1} parent=1 // pred_check_branch
      %1001 = sbr.rel (0) target = $region89
    $region88: #{hate_speech_bert_forward.1} parent=1 // pred_region
      %1002 = vsyncadd %s833, 8192
    $region89: #{hate_speech_bert_forward.1} parent=1 // pred_fallthru
      _
    %v1003 = vld [vmem:[%s0] sm:$0x3f]
    %v1004 = vld [vmem:[%s1] sm:$0xff]
    %v1005 = vld [vmem:[%s1 + $0x8] sm:$0xff]
    %v1006 = vld [vmem:[%s1 + $0x10] sm:$0xff]
    %v1007 = vld [vmem:[%s1 + $0x18] sm:$0xff]
    %v1008 = vld [vmem:[%s1 + $0x20] sm:$0xff]
    %v1009 = vld [vmem:[%s1 + $0x28] sm:$0xff]
    %v1010 = vld [vmem:[%s1 + $0x30] sm:$0xff]
    %v1011 = vld [vmem:[%s1 + $0x38] sm:$0xff]
    %v1012 = vld [vmem:[%s1 + $0x40] sm:$0xff]
    %v1013 = vld [vmem:[%s1 + $0x48] sm:$0xff]
    %v1014 = vld [vmem:[%s1 + $0x50] sm:$0xff]
    %v1015 = vld [vmem:[%s1 + $0x58] sm:$0xff]
    %v1016 = vld [vmem:[%s1 + $0x60] sm:$0xff]
    %v1017 = vld [vmem:[%s1 + $0x68] sm:$0xff]
    %v1018 = vld [vmem:[%s1 + $0x70] sm:$0xff]
    %v1019 = vld [vmem:[%s1 + $0x78] sm:$0xff]
    %v1020 = vld [vmem:[%s1 + $0x80] sm:$0xff]
    %v1021 = vld [vmem:[%s1 + $0x88] sm:$0xff]
    %v1022 = vld [vmem:[%s1 + $0x90] sm:$0xff]
    %v1023 = vld [vmem:[%s1 + $0x98] sm:$0xff]
    %v1024 = vld [vmem:[%s1 + $0xa0] sm:$0xff]
    %v1025 = vld [vmem:[%s1 + $0xa8] sm:$0xff]
    %v1026 = vld [vmem:[%s1 + $0xb0] sm:$0xff]
    %v1027 = vld [vmem:[%s1 + $0xb8] sm:$0xff]
    %v1028 = vld [vmem:[%s1 + $0xc0] sm:$0xff]
    %v1029 = vld [vmem:[%s1 + $0xc8] sm:$0xff]
    %v1030 = vld [vmem:[%s1 + $0xd0] sm:$0xff]
    %v1031 = vld [vmem:[%s1 + $0xd8] sm:$0xff]
    %v1032 = vld [vmem:[%s1 + $0xe0] sm:$0xff]
    %v1033 = vld [vmem:[%s1 + $0xe8] sm:$0xff]
    %v1034 = vld [vmem:[%s1 + $0xf0] sm:$0xff]
    %v1035 = vld [vmem:[%s1 + $0xf8] sm:$0xff]
    %v1036 = vld [vmem:[%s1 + $0x100] sm:$0xff]
    %v1037 = vld [vmem:[%s1 + $0x108] sm:$0xff]
    %v1038 = vld [vmem:[%s1 + $0x110] sm:$0xff]
    %v1039 = vld [vmem:[%s1 + $0x118] sm:$0xff]
    %v1040 = vld [vmem:[%s1 + $0x120] sm:$0xff]
    %v1041 = vld [vmem:[%s1 + $0x128] sm:$0xff]
    %v1042 = vld [vmem:[%s1 + $0x130] sm:$0xff]
    %v1043 = vld [vmem:[%s1 + $0x138] sm:$0xff]
    %v1044 = vld [vmem:[%s1 + $0x140] sm:$0xff]
    %v1045 = vld [vmem:[%s1 + $0x148] sm:$0xff]
    %v1046 = vld [vmem:[%s1 + $0x150] sm:$0xff]
    %v1047 = vld [vmem:[%s1 + $0x158] sm:$0xff]
    %v1048 = vld [vmem:[%s1 + $0x160] sm:$0xff]
    %v1049 = vld [vmem:[%s1 + $0x168] sm:$0xff]
    %v1050 = vld [vmem:[%s1 + $0x170] sm:$0xff]
    %v1051 = vld [vmem:[%s1 + $0x178] sm:$0xff]
    %v1052 = vld [vmem:[%s1 + $0x180] sm:$0xff]
    %v1053 = vld [vmem:[%s1 + $0x188] sm:$0xff]
    %v1054 = vld [vmem:[%s1 + $0x190] sm:$0xff]
    %v1055 = vld [vmem:[%s1 + $0x198] sm:$0xff]
    %v1056 = vld [vmem:[%s1 + $0x1a0] sm:$0xff]
    %v1057 = vld [vmem:[%s1 + $0x1a8] sm:$0xff]
    %v1058 = vld [vmem:[%s1 + $0x1b0] sm:$0xff]
    %v1059 = vld [vmem:[%s1 + $0x1b8] sm:$0xff]
    %v1060 = vld [vmem:[%s1 + $0x1c0] sm:$0xff]
    %v1061 = vld [vmem:[%s1 + $0x1c8] sm:$0xff]
    %v1062 = vld [vmem:[%s1 + $0x1d0] sm:$0xff]
    %v1063 = vld [vmem:[%s1 + $0x1d8] sm:$0xff]
    %v1064 = vld [vmem:[%s1 + $0x1e0] sm:$0xff]
    %v1065 = vld [vmem:[%s1 + $0x1e8] sm:$0xff]
    %v1066 = vld [vmem:[%s1 + $0x1f0] sm:$0xff]
    %v1067 = vld [vmem:[%s1 + $0x1f8] sm:$0xff]
    %v1068 = vld [vmem:[%s1 + $0x200] sm:$0xff]
    %v1069 = vld [vmem:[%s1 + $0x208] sm:$0xff]
    %v1070 = vld [vmem:[%s1 + $0x210] sm:$0xff]
    %v1071 = vld [vmem:[%s1 + $0x218] sm:$0xff]
    %v1072 = vld [vmem:[%s1 + $0x220] sm:$0xff]
    %v1073 = vld [vmem:[%s1 + $0x228] sm:$0xff]
    %v1074 = vld [vmem:[%s1 + $0x230] sm:$0xff]
    %v1075 = vld [vmem:[%s1 + $0x238] sm:$0xff]
    %v1076 = vld [vmem:[%s1 + $0x240] sm:$0xff]
    %v1077 = vld [vmem:[%s1 + $0x248] sm:$0xff]
    %v1078 = vld [vmem:[%s1 + $0x250] sm:$0xff]
    %v1079 = vld [vmem:[%s1 + $0x258] sm:$0xff]
    %v1080 = vld [vmem:[%s1 + $0x260] sm:$0xff]
    %v1081 = vld [vmem:[%s1 + $0x268] sm:$0xff]
    %v1082 = vld [vmem:[%s1 + $0x270] sm:$0xff]
    %v1083 = vld [vmem:[%s1 + $0x278] sm:$0xff]
    %v1084 = vld [vmem:[%s1 + $0x280] sm:$0xff]
    %v1085 = vld [vmem:[%s1 + $0x288] sm:$0xff]
    %v1086 = vld [vmem:[%s1 + $0x290] sm:$0xff]
    %v1087 = vld [vmem:[%s1 + $0x298] sm:$0xff]
    %v1088 = vld [vmem:[%s1 + $0x2a0] sm:$0xff]
    %v1089 = vld [vmem:[%s1 + $0x2a8] sm:$0xff]
    %v1090 = vld [vmem:[%s1 + $0x2b0] sm:$0xff]
    %v1091 = vld [vmem:[%s1 + $0x2b8] sm:$0xff]
    %v1092 = vld [vmem:[%s1 + $0x2c0] sm:$0xff]
    %v1093 = vld [vmem:[%s1 + $0x2c8] sm:$0xff]
    %v1094 = vld [vmem:[%s1 + $0x2d0] sm:$0xff]
    %v1095 = vld [vmem:[%s1 + $0x2d8] sm:$0xff]
    %v1096 = vld [vmem:[%s1 + $0x2e0] sm:$0xff]
    %v1097 = vld [vmem:[%s1 + $0x2e8] sm:$0xff]
    %v1098 = vld [vmem:[%s1 + $0x2f0] sm:$0xff]
    %v1099 = vld [vmem:[%s1 + $0x2f8] sm:$0xff]
    %v1100 = vld [vmem:[%s1 + $0x300] sm:$0xff]
    %v1101 = vld [vmem:[%s1 + $0x308] sm:$0xff]
    %v1102 = vld [vmem:[%s1 + $0x310] sm:$0xff]
    %v1103 = vld [vmem:[%s1 + $0x318] sm:$0xff]
    %v1104 = vld [vmem:[%s1 + $0x320] sm:$0xff]
    %v1105 = vld [vmem:[%s1 + $0x328] sm:$0xff]
    %v1106 = vld [vmem:[%s1 + $0x330] sm:$0xff]
    %v1107 = vld [vmem:[%s1 + $0x338] sm:$0xff]
    %v1108 = vld [vmem:[%s1 + $0x340] sm:$0xff]
    %v1109 = vld [vmem:[%s1 + $0x348] sm:$0xff]
    %v1110 = vld [vmem:[%s1 + $0x350] sm:$0xff]
    %v1111 = vld [vmem:[%s1 + $0x358] sm:$0xff]
    %v1112 = vld [vmem:[%s1 + $0x360] sm:$0xff]
    %v1113 = vld [vmem:[%s1 + $0x368] sm:$0xff]
    %v1114 = vld [vmem:[%s1 + $0x370] sm:$0xff]
    %v1115 = vld [vmem:[%s1 + $0x378] sm:$0xff]
    %v1116 = vld [vmem:[%s1 + $0x380] sm:$0xff]
    %v1117 = vld [vmem:[%s1 + $0x388] sm:$0xff]
    %v1118 = vld [vmem:[%s1 + $0x390] sm:$0xff]
    %v1119 = vld [vmem:[%s1 + $0x398] sm:$0xff]
    %v1120 = vld [vmem:[%s1 + $0x3a0] sm:$0xff]
    %v1121 = vld [vmem:[%s1 + $0x3a8] sm:$0xff]
    %v1122 = vld [vmem:[%s1 + $0x3b0] sm:$0xff]
    %v1123 = vld [vmem:[%s1 + $0x3b8] sm:$0xff]
    %v1124 = vld [vmem:[%s1 + $0x3c0] sm:$0xff]
    %v1125 = vld [vmem:[%s1 + $0x3c8] sm:$0xff]
    %v1126 = vld [vmem:[%s1 + $0x3d0] sm:$0xff]
    %v1127 = vld [vmem:[%s1 + $0x3d8] sm:$0xff]
    %v1128 = vld [vmem:[%s1 + $0x3e0] sm:$0xff]
    %v1129 = vld [vmem:[%s1 + $0x3e8] sm:$0xff]
    %v1130 = vld [vmem:[%s1 + $0x3f0] sm:$0xff]
    %v1131 = vld [vmem:[%s1 + $0x3f8] sm:$0xff]
    %v1132 = vld [vmem:[%s1 + $0x400] sm:$0xff]
    %v1133 = vld [vmem:[%s1 + $0x408] sm:$0xff]
    %v1134 = vld [vmem:[%s1 + $0x410] sm:$0xff]
    %v1135 = vld [vmem:[%s1 + $0x418] sm:$0xff]
    %v1136 = vld [vmem:[%s1 + $0x420] sm:$0xff]
    %v1137 = vld [vmem:[%s1 + $0x428] sm:$0xff]
    %v1138 = vld [vmem:[%s1 + $0x430] sm:$0xff]
    %v1139 = vld [vmem:[%s1 + $0x438] sm:$0xff]
    %v1140 = vld [vmem:[%s1 + $0x440] sm:$0xff]
    %v1141 = vld [vmem:[%s1 + $0x448] sm:$0xff]
    %v1142 = vld [vmem:[%s1 + $0x450] sm:$0xff]
    %v1143 = vld [vmem:[%s1 + $0x458] sm:$0xff]
    %v1144 = vld [vmem:[%s1 + $0x460] sm:$0xff]
    %v1145 = vld [vmem:[%s1 + $0x468] sm:$0xff]
    %v1146 = vld [vmem:[%s1 + $0x470] sm:$0xff]
    %v1147 = vld [vmem:[%s1 + $0x478] sm:$0xff]
    %v1148 = vld [vmem:[%s1 + $0x480] sm:$0xff]
    %v1149 = vld [vmem:[%s1 + $0x488] sm:$0xff]
    %v1150 = vld [vmem:[%s1 + $0x490] sm:$0xff]
    %v1151 = vld [vmem:[%s1 + $0x498] sm:$0xff]
    %v1152 = vld [vmem:[%s1 + $0x4a0] sm:$0xff]
    %v1153 = vld [vmem:[%s1 + $0x4a8] sm:$0xff]
    %v1154 = vld [vmem:[%s1 + $0x4b0] sm:$0xff]
    %v1155 = vld [vmem:[%s1 + $0x4b8] sm:$0xff]
    %v1156 = vld [vmem:[%s1 + $0x4c0] sm:$0xff]
    %v1157 = vld [vmem:[%s1 + $0x4c8] sm:$0xff]
    %v1158 = vld [vmem:[%s1 + $0x4d0] sm:$0xff]
    %v1159 = vld [vmem:[%s1 + $0x4d8] sm:$0xff]
    %v1160 = vld [vmem:[%s1 + $0x4e0] sm:$0xff]
    %v1161 = vld [vmem:[%s1 + $0x4e8] sm:$0xff]
    %v1162 = vld [vmem:[%s1 + $0x4f0] sm:$0xff]
    %v1163 = vld [vmem:[%s1 + $0x4f8] sm:$0xff]
    %v1164 = vld [vmem:[%s1 + $0x500] sm:$0xff]
    %v1165 = vld [vmem:[%s1 + $0x508] sm:$0xff]
    %v1166 = vld [vmem:[%s1 + $0x510] sm:$0xff]
    %v1167 = vld [vmem:[%s1 + $0x518] sm:$0xff]
    %v1168 = vld [vmem:[%s1 + $0x520] sm:$0xff]
    %v1169 = vld [vmem:[%s1 + $0x528] sm:$0xff]
    %v1170 = vld [vmem:[%s1 + $0x530] sm:$0xff]
    %v1171 = vld [vmem:[%s1 + $0x538] sm:$0xff]
    %v1172 = vld [vmem:[%s1 + $0x540] sm:$0xff]
    %v1173 = vld [vmem:[%s1 + $0x548] sm:$0xff]
    %v1174 = vld [vmem:[%s1 + $0x550] sm:$0xff]
    %v1175 = vld [vmem:[%s1 + $0x558] sm:$0xff]
    %v1176 = vld [vmem:[%s1 + $0x560] sm:$0xff]
    %v1177 = vld [vmem:[%s1 + $0x568] sm:$0xff]
    %v1178 = vld [vmem:[%s1 + $0x570] sm:$0xff]
    %v1179 = vld [vmem:[%s1 + $0x578] sm:$0xff]
    %v1180 = vld [vmem:[%s1 + $0x580] sm:$0xff]
    %v1181 = vld [vmem:[%s1 + $0x588] sm:$0xff]
    %v1182 = vld [vmem:[%s1 + $0x590] sm:$0xff]
    %v1183 = vld [vmem:[%s1 + $0x598] sm:$0xff]
    %v1184 = vld [vmem:[%s1 + $0x5a0] sm:$0xff]
    %v1185 = vld [vmem:[%s1 + $0x5a8] sm:$0xff]
    %v1186 = vld [vmem:[%s1 + $0x5b0] sm:$0xff]
    %v1187 = vld [vmem:[%s1 + $0x5b8] sm:$0xff]
    %v1188 = vld [vmem:[%s1 + $0x5c0] sm:$0xff]
    %v1189 = vld [vmem:[%s1 + $0x5c8] sm:$0xff]
    %v1190 = vld [vmem:[%s1 + $0x5d0] sm:$0xff]
    %v1191 = vld [vmem:[%s1 + $0x5d8] sm:$0xff]
    %v1192 = vld [vmem:[%s1 + $0x5e0] sm:$0xff]
    %v1193 = vld [vmem:[%s1 + $0x5e8] sm:$0xff]
    %v1194 = vld [vmem:[%s1 + $0x5f0] sm:$0xff]
    %v1195 = vld [vmem:[%s1 + $0x5f8] sm:$0xff]
    %v1196 = vld [vmem:[%s1 + $0x600] sm:$0xff]
    %v1197 = vld [vmem:[%s1 + $0x608] sm:$0xff]
    %v1198 = vld [vmem:[%s1 + $0x610] sm:$0xff]
    %v1199 = vld [vmem:[%s1 + $0x618] sm:$0xff]
    %v1200 = vld [vmem:[%s1 + $0x620] sm:$0xff]
    %v1201 = vld [vmem:[%s1 + $0x628] sm:$0xff]
    %v1202 = vld [vmem:[%s1 + $0x630] sm:$0xff]
    %v1203 = vld [vmem:[%s1 + $0x638] sm:$0xff]
    %v1204 = vld [vmem:[%s1 + $0x640] sm:$0xff]
    %v1205 = vld [vmem:[%s1 + $0x648] sm:$0xff]
    %v1206 = vld [vmem:[%s1 + $0x650] sm:$0xff]
    %v1207 = vld [vmem:[%s1 + $0x658] sm:$0xff]
    %v1208 = vld [vmem:[%s1 + $0x660] sm:$0xff]
    %v1209 = vld [vmem:[%s1 + $0x668] sm:$0xff]
    %v1210 = vld [vmem:[%s1 + $0x670] sm:$0xff]
    %v1211 = vld [vmem:[%s1 + $0x678] sm:$0xff]
    %v1212 = vld [vmem:[%s1 + $0x680] sm:$0xff]
    %v1213 = vld [vmem:[%s1 + $0x688] sm:$0xff]
    %v1214 = vld [vmem:[%s1 + $0x690] sm:$0xff]
    %v1215 = vld [vmem:[%s1 + $0x698] sm:$0xff]
    %v1216 = vld [vmem:[%s1 + $0x6a0] sm:$0xff]
    %v1217 = vld [vmem:[%s1 + $0x6a8] sm:$0xff]
    %v1218 = vld [vmem:[%s1 + $0x6b0] sm:$0xff]
    %v1219 = vld [vmem:[%s1 + $0x6b8] sm:$0xff]
    %v1220 = vld [vmem:[%s1 + $0x6c0] sm:$0xff]
    %v1221 = vld [vmem:[%s1 + $0x6c8] sm:$0xff]
    %v1222 = vld [vmem:[%s1 + $0x6d0] sm:$0xff]
    %v1223 = vld [vmem:[%s1 + $0x6d8] sm:$0xff]
    %v1224 = vld [vmem:[%s1 + $0x6e0] sm:$0xff]
    %v1225 = vld [vmem:[%s1 + $0x6e8] sm:$0xff]
    %v1226 = vld [vmem:[%s1 + $0x6f0] sm:$0xff]
    %v1227 = vld [vmem:[%s1 + $0x6f8] sm:$0xff]
    %v1228 = vld [vmem:[%s1 + $0x700] sm:$0xff]
    %v1229 = vld [vmem:[%s1 + $0x708] sm:$0xff]
    %v1230 = vld [vmem:[%s1 + $0x710] sm:$0xff]
    %v1231 = vld [vmem:[%s1 + $0x718] sm:$0xff]
    %v1232 = vld [vmem:[%s1 + $0x720] sm:$0xff]
    %v1233 = vld [vmem:[%s1 + $0x728] sm:$0xff]
    %v1234 = vld [vmem:[%s1 + $0x730] sm:$0xff]
    %v1235 = vld [vmem:[%s1 + $0x738] sm:$0xff]
    %v1236 = vld [vmem:[%s1 + $0x740] sm:$0xff]
    %v1237 = vld [vmem:[%s1 + $0x748] sm:$0xff]
    %v1238 = vld [vmem:[%s1 + $0x750] sm:$0xff]
    %v1239 = vld [vmem:[%s1 + $0x758] sm:$0xff]
    %v1240 = vld [vmem:[%s1 + $0x760] sm:$0xff]
    %v1241 = vld [vmem:[%s1 + $0x768] sm:$0xff]
    %v1242 = vld [vmem:[%s1 + $0x770] sm:$0xff]
    %v1243 = vld [vmem:[%s1 + $0x778] sm:$0xff]
    %v1244 = vld [vmem:[%s1 + $0x780] sm:$0xff]
    %v1245 = vld [vmem:[%s1 + $0x788] sm:$0xff]
    %v1246 = vld [vmem:[%s1 + $0x790] sm:$0xff]
    %v1247 = vld [vmem:[%s1 + $0x798] sm:$0xff]
    %v1248 = vld [vmem:[%s1 + $0x7a0] sm:$0xff]
    %v1249 = vld [vmem:[%s1 + $0x7a8] sm:$0xff]
    %v1250 = vld [vmem:[%s1 + $0x7b0] sm:$0xff]
    %v1251 = vld [vmem:[%s1 + $0x7b8] sm:$0xff]
    %v1252 = vld [vmem:[%s1 + $0x7c0] sm:$0xff]
    %v1253 = vld [vmem:[%s1 + $0x7c8] sm:$0xff]
    %v1254 = vld [vmem:[%s1 + $0x7d0] sm:$0xff]
    %v1255 = vld [vmem:[%s1 + $0x7d8] sm:$0xff]
    %v1256 = vld [vmem:[%s1 + $0x7e0] sm:$0xff]
    %v1257 = vld [vmem:[%s1 + $0x7e8] sm:$0xff]
    %v1258 = vld [vmem:[%s1 + $0x7f0] sm:$0xff]
    %v1259 = vld [vmem:[%s1 + $0x7f8] sm:$0xff]
    %v1260 = vld [vmem:[%s1 + $0x800] sm:$0xff]
    %v1261 = vld [vmem:[%s1 + $0x808] sm:$0xff]
    %v1262 = vld [vmem:[%s1 + $0x810] sm:$0xff]
    %v1263 = vld [vmem:[%s1 + $0x818] sm:$0xff]
    %v1264 = vld [vmem:[%s1 + $0x820] sm:$0xff]
    %v1265 = vld [vmem:[%s1 + $0x828] sm:$0xff]
    %v1266 = vld [vmem:[%s1 + $0x830] sm:$0xff]
    %v1267 = vld [vmem:[%s1 + $0x838] sm:$0xff]
    %v1268 = vld [vmem:[%s1 + $0x840] sm:$0xff]
    %v1269 = vld [vmem:[%s1 + $0x848] sm:$0xff]
    %v1270 = vld [vmem:[%s1 + $0x850] sm:$0xff]
    %v1271 = vld [vmem:[%s1 + $0x858] sm:$0xff]
    %v1272 = vld [vmem:[%s1 + $0x860] sm:$0xff]
    %v1273 = vld [vmem:[%s1 + $0x868] sm:$0xff]
    %v1274 = vld [vmem:[%s1 + $0x870] sm:$0xff]
    %v1275 = vld [vmem:[%s1 + $0x878] sm:$0xff]
    %v1276 = vld [vmem:[%s1 + $0x880] sm:$0xff]
    %v1277 = vld [vmem:[%s1 + $0x888] sm:$0xff]
    %v1278 = vld [vmem:[%s1 + $0x890] sm:$0xff]
    %v1279 = vld [vmem:[%s1 + $0x898] sm:$0xff]
    %v1280 = vld [vmem:[%s1 + $0x8a0] sm:$0xff]
    %v1281 = vld [vmem:[%s1 + $0x8a8] sm:$0xff]
    %v1282 = vld [vmem:[%s1 + $0x8b0] sm:$0xff]
    %v1283 = vld [vmem:[%s1 + $0x8b8] sm:$0xff]
    %v1284 = vld [vmem:[%s1 + $0x8c0] sm:$0xff]
    %v1285 = vld [vmem:[%s1 + $0x8c8] sm:$0xff]
    %v1286 = vld [vmem:[%s1 + $0x8d0] sm:$0xff]
    %v1287 = vld [vmem:[%s1 + $0x8d8] sm:$0xff]
    %v1288 = vld [vmem:[%s1 + $0x8e0] sm:$0xff]
    %v1289 = vld [vmem:[%s1 + $0x8e8] sm:$0xff]
    %v1290 = vld [vmem:[%s1 + $0x8f0] sm:$0xff]
    %v1291 = vld [vmem:[%s1 + $0x8f8] sm:$0xff]
    %v1292 = vld [vmem:[%s2] sm:$0x3f]
    %v1294 = vlaneseq
    %v1295 = vshrl.u32 %v1294, 7
    %v1296 = vsub.s32 0, %v1295
    %v1297 = vrot.slane %v1292, %v1296
    %v1298 = vlaneseq
    %v1299 = vshrl.u32 %v1298, 7
    %v1300 = vsub.s32 1, %v1299
    %v1301 = vrot.slane %v1292, %v1300
    %v1302 = vlaneseq
    %v1303 = vshrl.u32 %v1302, 7
    %v1304 = vsub.s32 2, %v1303
    %v1305 = vrot.slane %v1292, %v1304
    %v1306 = vlaneseq
    %v1307 = vshrl.u32 %v1306, 7
    %v1308 = vsub.s32 3, %v1307
    %v1309 = vrot.slane %v1292, %v1308
    %v1310 = vlaneseq
    %v1311 = vshrl.u32 %v1310, 7
    %v1312 = vsub.s32 4, %v1311
    %v1313 = vrot.slane %v1292, %v1312
    %v1314 = vlaneseq
    %v1315 = vshrl.u32 %v1314, 7
    %v1316 = vsub.s32 5, %v1315
    %v1317 = vrot.slane %v1292, %v1316
    %v1325 = vcombine.high %v1003, %v1003
    %v1327 = vunpack.c.l.s4 1966171168
    %v1328 = vunpack.c.0.s8 %v1327
    %v1329 = vlaneseq
    %v1330 = vshrl.u32 %v1329, 7
    %v1331 = vsub.s32 %v1328, %v1330
    %v1332 = vrot.slane %v1003, %v1331
    %v1334 = vunpack.c.l.s4 1966171168
    %v1335 = vunpack.c.0.s8 %v1334
    %v1336 = vlaneseq
    %v1337 = vshrl.u32 %v1336, 7
    %v1338 = vsub.s32 %v1335, %v1337
    %v1339 = vrot.slane %v1325, %v1338
    %v1340 = vcombine.high %v1332, %v1332
    %v1341 = vcombine.high %v1339, %v1339
    %v1343 = vunpack.c.l.s4 1966171168
    %v1344 = vunpack.c.0.s8 %v1343
    %v1345 = vlaneseq
    %v1346 = vshrl.u32 %v1345, 7
    %v1347 = vsub.s32 %v1344, %v1346
    %v1348 = vrot.slane %v1332, %v1347
    %v1350 = vunpack.c.l.s4 1966171168
    %v1351 = vunpack.c.0.s8 %v1350
    %v1352 = vlaneseq
    %v1353 = vshrl.u32 %v1352, 7
    %v1354 = vsub.s32 %v1351, %v1353
    %v1355 = vrot.slane %v1339, %v1354
    %v1357 = vunpack.c.l.s4 1966171168
    %v1358 = vunpack.c.0.s8 %v1357
    %v1359 = vlaneseq
    %v1360 = vshrl.u32 %v1359, 7
    %v1361 = vsub.s32 %v1358, %v1360
    %v1362 = vrot.slane %v1340, %v1361
    %v1364 = vunpack.c.l.s4 1966171168
    %v1365 = vunpack.c.0.s8 %v1364
    %v1366 = vlaneseq
    %v1367 = vshrl.u32 %v1366, 7
    %v1368 = vsub.s32 %v1365, %v1367
    %v1369 = vrot.slane %v1341, %v1368
    %v1370 = vcombine.high %v1348, %v1348
    %v1371 = vcombine.high %v1362, %v1362
    %v1666 = vunpack.c.l.b16 %v1004
    %v1667 = vunpack.c.h.b16 %v1004
    %v1668 = vunpack.c.l.b16 %v1005
    %v1669 = vunpack.c.h.b16 %v1005
    %v1670 = vunpack.c.l.b16 %v1006
    %v1671 = vunpack.c.h.b16 %v1006
    %v1672 = vunpack.c.l.b16 %v1007
    %v1673 = vunpack.c.h.b16 %v1007
    %v1674 = vunpack.c.l.b16 %v1008
    %v1675 = vunpack.c.h.b16 %v1008
    %v1676 = vunpack.c.l.b16 %v1009
    %v1677 = vunpack.c.h.b16 %v1009
    %v1678 = vunpack.c.l.b16 %v1010
    %v1679 = vunpack.c.h.b16 %v1010
    %v1680 = vunpack.c.l.b16 %v1011
    %v1681 = vunpack.c.h.b16 %v1011
    %v1682 = vunpack.c.l.b16 %v1012
    %v1683 = vunpack.c.h.b16 %v1012
    %v1684 = vunpack.c.l.b16 %v1013
    %v1685 = vunpack.c.h.b16 %v1013
    %v1686 = vunpack.c.l.b16 %v1014
    %v1687 = vunpack.c.h.b16 %v1014
    %v1688 = vunpack.c.l.b16 %v1015
    %v1689 = vunpack.c.h.b16 %v1015
    %v1690 = vunpack.c.l.b16 %v1016
    %v1691 = vunpack.c.h.b16 %v1016
    %v1692 = vunpack.c.l.b16 %v1017
    %v1693 = vunpack.c.h.b16 %v1017
    %v1694 = vunpack.c.l.b16 %v1018
    %v1695 = vunpack.c.h.b16 %v1018
    %v1696 = vunpack.c.l.b16 %v1019
    %v1697 = vunpack.c.h.b16 %v1019
    %v1698 = vunpack.c.l.b16 %v1020
    %v1699 = vunpack.c.h.b16 %v1020
    %v1700 = vunpack.c.l.b16 %v1021
    %v1701 = vunpack.c.h.b16 %v1021
    %v1702 = vunpack.c.l.b16 %v1022
    %v1703 = vunpack.c.h.b16 %v1022
    %v1704 = vunpack.c.l.b16 %v1023
    %v1705 = vunpack.c.h.b16 %v1023
    %v1706 = vunpack.c.l.b16 %v1024
    %v1707 = vunpack.c.h.b16 %v1024
    %v1708 = vunpack.c.l.b16 %v1025
    %v1709 = vunpack.c.h.b16 %v1025
    %v1710 = vunpack.c.l.b16 %v1026
    %v1711 = vunpack.c.h.b16 %v1026
    %v1712 = vunpack.c.l.b16 %v1027
    %v1713 = vunpack.c.h.b16 %v1027
    %v1714 = vunpack.c.l.b16 %v1028
    %v1715 = vunpack.c.h.b16 %v1028
    %v1716 = vunpack.c.l.b16 %v1029
    %v1717 = vunpack.c.h.b16 %v1029
    %v1718 = vunpack.c.l.b16 %v1030
    %v1719 = vunpack.c.h.b16 %v1030
    %v1720 = vunpack.c.l.b16 %v1031
    %v1721 = vunpack.c.h.b16 %v1031
    %v1722 = vunpack.c.l.b16 %v1032
    %v1723 = vunpack.c.h.b16 %v1032
    %v1724 = vunpack.c.l.b16 %v1033
    %v1725 = vunpack.c.h.b16 %v1033
    %v1726 = vunpack.c.l.b16 %v1034
    %v1727 = vunpack.c.h.b16 %v1034
    %v1728 = vunpack.c.l.b16 %v1035
    %v1729 = vunpack.c.h.b16 %v1035
    %v1730 = vunpack.c.l.b16 %v1036
    %v1731 = vunpack.c.h.b16 %v1036
    %v1732 = vunpack.c.l.b16 %v1037
    %v1733 = vunpack.c.h.b16 %v1037
    %v1734 = vunpack.c.l.b16 %v1038
    %v1735 = vunpack.c.h.b16 %v1038
    %v1736 = vunpack.c.l.b16 %v1039
    %v1737 = vunpack.c.h.b16 %v1039
    %v1738 = vunpack.c.l.b16 %v1040
    %v1739 = vunpack.c.h.b16 %v1040
    %v1740 = vunpack.c.l.b16 %v1041
    %v1741 = vunpack.c.h.b16 %v1041
    %v1742 = vunpack.c.l.b16 %v1042
    %v1743 = vunpack.c.h.b16 %v1042
    %v1744 = vunpack.c.l.b16 %v1043
    %v1745 = vunpack.c.h.b16 %v1043
    %v1746 = vunpack.c.l.b16 %v1044
    %v1747 = vunpack.c.h.b16 %v1044
    %v1748 = vunpack.c.l.b16 %v1045
    %v1749 = vunpack.c.h.b16 %v1045
    %v1750 = vunpack.c.l.b16 %v1046
    %v1751 = vunpack.c.h.b16 %v1046
    %v1752 = vunpack.c.l.b16 %v1047
    %v1753 = vunpack.c.h.b16 %v1047
    %v1754 = vunpack.c.l.b16 %v1048
    %v1755 = vunpack.c.h.b16 %v1048
    %v1756 = vunpack.c.l.b16 %v1049
    %v1757 = vunpack.c.h.b16 %v1049
    %v1758 = vunpack.c.l.b16 %v1050
    %v1759 = vunpack.c.h.b16 %v1050
    %v1760 = vunpack.c.l.b16 %v1051
    %v1761 = vunpack.c.h.b16 %v1051
    %v1762 = vunpack.c.l.b16 %v1052
    %v1763 = vunpack.c.h.b16 %v1052
    %v1764 = vunpack.c.l.b16 %v1053
    %v1765 = vunpack.c.h.b16 %v1053
    %v1766 = vunpack.c.l.b16 %v1054
    %v1767 = vunpack.c.h.b16 %v1054
    %v1768 = vunpack.c.l.b16 %v1055
    %v1769 = vunpack.c.h.b16 %v1055
    %v1770 = vunpack.c.l.b16 %v1056
    %v1771 = vunpack.c.h.b16 %v1056
    %v1772 = vunpack.c.l.b16 %v1057
    %v1773 = vunpack.c.h.b16 %v1057
    %v1774 = vunpack.c.l.b16 %v1058
    %v1775 = vunpack.c.h.b16 %v1058
    %v1776 = vunpack.c.l.b16 %v1059
    %v1777 = vunpack.c.h.b16 %v1059
    %v1778 = vunpack.c.l.b16 %v1060
    %v1779 = vunpack.c.h.b16 %v1060
    %v1780 = vunpack.c.l.b16 %v1061
    %v1781 = vunpack.c.h.b16 %v1061
    %v1782 = vunpack.c.l.b16 %v1062
    %v1783 = vunpack.c.h.b16 %v1062
    %v1784 = vunpack.c.l.b16 %v1063
    %v1785 = vunpack.c.h.b16 %v1063
    %v1786 = vunpack.c.l.b16 %v1064
    %v1787 = vunpack.c.h.b16 %v1064
    %v1788 = vunpack.c.l.b16 %v1065
    %v1789 = vunpack.c.h.b16 %v1065
    %v1790 = vunpack.c.l.b16 %v1066
    %v1791 = vunpack.c.h.b16 %v1066
    %v1792 = vunpack.c.l.b16 %v1067
    %v1793 = vunpack.c.h.b16 %v1067
    %v1794 = vunpack.c.l.b16 %v1068
    %v1795 = vunpack.c.h.b16 %v1068
    %v1796 = vunpack.c.l.b16 %v1069
    %v1797 = vunpack.c.h.b16 %v1069
    %v1798 = vunpack.c.l.b16 %v1070
    %v1799 = vunpack.c.h.b16 %v1070
    %v1800 = vunpack.c.l.b16 %v1071
    %v1801 = vunpack.c.h.b16 %v1071
    %v1802 = vunpack.c.l.b16 %v1072
    %v1803 = vunpack.c.h.b16 %v1072
    %v1804 = vunpack.c.l.b16 %v1073
    %v1805 = vunpack.c.h.b16 %v1073
    %v1806 = vunpack.c.l.b16 %v1074
    %v1807 = vunpack.c.h.b16 %v1074
    %v1808 = vunpack.c.l.b16 %v1075
    %v1809 = vunpack.c.h.b16 %v1075
    %v1810 = vunpack.c.l.b16 %v1076
    %v1811 = vunpack.c.h.b16 %v1076
    %v1812 = vunpack.c.l.b16 %v1077
    %v1813 = vunpack.c.h.b16 %v1077
    %v1814 = vunpack.c.l.b16 %v1078
    %v1815 = vunpack.c.h.b16 %v1078
    %v1816 = vunpack.c.l.b16 %v1079
    %v1817 = vunpack.c.h.b16 %v1079
    %v1818 = vunpack.c.l.b16 %v1080
    %v1819 = vunpack.c.h.b16 %v1080
    %v1820 = vunpack.c.l.b16 %v1081
    %v1821 = vunpack.c.h.b16 %v1081
    %v1822 = vunpack.c.l.b16 %v1082
    %v1823 = vunpack.c.h.b16 %v1082
    %v1824 = vunpack.c.l.b16 %v1083
    %v1825 = vunpack.c.h.b16 %v1083
    %v1826 = vunpack.c.l.b16 %v1084
    %v1827 = vunpack.c.h.b16 %v1084
    %v1828 = vunpack.c.l.b16 %v1085
    %v1829 = vunpack.c.h.b16 %v1085
    %v1830 = vunpack.c.l.b16 %v1086
    %v1831 = vunpack.c.h.b16 %v1086
    %v1832 = vunpack.c.l.b16 %v1087
    %v1833 = vunpack.c.h.b16 %v1087
    %v1834 = vunpack.c.l.b16 %v1088
    %v1835 = vunpack.c.h.b16 %v1088
    %v1836 = vunpack.c.l.b16 %v1089
    %v1837 = vunpack.c.h.b16 %v1089
    %v1838 = vunpack.c.l.b16 %v1090
    %v1839 = vunpack.c.h.b16 %v1090
    %v1840 = vunpack.c.l.b16 %v1091
    %v1841 = vunpack.c.h.b16 %v1091
    %v1842 = vunpack.c.l.b16 %v1092
    %v1843 = vunpack.c.h.b16 %v1092
    %v1844 = vunpack.c.l.b16 %v1093
    %v1845 = vunpack.c.h.b16 %v1093
    %v1846 = vunpack.c.l.b16 %v1094
    %v1847 = vunpack.c.h.b16 %v1094
    %v1848 = vunpack.c.l.b16 %v1095
    %v1849 = vunpack.c.h.b16 %v1095
    %v1850 = vunpack.c.l.b16 %v1096
    %v1851 = vunpack.c.h.b16 %v1096
    %v1852 = vunpack.c.l.b16 %v1097
    %v1853 = vunpack.c.h.b16 %v1097
    %v1854 = vunpack.c.l.b16 %v1098
    %v1855 = vunpack.c.h.b16 %v1098
    %v1856 = vunpack.c.l.b16 %v1099
    %v1857 = vunpack.c.h.b16 %v1099
    %v1858 = vunpack.c.l.b16 %v1100
    %v1859 = vunpack.c.h.b16 %v1100
    %v1860 = vunpack.c.l.b16 %v1101
    %v1861 = vunpack.c.h.b16 %v1101
    %v1862 = vunpack.c.l.b16 %v1102
    %v1863 = vunpack.c.h.b16 %v1102
    %v1864 = vunpack.c.l.b16 %v1103
    %v1865 = vunpack.c.h.b16 %v1103
    %v1866 = vunpack.c.l.b16 %v1104
    %v1867 = vunpack.c.h.b16 %v1104
    %v1868 = vunpack.c.l.b16 %v1105
    %v1869 = vunpack.c.h.b16 %v1105
    %v1870 = vunpack.c.l.b16 %v1106
    %v1871 = vunpack.c.h.b16 %v1106
    %v1872 = vunpack.c.l.b16 %v1107
    %v1873 = vunpack.c.h.b16 %v1107
    %v1874 = vunpack.c.l.b16 %v1108
    %v1875 = vunpack.c.h.b16 %v1108
    %v1876 = vunpack.c.l.b16 %v1109
    %v1877 = vunpack.c.h.b16 %v1109
    %v1878 = vunpack.c.l.b16 %v1110
    %v1879 = vunpack.c.h.b16 %v1110
    %v1880 = vunpack.c.l.b16 %v1111
    %v1881 = vunpack.c.h.b16 %v1111
    %v1882 = vunpack.c.l.b16 %v1112
    %v1883 = vunpack.c.h.b16 %v1112
    %v1884 = vunpack.c.l.b16 %v1113
    %v1885 = vunpack.c.h.b16 %v1113
    %v1886 = vunpack.c.l.b16 %v1114
    %v1887 = vunpack.c.h.b16 %v1114
    %v1888 = vunpack.c.l.b16 %v1115
    %v1889 = vunpack.c.h.b16 %v1115
    %v1890 = vunpack.c.l.b16 %v1116
    %v1891 = vunpack.c.h.b16 %v1116
    %v1892 = vunpack.c.l.b16 %v1117
    %v1893 = vunpack.c.h.b16 %v1117
    %v1894 = vunpack.c.l.b16 %v1118
    %v1895 = vunpack.c.h.b16 %v1118
    %v1896 = vunpack.c.l.b16 %v1119
    %v1897 = vunpack.c.h.b16 %v1119
    %v1898 = vunpack.c.l.b16 %v1120
    %v1899 = vunpack.c.h.b16 %v1120
    %v1900 = vunpack.c.l.b16 %v1121
    %v1901 = vunpack.c.h.b16 %v1121
    %v1902 = vunpack.c.l.b16 %v1122
    %v1903 = vunpack.c.h.b16 %v1122
    %v1904 = vunpack.c.l.b16 %v1123
    %v1905 = vunpack.c.h.b16 %v1123
    %v1906 = vunpack.c.l.b16 %v1124
    %v1907 = vunpack.c.h.b16 %v1124
    %v1908 = vunpack.c.l.b16 %v1125
    %v1909 = vunpack.c.h.b16 %v1125
    %v1910 = vunpack.c.l.b16 %v1126
    %v1911 = vunpack.c.h.b16 %v1126
    %v1912 = vunpack.c.l.b16 %v1127
    %v1913 = vunpack.c.h.b16 %v1127
    %v1914 = vunpack.c.l.b16 %v1128
    %v1915 = vunpack.c.h.b16 %v1128
    %v1916 = vunpack.c.l.b16 %v1129
    %v1917 = vunpack.c.h.b16 %v1129
    %v1918 = vunpack.c.l.b16 %v1130
    %v1919 = vunpack.c.h.b16 %v1130
    %v1920 = vunpack.c.l.b16 %v1131
    %v1921 = vunpack.c.h.b16 %v1131
    %v1922 = vunpack.c.l.b16 %v1132
    %v1923 = vunpack.c.h.b16 %v1132
    %v1924 = vunpack.c.l.b16 %v1133
    %v1925 = vunpack.c.h.b16 %v1133
    %v1926 = vunpack.c.l.b16 %v1134
    %v1927 = vunpack.c.h.b16 %v1134
    %v1928 = vunpack.c.l.b16 %v1135
    %v1929 = vunpack.c.h.b16 %v1135
    %v1930 = vunpack.c.l.b16 %v1136
    %v1931 = vunpack.c.h.b16 %v1136
    %v1932 = vunpack.c.l.b16 %v1137
    %v1933 = vunpack.c.h.b16 %v1137
    %v1934 = vunpack.c.l.b16 %v1138
    %v1935 = vunpack.c.h.b16 %v1138
    %v1936 = vunpack.c.l.b16 %v1139
    %v1937 = vunpack.c.h.b16 %v1139
    %v1938 = vunpack.c.l.b16 %v1140
    %v1939 = vunpack.c.h.b16 %v1140
    %v1940 = vunpack.c.l.b16 %v1141
    %v1941 = vunpack.c.h.b16 %v1141
    %v1942 = vunpack.c.l.b16 %v1142
    %v1943 = vunpack.c.h.b16 %v1142
    %v1944 = vunpack.c.l.b16 %v1143
    %v1945 = vunpack.c.h.b16 %v1143
    %v1946 = vunpack.c.l.b16 %v1144
    %v1947 = vunpack.c.h.b16 %v1144
    %v1948 = vunpack.c.l.b16 %v1145
    %v1949 = vunpack.c.h.b16 %v1145
    %v1950 = vunpack.c.l.b16 %v1146
    %v1951 = vunpack.c.h.b16 %v1146
    %v1952 = vunpack.c.l.b16 %v1147
    %v1953 = vunpack.c.h.b16 %v1147
    %v1954 = vunpack.c.l.b16 %v1148
    %v1955 = vunpack.c.h.b16 %v1148
    %v1956 = vunpack.c.l.b16 %v1149
    %v1957 = vunpack.c.h.b16 %v1149
    %v1958 = vunpack.c.l.b16 %v1150
    %v1959 = vunpack.c.h.b16 %v1150
    %v1960 = vunpack.c.l.b16 %v1151
    %v1961 = vunpack.c.h.b16 %v1151
    %v1962 = vunpack.c.l.b16 %v1152
    %v1963 = vunpack.c.h.b16 %v1152
    %v1964 = vunpack.c.l.b16 %v1153
    %v1965 = vunpack.c.h.b16 %v1153
    %v1966 = vunpack.c.l.b16 %v1154
    %v1967 = vunpack.c.h.b16 %v1154
    %v1968 = vunpack.c.l.b16 %v1155
    %v1969 = vunpack.c.h.b16 %v1155
    %v1970 = vunpack.c.l.b16 %v1156
    %v1971 = vunpack.c.h.b16 %v1156
    %v1972 = vunpack.c.l.b16 %v1157
    %v1973 = vunpack.c.h.b16 %v1157
    %v1974 = vunpack.c.l.b16 %v1158
    %v1975 = vunpack.c.h.b16 %v1158
    %v1976 = vunpack.c.l.b16 %v1159
    %v1977 = vunpack.c.h.b16 %v1159
    %v1978 = vunpack.c.l.b16 %v1160
    %v1979 = vunpack.c.h.b16 %v1160
    %v1980 = vunpack.c.l.b16 %v1161
    %v1981 = vunpack.c.h.b16 %v1161
    %v1982 = vunpack.c.l.b16 %v1162
    %v1983 = vunpack.c.h.b16 %v1162
    %v1984 = vunpack.c.l.b16 %v1163
    %v1985 = vunpack.c.h.b16 %v1163
    %v1986 = vunpack.c.l.b16 %v1164
    %v1987 = vunpack.c.h.b16 %v1164
    %v1988 = vunpack.c.l.b16 %v1165
    %v1989 = vunpack.c.h.b16 %v1165
    %v1990 = vunpack.c.l.b16 %v1166
    %v1991 = vunpack.c.h.b16 %v1166
    %v1992 = vunpack.c.l.b16 %v1167
    %v1993 = vunpack.c.h.b16 %v1167
    %v1994 = vunpack.c.l.b16 %v1168
    %v1995 = vunpack.c.h.b16 %v1168
    %v1996 = vunpack.c.l.b16 %v1169
    %v1997 = vunpack.c.h.b16 %v1169
    %v1998 = vunpack.c.l.b16 %v1170
    %v1999 = vunpack.c.h.b16 %v1170
    %v2000 = vunpack.c.l.b16 %v1171
    %v2001 = vunpack.c.h.b16 %v1171
    %v2002 = vunpack.c.l.b16 %v1172
    %v2003 = vunpack.c.h.b16 %v1172
    %v2004 = vunpack.c.l.b16 %v1173
    %v2005 = vunpack.c.h.b16 %v1173
    %v2006 = vunpack.c.l.b16 %v1174
    %v2007 = vunpack.c.h.b16 %v1174
    %v2008 = vunpack.c.l.b16 %v1175
    %v2009 = vunpack.c.h.b16 %v1175
    %v2010 = vunpack.c.l.b16 %v1176
    %v2011 = vunpack.c.h.b16 %v1176
    %v2012 = vunpack.c.l.b16 %v1177
    %v2013 = vunpack.c.h.b16 %v1177
    %v2014 = vunpack.c.l.b16 %v1178
    %v2015 = vunpack.c.h.b16 %v1178
    %v2016 = vunpack.c.l.b16 %v1179
    %v2017 = vunpack.c.h.b16 %v1179
    %v2018 = vunpack.c.l.b16 %v1180
    %v2019 = vunpack.c.h.b16 %v1180
    %v2020 = vunpack.c.l.b16 %v1181
    %v2021 = vunpack.c.h.b16 %v1181
    %v2022 = vunpack.c.l.b16 %v1182
    %v2023 = vunpack.c.h.b16 %v1182
    %v2024 = vunpack.c.l.b16 %v1183
    %v2025 = vunpack.c.h.b16 %v1183
    %v2026 = vunpack.c.l.b16 %v1184
    %v2027 = vunpack.c.h.b16 %v1184
    %v2028 = vunpack.c.l.b16 %v1185
    %v2029 = vunpack.c.h.b16 %v1185
    %v2030 = vunpack.c.l.b16 %v1186
    %v2031 = vunpack.c.h.b16 %v1186
    %v2032 = vunpack.c.l.b16 %v1187
    %v2033 = vunpack.c.h.b16 %v1187
    %v2034 = vunpack.c.l.b16 %v1188
    %v2035 = vunpack.c.h.b16 %v1188
    %v2036 = vunpack.c.l.b16 %v1189
    %v2037 = vunpack.c.h.b16 %v1189
    %v2038 = vunpack.c.l.b16 %v1190
    %v2039 = vunpack.c.h.b16 %v1190
    %v2040 = vunpack.c.l.b16 %v1191
    %v2041 = vunpack.c.h.b16 %v1191
    %v2042 = vunpack.c.l.b16 %v1192
    %v2043 = vunpack.c.h.b16 %v1192
    %v2044 = vunpack.c.l.b16 %v1193
    %v2045 = vunpack.c.h.b16 %v1193
    %v2046 = vunpack.c.l.b16 %v1194
    %v2047 = vunpack.c.h.b16 %v1194
    %v2048 = vunpack.c.l.b16 %v1195
    %v2049 = vunpack.c.h.b16 %v1195
    %v2050 = vunpack.c.l.b16 %v1196
    %v2051 = vunpack.c.h.b16 %v1196
    %v2052 = vunpack.c.l.b16 %v1197
    %v2053 = vunpack.c.h.b16 %v1197
    %v2054 = vunpack.c.l.b16 %v1198
    %v2055 = vunpack.c.h.b16 %v1198
    %v2056 = vunpack.c.l.b16 %v1199
    %v2057 = vunpack.c.h.b16 %v1199
    %v2058 = vunpack.c.l.b16 %v1200
    %v2059 = vunpack.c.h.b16 %v1200
    %v2060 = vunpack.c.l.b16 %v1201
    %v2061 = vunpack.c.h.b16 %v1201
    %v2062 = vunpack.c.l.b16 %v1202
    %v2063 = vunpack.c.h.b16 %v1202
    %v2064 = vunpack.c.l.b16 %v1203
    %v2065 = vunpack.c.h.b16 %v1203
    %v2066 = vunpack.c.l.b16 %v1204
    %v2067 = vunpack.c.h.b16 %v1204
    %v2068 = vunpack.c.l.b16 %v1205
    %v2069 = vunpack.c.h.b16 %v1205
    %v2070 = vunpack.c.l.b16 %v1206
    %v2071 = vunpack.c.h.b16 %v1206
    %v2072 = vunpack.c.l.b16 %v1207
    %v2073 = vunpack.c.h.b16 %v1207
    %v2074 = vunpack.c.l.b16 %v1208
    %v2075 = vunpack.c.h.b16 %v1208
    %v2076 = vunpack.c.l.b16 %v1209
    %v2077 = vunpack.c.h.b16 %v1209
    %v2078 = vunpack.c.l.b16 %v1210
    %v2079 = vunpack.c.h.b16 %v1210
    %v2080 = vunpack.c.l.b16 %v1211
    %v2081 = vunpack.c.h.b16 %v1211
    %v2082 = vunpack.c.l.b16 %v1212
    %v2083 = vunpack.c.h.b16 %v1212
    %v2084 = vunpack.c.l.b16 %v1213
    %v2085 = vunpack.c.h.b16 %v1213
    %v2086 = vunpack.c.l.b16 %v1214
    %v2087 = vunpack.c.h.b16 %v1214
    %v2088 = vunpack.c.l.b16 %v1215
    %v2089 = vunpack.c.h.b16 %v1215
    %v2090 = vunpack.c.l.b16 %v1216
    %v2091 = vunpack.c.h.b16 %v1216
    %v2092 = vunpack.c.l.b16 %v1217
    %v2093 = vunpack.c.h.b16 %v1217
    %v2094 = vunpack.c.l.b16 %v1218
    %v2095 = vunpack.c.h.b16 %v1218
    %v2096 = vunpack.c.l.b16 %v1219
    %v2097 = vunpack.c.h.b16 %v1219
    %v2098 = vunpack.c.l.b16 %v1220
    %v2099 = vunpack.c.h.b16 %v1220
    %v2100 = vunpack.c.l.b16 %v1221
    %v2101 = vunpack.c.h.b16 %v1221
    %v2102 = vunpack.c.l.b16 %v1222
    %v2103 = vunpack.c.h.b16 %v1222
    %v2104 = vunpack.c.l.b16 %v1223
    %v2105 = vunpack.c.h.b16 %v1223
    %v2106 = vunpack.c.l.b16 %v1224
    %v2107 = vunpack.c.h.b16 %v1224
    %v2108 = vunpack.c.l.b16 %v1225
    %v2109 = vunpack.c.h.b16 %v1225
    %v2110 = vunpack.c.l.b16 %v1226
    %v2111 = vunpack.c.h.b16 %v1226
    %v2112 = vunpack.c.l.b16 %v1227
    %v2113 = vunpack.c.h.b16 %v1227
    %v2114 = vunpack.c.l.b16 %v1228
    %v2115 = vunpack.c.h.b16 %v1228
    %v2116 = vunpack.c.l.b16 %v1229
    %v2117 = vunpack.c.h.b16 %v1229
    %v2118 = vunpack.c.l.b16 %v1230
    %v2119 = vunpack.c.h.b16 %v1230
    %v2120 = vunpack.c.l.b16 %v1231
    %v2121 = vunpack.c.h.b16 %v1231
    %v2122 = vunpack.c.l.b16 %v1232
    %v2123 = vunpack.c.h.b16 %v1232
    %v2124 = vunpack.c.l.b16 %v1233
    %v2125 = vunpack.c.h.b16 %v1233
    %v2126 = vunpack.c.l.b16 %v1234
    %v2127 = vunpack.c.h.b16 %v1234
    %v2128 = vunpack.c.l.b16 %v1235
    %v2129 = vunpack.c.h.b16 %v1235
    %v2130 = vunpack.c.l.b16 %v1236
    %v2131 = vunpack.c.h.b16 %v1236
    %v2132 = vunpack.c.l.b16 %v1237
    %v2133 = vunpack.c.h.b16 %v1237
    %v2134 = vunpack.c.l.b16 %v1238
    %v2135 = vunpack.c.h.b16 %v1238
    %v2136 = vunpack.c.l.b16 %v1239
    %v2137 = vunpack.c.h.b16 %v1239
    %v2138 = vunpack.c.l.b16 %v1240
    %v2139 = vunpack.c.h.b16 %v1240
    %v2140 = vunpack.c.l.b16 %v1241
    %v2141 = vunpack.c.h.b16 %v1241
    %v2142 = vunpack.c.l.b16 %v1242
    %v2143 = vunpack.c.h.b16 %v1242
    %v2144 = vunpack.c.l.b16 %v1243
    %v2145 = vunpack.c.h.b16 %v1243
    %v2146 = vunpack.c.l.b16 %v1244
    %v2147 = vunpack.c.h.b16 %v1244
    %v2148 = vunpack.c.l.b16 %v1245
    %v2149 = vunpack.c.h.b16 %v1245
    %v2150 = vunpack.c.l.b16 %v1246
    %v2151 = vunpack.c.h.b16 %v1246
    %v2152 = vunpack.c.l.b16 %v1247
    %v2153 = vunpack.c.h.b16 %v1247
    %v2154 = vunpack.c.l.b16 %v1248
    %v2155 = vunpack.c.h.b16 %v1248
    %v2156 = vunpack.c.l.b16 %v1249
    %v2157 = vunpack.c.h.b16 %v1249
    %v2158 = vunpack.c.l.b16 %v1250
    %v2159 = vunpack.c.h.b16 %v1250
    %v2160 = vunpack.c.l.b16 %v1251
    %v2161 = vunpack.c.h.b16 %v1251
    %v2162 = vunpack.c.l.b16 %v1252
    %v2163 = vunpack.c.h.b16 %v1252
    %v2164 = vunpack.c.l.b16 %v1253
    %v2165 = vunpack.c.h.b16 %v1253
    %v2166 = vunpack.c.l.b16 %v1254
    %v2167 = vunpack.c.h.b16 %v1254
    %v2168 = vunpack.c.l.b16 %v1255
    %v2169 = vunpack.c.h.b16 %v1255
    %v2170 = vunpack.c.l.b16 %v1256
    %v2171 = vunpack.c.h.b16 %v1256
    %v2172 = vunpack.c.l.b16 %v1257
    %v2173 = vunpack.c.h.b16 %v1257
    %v2174 = vunpack.c.l.b16 %v1258
    %v2175 = vunpack.c.h.b16 %v1258
    %v2176 = vunpack.c.l.b16 %v1259
    %v2177 = vunpack.c.h.b16 %v1259
    %v2178 = vunpack.c.l.b16 %v1260
    %v2179 = vunpack.c.h.b16 %v1260
    %v2180 = vunpack.c.l.b16 %v1261
    %v2181 = vunpack.c.h.b16 %v1261
    %v2182 = vunpack.c.l.b16 %v1262
    %v2183 = vunpack.c.h.b16 %v1262
    %v2184 = vunpack.c.l.b16 %v1263
    %v2185 = vunpack.c.h.b16 %v1263
    %v2186 = vunpack.c.l.b16 %v1264
    %v2187 = vunpack.c.h.b16 %v1264
    %v2188 = vunpack.c.l.b16 %v1265
    %v2189 = vunpack.c.h.b16 %v1265
    %v2190 = vunpack.c.l.b16 %v1266
    %v2191 = vunpack.c.h.b16 %v1266
    %v2192 = vunpack.c.l.b16 %v1267
    %v2193 = vunpack.c.h.b16 %v1267
    %v2194 = vunpack.c.l.b16 %v1268
    %v2195 = vunpack.c.h.b16 %v1268
    %v2196 = vunpack.c.l.b16 %v1269
    %v2197 = vunpack.c.h.b16 %v1269
    %v2198 = vunpack.c.l.b16 %v1270
    %v2199 = vunpack.c.h.b16 %v1270
    %v2200 = vunpack.c.l.b16 %v1271
    %v2201 = vunpack.c.h.b16 %v1271
    %v2202 = vunpack.c.l.b16 %v1272
    %v2203 = vunpack.c.h.b16 %v1272
    %v2204 = vunpack.c.l.b16 %v1273
    %v2205 = vunpack.c.h.b16 %v1273
    %v2206 = vunpack.c.l.b16 %v1274
    %v2207 = vunpack.c.h.b16 %v1274
    %v2208 = vunpack.c.l.b16 %v1275
    %v2209 = vunpack.c.h.b16 %v1275
    %v2210 = vunpack.c.l.b16 %v1276
    %v2211 = vunpack.c.h.b16 %v1276
    %v2212 = vunpack.c.l.b16 %v1277
    %v2213 = vunpack.c.h.b16 %v1277
    %v2214 = vunpack.c.l.b16 %v1278
    %v2215 = vunpack.c.h.b16 %v1278
    %v2216 = vunpack.c.l.b16 %v1279
    %v2217 = vunpack.c.h.b16 %v1279
    %v2218 = vunpack.c.l.b16 %v1280
    %v2219 = vunpack.c.h.b16 %v1280
    %v2220 = vunpack.c.l.b16 %v1281
    %v2221 = vunpack.c.h.b16 %v1281
    %v2222 = vunpack.c.l.b16 %v1282
    %v2223 = vunpack.c.h.b16 %v1282
    %v2224 = vunpack.c.l.b16 %v1283
    %v2225 = vunpack.c.h.b16 %v1283
    %v2226 = vunpack.c.l.b16 %v1284
    %v2227 = vunpack.c.h.b16 %v1284
    %v2228 = vunpack.c.l.b16 %v1285
    %v2229 = vunpack.c.h.b16 %v1285
    %v2230 = vunpack.c.l.b16 %v1286
    %v2231 = vunpack.c.h.b16 %v1286
    %v2232 = vunpack.c.l.b16 %v1287
    %v2233 = vunpack.c.h.b16 %v1287
    %v2234 = vunpack.c.l.b16 %v1288
    %v2235 = vunpack.c.h.b16 %v1288
    %v2236 = vunpack.c.l.b16 %v1289
    %v2237 = vunpack.c.h.b16 %v1289
    %v2238 = vunpack.c.l.b16 %v1290
    %v2239 = vunpack.c.h.b16 %v1290
    %v2240 = vunpack.c.l.b16 %v1291
    %v2241 = vunpack.c.h.b16 %v1291
    %v2242 = vpack.c.b16 %v1672, %v1666
    %v2243 = vpack.c.b16 %v1673, %v1667
    %v2244 = vpack.c.b16 %v1674, %v1668
    %v2245 = vpack.c.b16 %v1675, %v1669
    %v2246 = vpack.c.b16 %v1676, %v1670
    %v2247 = vpack.c.b16 %v1677, %v1671
    %v2248 = vpack.c.b16 %v1684, %v1678
    %v2249 = vpack.c.b16 %v1685, %v1679
    %v2250 = vpack.c.b16 %v1686, %v1680
    %v2251 = vpack.c.b16 %v1687, %v1681
    %v2252 = vpack.c.b16 %v1688, %v1682
    %v2253 = vpack.c.b16 %v1689, %v1683
    %v2254 = vpack.c.b16 %v1696, %v1690
    %v2255 = vpack.c.b16 %v1697, %v1691
    %v2256 = vpack.c.b16 %v1698, %v1692
    %v2257 = vpack.c.b16 %v1699, %v1693
    %v2258 = vpack.c.b16 %v1700, %v1694
    %v2259 = vpack.c.b16 %v1701, %v1695
    %v2260 = vpack.c.b16 %v1708, %v1702
    %v2261 = vpack.c.b16 %v1709, %v1703
    %v2262 = vpack.c.b16 %v1710, %v1704
    %v2263 = vpack.c.b16 %v1711, %v1705
    %v2264 = vpack.c.b16 %v1712, %v1706
    %v2265 = vpack.c.b16 %v1713, %v1707
    %v2266 = vpack.c.b16 %v1720, %v1714
    %v2267 = vpack.c.b16 %v1721, %v1715
    %v2268 = vpack.c.b16 %v1722, %v1716
    %v2269 = vpack.c.b16 %v1723, %v1717
    %v2270 = vpack.c.b16 %v1724, %v1718
    %v2271 = vpack.c.b16 %v1725, %v1719
    %v2272 = vpack.c.b16 %v1732, %v1726
    %v2273 = vpack.c.b16 %v1733, %v1727
    %v2274 = vpack.c.b16 %v1734, %v1728
    %v2275 = vpack.c.b16 %v1735, %v1729
    %v2276 = vpack.c.b16 %v1736, %v1730
    %v2277 = vpack.c.b16 %v1737, %v1731
    %v2278 = vpack.c.b16 %v1744, %v1738
    %v2279 = vpack.c.b16 %v1745, %v1739
    %v2280 = vpack.c.b16 %v1746, %v1740
    %v2281 = vpack.c.b16 %v1747, %v1741
    %v2282 = vpack.c.b16 %v1748, %v1742
    %v2283 = vpack.c.b16 %v1749, %v1743
    %v2284 = vpack.c.b16 %v1756, %v1750
    %v2285 = vpack.c.b16 %v1757, %v1751
    %v2286 = vpack.c.b16 %v1758, %v1752
    %v2287 = vpack.c.b16 %v1759, %v1753
    %v2288 = vpack.c.b16 %v1760, %v1754
    %v2289 = vpack.c.b16 %v1761, %v1755
    %v2290 = vpack.c.b16 %v1768, %v1762
    %v2291 = vpack.c.b16 %v1769, %v1763
    %v2292 = vpack.c.b16 %v1770, %v1764
    %v2293 = vpack.c.b16 %v1771, %v1765
    %v2294 = vpack.c.b16 %v1772, %v1766
    %v2295 = vpack.c.b16 %v1773, %v1767
    %v2296 = vpack.c.b16 %v1780, %v1774
    %v2297 = vpack.c.b16 %v1781, %v1775
    %v2298 = vpack.c.b16 %v1782, %v1776
    %v2299 = vpack.c.b16 %v1783, %v1777
    %v2300 = vpack.c.b16 %v1784, %v1778
    %v2301 = vpack.c.b16 %v1785, %v1779
    %v2302 = vpack.c.b16 %v1792, %v1786
    %v2303 = vpack.c.b16 %v1793, %v1787
    %v2304 = vpack.c.b16 %v1794, %v1788
    %v2305 = vpack.c.b16 %v1795, %v1789
    %v2306 = vpack.c.b16 %v1796, %v1790
    %v2307 = vpack.c.b16 %v1797, %v1791
    %v2308 = vpack.c.b16 %v1804, %v1798
    %v2309 = vpack.c.b16 %v1805, %v1799
    %v2310 = vpack.c.b16 %v1806, %v1800
    %v2311 = vpack.c.b16 %v1807, %v1801
    %v2312 = vpack.c.b16 %v1808, %v1802
    %v2313 = vpack.c.b16 %v1809, %v1803
    %v2314 = vpack.c.b16 %v1816, %v1810
    %v2315 = vpack.c.b16 %v1817, %v1811
    %v2316 = vpack.c.b16 %v1818, %v1812
    %v2317 = vpack.c.b16 %v1819, %v1813
    %v2318 = vpack.c.b16 %v1820, %v1814
    %v2319 = vpack.c.b16 %v1821, %v1815
    %v2320 = vpack.c.b16 %v1828, %v1822
    %v2321 = vpack.c.b16 %v1829, %v1823
    %v2322 = vpack.c.b16 %v1830, %v1824
    %v2323 = vpack.c.b16 %v1831, %v1825
    %v2324 = vpack.c.b16 %v1832, %v1826
    %v2325 = vpack.c.b16 %v1833, %v1827
    %v2326 = vpack.c.b16 %v1840, %v1834
    %v2327 = vpack.c.b16 %v1841, %v1835
    %v2328 = vpack.c.b16 %v1842, %v1836
    %v2329 = vpack.c.b16 %v1843, %v1837
    %v2330 = vpack.c.b16 %v1844, %v1838
    %v2331 = vpack.c.b16 %v1845, %v1839
    %v2332 = vpack.c.b16 %v1852, %v1846
    %v2333 = vpack.c.b16 %v1853, %v1847
    %v2334 = vpack.c.b16 %v1854, %v1848
    %v2335 = vpack.c.b16 %v1855, %v1849
    %v2336 = vpack.c.b16 %v1856, %v1850
    %v2337 = vpack.c.b16 %v1857, %v1851
    %v2338 = vpack.c.b16 %v1864, %v1858
    %v2339 = vpack.c.b16 %v1865, %v1859
    %v2340 = vpack.c.b16 %v1866, %v1860
    %v2341 = vpack.c.b16 %v1867, %v1861
    %v2342 = vpack.c.b16 %v1868, %v1862
    %v2343 = vpack.c.b16 %v1869, %v1863
    %v2344 = vpack.c.b16 %v1876, %v1870
    %v2345 = vpack.c.b16 %v1877, %v1871
    %v2346 = vpack.c.b16 %v1878, %v1872
    %v2347 = vpack.c.b16 %v1879, %v1873
    %v2348 = vpack.c.b16 %v1880, %v1874
    %v2349 = vpack.c.b16 %v1881, %v1875
    %v2350 = vpack.c.b16 %v1888, %v1882
    %v2351 = vpack.c.b16 %v1889, %v1883
    %v2352 = vpack.c.b16 %v1890, %v1884
    %v2353 = vpack.c.b16 %v1891, %v1885
    %v2354 = vpack.c.b16 %v1892, %v1886
    %v2355 = vpack.c.b16 %v1893, %v1887
    %v2356 = vpack.c.b16 %v1900, %v1894
    %v2357 = vpack.c.b16 %v1901, %v1895
    %v2358 = vpack.c.b16 %v1902, %v1896
    %v2359 = vpack.c.b16 %v1903, %v1897
    %v2360 = vpack.c.b16 %v1904, %v1898
    %v2361 = vpack.c.b16 %v1905, %v1899
    %v2362 = vpack.c.b16 %v1912, %v1906
    %v2363 = vpack.c.b16 %v1913, %v1907
    %v2364 = vpack.c.b16 %v1914, %v1908
    %v2365 = vpack.c.b16 %v1915, %v1909
    %v2366 = vpack.c.b16 %v1916, %v1910
    %v2367 = vpack.c.b16 %v1917, %v1911
    %v2368 = vpack.c.b16 %v1924, %v1918
    %v2369 = vpack.c.b16 %v1925, %v1919
    %v2370 = vpack.c.b16 %v1926, %v1920
    %v2371 = vpack.c.b16 %v1927, %v1921
    %v2372 = vpack.c.b16 %v1928, %v1922
    %v2373 = vpack.c.b16 %v1929, %v1923
    %v2374 = vpack.c.b16 %v1936, %v1930
    %v2375 = vpack.c.b16 %v1937, %v1931
    %v2376 = vpack.c.b16 %v1938, %v1932
    %v2377 = vpack.c.b16 %v1939, %v1933
    %v2378 = vpack.c.b16 %v1940, %v1934
    %v2379 = vpack.c.b16 %v1941, %v1935
    %v2380 = vpack.c.b16 %v1948, %v1942
    %v2381 = vpack.c.b16 %v1949, %v1943
    %v2382 = vpack.c.b16 %v1950, %v1944
    %v2383 = vpack.c.b16 %v1951, %v1945
    %v2384 = vpack.c.b16 %v1952, %v1946
    %v2385 = vpack.c.b16 %v1953, %v1947
    %v2386 = vpack.c.b16 %v1960, %v1954
    %v2387 = vpack.c.b16 %v1961, %v1955
    %v2388 = vpack.c.b16 %v1962, %v1956
    %v2389 = vpack.c.b16 %v1963, %v1957
    %v2390 = vpack.c.b16 %v1964, %v1958
    %v2391 = vpack.c.b16 %v1965, %v1959
    %v2392 = vpack.c.b16 %v1972, %v1966
    %v2393 = vpack.c.b16 %v1973, %v1967
    %v2394 = vpack.c.b16 %v1974, %v1968
    %v2395 = vpack.c.b16 %v1975, %v1969
    %v2396 = vpack.c.b16 %v1976, %v1970
    %v2397 = vpack.c.b16 %v1977, %v1971
    %v2398 = vpack.c.b16 %v1984, %v1978
    %v2399 = vpack.c.b16 %v1985, %v1979
    %v2400 = vpack.c.b16 %v1986, %v1980
    %v2401 = vpack.c.b16 %v1987, %v1981
    %v2402 = vpack.c.b16 %v1988, %v1982
    %v2403 = vpack.c.b16 %v1989, %v1983
    %v2404 = vpack.c.b16 %v1996, %v1990
    %v2405 = vpack.c.b16 %v1997, %v1991
    %v2406 = vpack.c.b16 %v1998, %v1992
    %v2407 = vpack.c.b16 %v1999, %v1993
    %v2408 = vpack.c.b16 %v2000, %v1994
    %v2409 = vpack.c.b16 %v2001, %v1995
    %v2410 = vpack.c.b16 %v2008, %v2002
    %v2411 = vpack.c.b16 %v2009, %v2003
    %v2412 = vpack.c.b16 %v2010, %v2004
    %v2413 = vpack.c.b16 %v2011, %v2005
    %v2414 = vpack.c.b16 %v2012, %v2006
    %v2415 = vpack.c.b16 %v2013, %v2007
    %v2416 = vpack.c.b16 %v2020, %v2014
    %v2417 = vpack.c.b16 %v2021, %v2015
    %v2418 = vpack.c.b16 %v2022, %v2016
    %v2419 = vpack.c.b16 %v2023, %v2017
    %v2420 = vpack.c.b16 %v2024, %v2018
    %v2421 = vpack.c.b16 %v2025, %v2019
    %v2422 = vpack.c.b16 %v2032, %v2026
    %v2423 = vpack.c.b16 %v2033, %v2027
    %v2424 = vpack.c.b16 %v2034, %v2028
    %v2425 = vpack.c.b16 %v2035, %v2029
    %v2426 = vpack.c.b16 %v2036, %v2030
    %v2427 = vpack.c.b16 %v2037, %v2031
    %v2428 = vpack.c.b16 %v2044, %v2038
    %v2429 = vpack.c.b16 %v2045, %v2039
    %v2430 = vpack.c.b16 %v2046, %v2040
    %v2431 = vpack.c.b16 %v2047, %v2041
    %v2432 = vpack.c.b16 %v2048, %v2042
    %v2433 = vpack.c.b16 %v2049, %v2043
    %v2434 = vpack.c.b16 %v2056, %v2050
    %v2435 = vpack.c.b16 %v2057, %v2051
    %v2436 = vpack.c.b16 %v2058, %v2052
    %v2437 = vpack.c.b16 %v2059, %v2053
    %v2438 = vpack.c.b16 %v2060, %v2054
    %v2439 = vpack.c.b16 %v2061, %v2055
    %v2440 = vpack.c.b16 %v2068, %v2062
    %v2441 = vpack.c.b16 %v2069, %v2063
    %v2442 = vpack.c.b16 %v2070, %v2064
    %v2443 = vpack.c.b16 %v2071, %v2065
    %v2444 = vpack.c.b16 %v2072, %v2066
    %v2445 = vpack.c.b16 %v2073, %v2067
    %v2446 = vpack.c.b16 %v2080, %v2074
    %v2447 = vpack.c.b16 %v2081, %v2075
    %v2448 = vpack.c.b16 %v2082, %v2076
    %v2449 = vpack.c.b16 %v2083, %v2077
    %v2450 = vpack.c.b16 %v2084, %v2078
    %v2451 = vpack.c.b16 %v2085, %v2079
    %v2452 = vpack.c.b16 %v2092, %v2086
    %v2453 = vpack.c.b16 %v2093, %v2087
    %v2454 = vpack.c.b16 %v2094, %v2088
    %v2455 = vpack.c.b16 %v2095, %v2089
    %v2456 = vpack.c.b16 %v2096, %v2090
    %v2457 = vpack.c.b16 %v2097, %v2091
    %v2458 = vpack.c.b16 %v2104, %v2098
    %v2459 = vpack.c.b16 %v2105, %v2099
    %v2460 = vpack.c.b16 %v2106, %v2100
    %v2461 = vpack.c.b16 %v2107, %v2101
    %v2462 = vpack.c.b16 %v2108, %v2102
    %v2463 = vpack.c.b16 %v2109, %v2103
    %v2464 = vpack.c.b16 %v2116, %v2110
    %v2465 = vpack.c.b16 %v2117, %v2111
    %v2466 = vpack.c.b16 %v2118, %v2112
    %v2467 = vpack.c.b16 %v2119, %v2113
    %v2468 = vpack.c.b16 %v2120, %v2114
    %v2469 = vpack.c.b16 %v2121, %v2115
    %v2470 = vpack.c.b16 %v2128, %v2122
    %v2471 = vpack.c.b16 %v2129, %v2123
    %v2472 = vpack.c.b16 %v2130, %v2124
    %v2473 = vpack.c.b16 %v2131, %v2125
    %v2474 = vpack.c.b16 %v2132, %v2126
    %v2475 = vpack.c.b16 %v2133, %v2127
    %v2476 = vpack.c.b16 %v2140, %v2134
    %v2477 = vpack.c.b16 %v2141, %v2135
    %v2478 = vpack.c.b16 %v2142, %v2136
    %v2479 = vpack.c.b16 %v2143, %v2137
    %v2480 = vpack.c.b16 %v2144, %v2138
    %v2481 = vpack.c.b16 %v2145, %v2139
    %v2482 = vpack.c.b16 %v2152, %v2146
    %v2483 = vpack.c.b16 %v2153, %v2147
    %v2484 = vpack.c.b16 %v2154, %v2148
    %v2485 = vpack.c.b16 %v2155, %v2149
    %v2486 = vpack.c.b16 %v2156, %v2150
    %v2487 = vpack.c.b16 %v2157, %v2151
    %v2488 = vpack.c.b16 %v2164, %v2158
    %v2489 = vpack.c.b16 %v2165, %v2159
    %v2490 = vpack.c.b16 %v2166, %v2160
    %v2491 = vpack.c.b16 %v2167, %v2161
    %v2492 = vpack.c.b16 %v2168, %v2162
    %v2493 = vpack.c.b16 %v2169, %v2163
    %v2494 = vpack.c.b16 %v2176, %v2170
    %v2495 = vpack.c.b16 %v2177, %v2171
    %v2496 = vpack.c.b16 %v2178, %v2172
    %v2497 = vpack.c.b16 %v2179, %v2173
    %v2498 = vpack.c.b16 %v2180, %v2174
    %v2499 = vpack.c.b16 %v2181, %v2175
    %v2500 = vpack.c.b16 %v2188, %v2182
    %v2501 = vpack.c.b16 %v2189, %v2183
    %v2502 = vpack.c.b16 %v2190, %v2184
    %v2503 = vpack.c.b16 %v2191, %v2185
    %v2504 = vpack.c.b16 %v2192, %v2186
    %v2505 = vpack.c.b16 %v2193, %v2187
    %v2506 = vpack.c.b16 %v2200, %v2194
    %v2507 = vpack.c.b16 %v2201, %v2195
    %v2508 = vpack.c.b16 %v2202, %v2196
    %v2509 = vpack.c.b16 %v2203, %v2197
    %v2510 = vpack.c.b16 %v2204, %v2198
    %v2511 = vpack.c.b16 %v2205, %v2199
    %v2512 = vpack.c.b16 %v2212, %v2206
    %v2513 = vpack.c.b16 %v2213, %v2207
    %v2514 = vpack.c.b16 %v2214, %v2208
    %v2515 = vpack.c.b16 %v2215, %v2209
    %v2516 = vpack.c.b16 %v2216, %v2210
    %v2517 = vpack.c.b16 %v2217, %v2211
    %v2518 = vpack.c.b16 %v2224, %v2218
    %v2519 = vpack.c.b16 %v2225, %v2219
    %v2520 = vpack.c.b16 %v2226, %v2220
    %v2521 = vpack.c.b16 %v2227, %v2221
    %v2522 = vpack.c.b16 %v2228, %v2222
    %v2523 = vpack.c.b16 %v2229, %v2223
    %v2524 = vpack.c.b16 %v2236, %v2230
    %v2525 = vpack.c.b16 %v2237, %v2231
    %v2526 = vpack.c.b16 %v2238, %v2232
    %v2527 = vpack.c.b16 %v2239, %v2233
    %v2528 = vpack.c.b16 %v2240, %v2234
    %v2529 = vpack.c.b16 %v2241, %v2235
    %2818 = vmatprep.subr.bf16.mxu0 %v2285
    %2819 = vmatpush1.bf16.msra.mxu0 %v2284
    %2820 = vmatprep.subr.bf16.mxu0 %v2279
    %2821 = vmatpush1.bf16.msra.mxu0 %v2278
    %2822 = vmatprep.subr.bf16.mxu0 %v2273
    %2823 = vmatpush1.bf16.msra.mxu0 %v2272
    %2824 = vmatprep.subr.bf16.mxu0 %v2267
    %2825 = vmatpush1.bf16.msra.mxu0 %v2266
    %2826 = vmatprep.subr.bf16.mxu0 %v2261
    %2827 = vmatpush1.bf16.msra.mxu0 %v2260
    %2828 = vmatprep.subr.bf16.mxu0 %v2255
    %2829 = vmatpush1.bf16.msra.mxu0 %v2254
    %2830 = vmatprep.subr.bf16.mxu0 %v2249
    %2831 = vmatpush1.bf16.msra.mxu0 %v2248
    %2832 = vmatprep.subr.bf16.mxu0 %v2243
    %2833 = vmatpush1.bf16.msra.mxu0 %v2242
    %2834 = vmatprep.subr.bf16.mxu0 %v2333
    %2835 = vmatpush2.bf16.msra.mxu0 %v2332
    %2836 = vmatprep.subr.bf16.mxu0 %v2327
    %2837 = vmatpush2.bf16.msra.mxu0 %v2326
    %2838 = vmatprep.subr.bf16.mxu0 %v2321
    %2839 = vmatpush2.bf16.msra.mxu0 %v2320
    %2840 = vmatprep.subr.bf16.mxu0 %v2315
    %2841 = vmatpush2.bf16.msra.mxu0 %v2314
    %2842 = vmatprep.subr.bf16.mxu0 %v2309
    %2843 = vmatpush2.bf16.msra.mxu0 %v2308
    %2844 = vmatprep.subr.bf16.mxu0 %v2303
    %2845 = vmatpush2.bf16.msra.mxu0 %v2302
    %2846 = vmatprep.subr.bf16.mxu0 %v2297
    %2847 = vmatpush2.bf16.msra.mxu0 %v2296
    %2848 = vmatprep.subr.bf16.mxu0 %v2291
    %2849 = vmatpush2.bf16.msra.mxu0 %v2290
    %2850 = vmatprep.mubr.bf16.mxu0 %v1362
    %2851 = vmatmul.mubr.bf16.gmra.mxu0 %v1348
    %v2852 = vpop.f32.mrf.mxu0
    %v2853 = vadd.f32 %v1297, %v2852
    %v2854 = vpop.f32.mrf.mxu0
    %v2855 = vadd.f32 %v1301, %v2854
    %v2856 = vpop.f32.mrf.mxu0
    %v2857 = vpop.f32.mrf.mxu0
    %2858 = vdwg.mxu0
    %2859 = vmatprep.subr.bf16.mxu0 %v2381
    %2860 = vmatpush1.bf16.msra.mxu0 %v2380
    %2861 = vmatprep.subr.bf16.mxu0 %v2375
    %2862 = vmatpush1.bf16.msra.mxu0 %v2374
    %2863 = vmatprep.subr.bf16.mxu0 %v2369
    %2864 = vmatpush1.bf16.msra.mxu0 %v2368
    %2865 = vmatprep.subr.bf16.mxu0 %v2363
    %2866 = vmatpush1.bf16.msra.mxu0 %v2362
    %2867 = vmatprep.subr.bf16.mxu0 %v2357
    %2868 = vmatpush1.bf16.msra.mxu0 %v2356
    %2869 = vmatprep.subr.bf16.mxu0 %v2351
    %2870 = vmatpush1.bf16.msra.mxu0 %v2350
    %2871 = vmatprep.subr.bf16.mxu0 %v2345
    %2872 = vmatpush1.bf16.msra.mxu0 %v2344
    %2873 = vmatprep.subr.bf16.mxu0 %v2339
    %2874 = vmatpush1.bf16.msra.mxu0 %v2338
    %2875 = vmatprep.subr.bf16.mxu0 %v2429
    %2876 = vmatpush2.bf16.msra.mxu0 %v2428
    %2877 = vmatprep.subr.bf16.mxu0 %v2423
    %2878 = vmatpush2.bf16.msra.mxu0 %v2422
    %2879 = vmatprep.subr.bf16.mxu0 %v2417
    %2880 = vmatpush2.bf16.msra.mxu0 %v2416
    %2881 = vmatprep.subr.bf16.mxu0 %v2411
    %2882 = vmatpush2.bf16.msra.mxu0 %v2410
    %2883 = vmatprep.subr.bf16.mxu0 %v2405
    %2884 = vmatpush2.bf16.msra.mxu0 %v2404
    %2885 = vmatprep.subr.bf16.mxu0 %v2399
    %2886 = vmatpush2.bf16.msra.mxu0 %v2398
    %2887 = vmatprep.subr.bf16.mxu0 %v2393
    %2888 = vmatpush2.bf16.msra.mxu0 %v2392
    %2889 = vmatprep.subr.bf16.mxu0 %v2387
    %2890 = vmatpush2.bf16.msra.mxu0 %v2386
    %2891 = vmatprep.mubr.bf16.mxu0 %v1371
    %2892 = vmatmul.mubr.bf16.gmra.mxu0 %v1370
    %v2893 = vpop.f32.mrf.mxu0
    %v2894 = vadd.f32 %v2853, %v2893
    %v2895 = vpop.f32.mrf.mxu0
    %v2896 = vadd.f32 %v2855, %v2895
    %v2897 = vpop.f32.mrf.mxu0
    %v2898 = vpop.f32.mrf.mxu0
    %2899 = vdwg.mxu0
    %2900 = vmatprep.subr.bf16.mxu0 %v2477
    %2901 = vmatpush1.bf16.msra.mxu0 %v2476
    %2902 = vmatprep.subr.bf16.mxu0 %v2471
    %2903 = vmatpush1.bf16.msra.mxu0 %v2470
    %2904 = vmatprep.subr.bf16.mxu0 %v2465
    %2905 = vmatpush1.bf16.msra.mxu0 %v2464
    %2906 = vmatprep.subr.bf16.mxu0 %v2459
    %2907 = vmatpush1.bf16.msra.mxu0 %v2458
    %2908 = vmatprep.subr.bf16.mxu0 %v2453
    %2909 = vmatpush1.bf16.msra.mxu0 %v2452
    %2910 = vmatprep.subr.bf16.mxu0 %v2447
    %2911 = vmatpush1.bf16.msra.mxu0 %v2446
    %2912 = vmatprep.subr.bf16.mxu0 %v2441
    %2913 = vmatpush1.bf16.msra.mxu0 %v2440
    %2914 = vmatprep.subr.bf16.mxu0 %v2435
    %2915 = vmatpush1.bf16.msra.mxu0 %v2434
    %2916 = vmatprep.subr.bf16.mxu0 %v2525
    %2917 = vmatpush2.bf16.msra.mxu0 %v2524
    %2918 = vmatprep.subr.bf16.mxu0 %v2519
    %2919 = vmatpush2.bf16.msra.mxu0 %v2518
    %2920 = vmatprep.subr.bf16.mxu0 %v2513
    %2921 = vmatpush2.bf16.msra.mxu0 %v2512
    %2922 = vmatprep.subr.bf16.mxu0 %v2507
    %2923 = vmatpush2.bf16.msra.mxu0 %v2506
    %2924 = vmatprep.subr.bf16.mxu0 %v2501
    %2925 = vmatpush2.bf16.msra.mxu0 %v2500
    %2926 = vmatprep.subr.bf16.mxu0 %v2495
    %2927 = vmatpush2.bf16.msra.mxu0 %v2494
    %2928 = vmatprep.subr.bf16.mxu0 %v2489
    %2929 = vmatpush2.bf16.msra.mxu0 %v2488
    %2930 = vmatprep.subr.bf16.mxu0 %v2483
    %2931 = vmatpush2.bf16.msra.mxu0 %v2482
    %2932 = vmatprep.mubr.bf16.mxu0 %v1369
    %2933 = vmatmul.mubr.bf16.gmra.mxu0 %v1355
    %v2934 = vpop.f32.mrf.mxu0
    %v2935 = vadd.f32 %v2894, %v2934
    %v2936 = vpop.f32.mrf.mxu0
    %v2937 = vadd.f32 %v2896, %v2936
    %v2938 = vpop.f32.mrf.mxu0
    %v2939 = vpop.f32.mrf.mxu0
    %2940 = vdwg.mxu0
    %2941 = vmatprep.subr.bf16.mxu0 %v2287
    %2942 = vmatpush1.bf16.msra.mxu0 %v2286
    %2943 = vmatprep.subr.bf16.mxu0 %v2281
    %2944 = vmatpush1.bf16.msra.mxu0 %v2280
    %2945 = vmatprep.subr.bf16.mxu0 %v2275
    %2946 = vmatpush1.bf16.msra.mxu0 %v2274
    %2947 = vmatprep.subr.bf16.mxu0 %v2269
    %2948 = vmatpush1.bf16.msra.mxu0 %v2268
    %2949 = vmatprep.subr.bf16.mxu0 %v2263
    %2950 = vmatpush1.bf16.msra.mxu0 %v2262
    %2951 = vmatprep.subr.bf16.mxu0 %v2257
    %2952 = vmatpush1.bf16.msra.mxu0 %v2256
    %2953 = vmatprep.subr.bf16.mxu0 %v2251
    %2954 = vmatpush1.bf16.msra.mxu0 %v2250
    %2955 = vmatprep.subr.bf16.mxu0 %v2245
    %2956 = vmatpush1.bf16.msra.mxu0 %v2244
    %2957 = vmatprep.subr.bf16.mxu0 %v2335
    %2958 = vmatpush2.bf16.msra.mxu0 %v2334
    %2959 = vmatprep.subr.bf16.mxu0 %v2329
    %2960 = vmatpush2.bf16.msra.mxu0 %v2328
    %2961 = vmatprep.subr.bf16.mxu0 %v2323
    %2962 = vmatpush2.bf16.msra.mxu0 %v2322
    %2963 = vmatprep.subr.bf16.mxu0 %v2317
    %2964 = vmatpush2.bf16.msra.mxu0 %v2316
    %2965 = vmatprep.subr.bf16.mxu0 %v2311
    %2966 = vmatpush2.bf16.msra.mxu0 %v2310
    %2967 = vmatprep.subr.bf16.mxu0 %v2305
    %2968 = vmatpush2.bf16.msra.mxu0 %v2304
    %2969 = vmatprep.subr.bf16.mxu0 %v2299
    %2970 = vmatpush2.bf16.msra.mxu0 %v2298
    %2971 = vmatprep.subr.bf16.mxu0 %v2293
    %2972 = vmatpush2.bf16.msra.mxu0 %v2292
    %2973 = vmatprep.mubr.bf16.mxu0 %v1362
    %2974 = vmatmul.mubr.bf16.gmra.mxu0 %v1348
    %v2975 = vpop.f32.mrf.mxu0
    %v2976 = vadd.f32 %v1305, %v2975
    %v2977 = vpop.f32.mrf.mxu0
    %v2978 = vadd.f32 %v1309, %v2977
    %v2979 = vpop.f32.mrf.mxu0
    %v2980 = vpop.f32.mrf.mxu0
    %2981 = vdwg.mxu0
    %2982 = vmatprep.subr.bf16.mxu0 %v2383
    %2983 = vmatpush1.bf16.msra.mxu0 %v2382
    %2984 = vmatprep.subr.bf16.mxu0 %v2377
    %2985 = vmatpush1.bf16.msra.mxu0 %v2376
    %2986 = vmatprep.subr.bf16.mxu0 %v2371
    %2987 = vmatpush1.bf16.msra.mxu0 %v2370
    %2988 = vmatprep.subr.bf16.mxu0 %v2365
    %2989 = vmatpush1.bf16.msra.mxu0 %v2364
    %2990 = vmatprep.subr.bf16.mxu0 %v2359
    %2991 = vmatpush1.bf16.msra.mxu0 %v2358
    %2992 = vmatprep.subr.bf16.mxu0 %v2353
    %2993 = vmatpush1.bf16.msra.mxu0 %v2352
    %2994 = vmatprep.subr.bf16.mxu0 %v2347
    %2995 = vmatpush1.bf16.msra.mxu0 %v2346
    %2996 = vmatprep.subr.bf16.mxu0 %v2341
    %2997 = vmatpush1.bf16.msra.mxu0 %v2340
    %2998 = vmatprep.subr.bf16.mxu0 %v2431
    %2999 = vmatpush2.bf16.msra.mxu0 %v2430
    %3000 = vmatprep.subr.bf16.mxu0 %v2425
    %3001 = vmatpush2.bf16.msra.mxu0 %v2424
    %3002 = vmatprep.subr.bf16.mxu0 %v2419
    %3003 = vmatpush2.bf16.msra.mxu0 %v2418
    %3004 = vmatprep.subr.bf16.mxu0 %v2413
    %3005 = vmatpush2.bf16.msra.mxu0 %v2412
    %3006 = vmatprep.subr.bf16.mxu0 %v2407
    %3007 = vmatpush2.bf16.msra.mxu0 %v2406
    %3008 = vmatprep.subr.bf16.mxu0 %v2401
    %3009 = vmatpush2.bf16.msra.mxu0 %v2400
    %3010 = vmatprep.subr.bf16.mxu0 %v2395
    %3011 = vmatpush2.bf16.msra.mxu0 %v2394
    %3012 = vmatprep.subr.bf16.mxu0 %v2389
    %3013 = vmatpush2.bf16.msra.mxu0 %v2388
    %3014 = vmatprep.mubr.bf16.mxu0 %v1371
    %3015 = vmatmul.mubr.bf16.gmra.mxu0 %v1370
    %v3016 = vpop.f32.mrf.mxu0
    %v3017 = vadd.f32 %v2976, %v3016
    %v3018 = vpop.f32.mrf.mxu0
    %v3019 = vadd.f32 %v2978, %v3018
    %v3020 = vpop.f32.mrf.mxu0
    %v3021 = vpop.f32.mrf.mxu0
    %3022 = vdwg.mxu0
    %3023 = vmatprep.subr.bf16.mxu0 %v2479
    %3024 = vmatpush1.bf16.msra.mxu0 %v2478
    %3025 = vmatprep.subr.bf16.mxu0 %v2473
    %3026 = vmatpush1.bf16.msra.mxu0 %v2472
    %3027 = vmatprep.subr.bf16.mxu0 %v2467
    %3028 = vmatpush1.bf16.msra.mxu0 %v2466
    %3029 = vmatprep.subr.bf16.mxu0 %v2461
    %3030 = vmatpush1.bf16.msra.mxu0 %v2460
    %3031 = vmatprep.subr.bf16.mxu0 %v2455
    %3032 = vmatpush1.bf16.msra.mxu0 %v2454
    %3033 = vmatprep.subr.bf16.mxu0 %v2449
    %3034 = vmatpush1.bf16.msra.mxu0 %v2448
    %3035 = vmatprep.subr.bf16.mxu0 %v2443
    %3036 = vmatpush1.bf16.msra.mxu0 %v2442
    %3037 = vmatprep.subr.bf16.mxu0 %v2437
    %3038 = vmatpush1.bf16.msra.mxu0 %v2436
    %3039 = vmatprep.subr.bf16.mxu0 %v2527
    %3040 = vmatpush2.bf16.msra.mxu0 %v2526
    %3041 = vmatprep.subr.bf16.mxu0 %v2521
    %3042 = vmatpush2.bf16.msra.mxu0 %v2520
    %3043 = vmatprep.subr.bf16.mxu0 %v2515
    %3044 = vmatpush2.bf16.msra.mxu0 %v2514
    %3045 = vmatprep.subr.bf16.mxu0 %v2509
    %3046 = vmatpush2.bf16.msra.mxu0 %v2508
    %3047 = vmatprep.subr.bf16.mxu0 %v2503
    %3048 = vmatpush2.bf16.msra.mxu0 %v2502
    %3049 = vmatprep.subr.bf16.mxu0 %v2497
    %3050 = vmatpush2.bf16.msra.mxu0 %v2496
    %3051 = vmatprep.subr.bf16.mxu0 %v2491
    %3052 = vmatpush2.bf16.msra.mxu0 %v2490
    %3053 = vmatprep.subr.bf16.mxu0 %v2485
    %3054 = vmatpush2.bf16.msra.mxu0 %v2484
    %3055 = vmatprep.mubr.bf16.mxu0 %v1369
    %3056 = vmatmul.mubr.bf16.gmra.mxu0 %v1355
    %v3057 = vpop.f32.mrf.mxu0
    %v3058 = vadd.f32 %v3017, %v3057
    %v3059 = vpop.f32.mrf.mxu0
    %v3060 = vadd.f32 %v3019, %v3059
    %v3061 = vpop.f32.mrf.mxu0
    %v3062 = vpop.f32.mrf.mxu0
    %3063 = vdwg.mxu0
    %3064 = vmatprep.subr.bf16.mxu0 %v2289
    %3065 = vmatpush1.bf16.msra.mxu0 %v2288
    %3066 = vmatprep.subr.bf16.mxu0 %v2283
    %3067 = vmatpush1.bf16.msra.mxu0 %v2282
    %3068 = vmatprep.subr.bf16.mxu0 %v2277
    %3069 = vmatpush1.bf16.msra.mxu0 %v2276
    %3070 = vmatprep.subr.bf16.mxu0 %v2271
    %3071 = vmatpush1.bf16.msra.mxu0 %v2270
    %3072 = vmatprep.subr.bf16.mxu0 %v2265
    %3073 = vmatpush1.bf16.msra.mxu0 %v2264
    %3074 = vmatprep.subr.bf16.mxu0 %v2259
    %3075 = vmatpush1.bf16.msra.mxu0 %v2258
    %3076 = vmatprep.subr.bf16.mxu0 %v2253
    %3077 = vmatpush1.bf16.msra.mxu0 %v2252
    %3078 = vmatprep.subr.bf16.mxu0 %v2247
    %3079 = vmatpush1.bf16.msra.mxu0 %v2246
    %3080 = vmatprep.subr.bf16.mxu0 %v2337
    %3081 = vmatpush2.bf16.msra.mxu0 %v2336
    %3082 = vmatprep.subr.bf16.mxu0 %v2331
    %3083 = vmatpush2.bf16.msra.mxu0 %v2330
    %3084 = vmatprep.subr.bf16.mxu0 %v2325
    %3085 = vmatpush2.bf16.msra.mxu0 %v2324
    %3086 = vmatprep.subr.bf16.mxu0 %v2319
    %3087 = vmatpush2.bf16.msra.mxu0 %v2318
    %3088 = vmatprep.subr.bf16.mxu0 %v2313
    %3089 = vmatpush2.bf16.msra.mxu0 %v2312
    %3090 = vmatprep.subr.bf16.mxu0 %v2307
    %3091 = vmatpush2.bf16.msra.mxu0 %v2306
    %3092 = vmatprep.subr.bf16.mxu0 %v2301
    %3093 = vmatpush2.bf16.msra.mxu0 %v2300
    %3094 = vmatprep.subr.bf16.mxu0 %v2295
    %3095 = vmatpush2.bf16.msra.mxu0 %v2294
    %3096 = vmatprep.mubr.bf16.mxu0 %v1362
    %3097 = vmatmul.mubr.bf16.gmra.mxu0 %v1348
    %v3098 = vpop.f32.mrf.mxu0
    %v3099 = vadd.f32 %v1313, %v3098
    %v3100 = vpop.f32.mrf.mxu0
    %v3101 = vadd.f32 %v1317, %v3100
    %v3102 = vpop.f32.mrf.mxu0
    %v3103 = vpop.f32.mrf.mxu0
    %3104 = vdwg.mxu0
    %3105 = vmatprep.subr.bf16.mxu0 %v2385
    %3106 = vmatpush1.bf16.msra.mxu0 %v2384
    %3107 = vmatprep.subr.bf16.mxu0 %v2379
    %3108 = vmatpush1.bf16.msra.mxu0 %v2378
    %3109 = vmatprep.subr.bf16.mxu0 %v2373
    %3110 = vmatpush1.bf16.msra.mxu0 %v2372
    %3111 = vmatprep.subr.bf16.mxu0 %v2367
    %3112 = vmatpush1.bf16.msra.mxu0 %v2366
    %3113 = vmatprep.subr.bf16.mxu0 %v2361
    %3114 = vmatpush1.bf16.msra.mxu0 %v2360
    %3115 = vmatprep.subr.bf16.mxu0 %v2355
    %3116 = vmatpush1.bf16.msra.mxu0 %v2354
    %3117 = vmatprep.subr.bf16.mxu0 %v2349
    %3118 = vmatpush1.bf16.msra.mxu0 %v2348
    %3119 = vmatprep.subr.bf16.mxu0 %v2343
    %3120 = vmatpush1.bf16.msra.mxu0 %v2342
    %3121 = vmatprep.subr.bf16.mxu0 %v2433
    %3122 = vmatpush2.bf16.msra.mxu0 %v2432
    %3123 = vmatprep.subr.bf16.mxu0 %v2427
    %3124 = vmatpush2.bf16.msra.mxu0 %v2426
    %3125 = vmatprep.subr.bf16.mxu0 %v2421
    %3126 = vmatpush2.bf16.msra.mxu0 %v2420
    %3127 = vmatprep.subr.bf16.mxu0 %v2415
    %3128 = vmatpush2.bf16.msra.mxu0 %v2414
    %3129 = vmatprep.subr.bf16.mxu0 %v2409
    %3130 = vmatpush2.bf16.msra.mxu0 %v2408
    %3131 = vmatprep.subr.bf16.mxu0 %v2403
    %3132 = vmatpush2.bf16.msra.mxu0 %v2402
    %3133 = vmatprep.subr.bf16.mxu0 %v2397
    %3134 = vmatpush2.bf16.msra.mxu0 %v2396
    %3135 = vmatprep.subr.bf16.mxu0 %v2391
    %3136 = vmatpush2.bf16.msra.mxu0 %v2390
    %3137 = vmatprep.mubr.bf16.mxu0 %v1371
    %3138 = vmatmul.mubr.bf16.gmra.mxu0 %v1370
    %v3139 = vpop.f32.mrf.mxu0
    %v3140 = vadd.f32 %v3099, %v3139
    %v3141 = vpop.f32.mrf.mxu0
    %v3142 = vadd.f32 %v3101, %v3141
    %v3143 = vpop.f32.mrf.mxu0
    %v3144 = vpop.f32.mrf.mxu0
    %3145 = vdwg.mxu0
    %3146 = vmatprep.subr.bf16.mxu0 %v2481
    %3147 = vmatpush1.bf16.msra.mxu0 %v2480
    %3148 = vmatprep.subr.bf16.mxu0 %v2475
    %3149 = vmatpush1.bf16.msra.mxu0 %v2474
    %3150 = vmatprep.subr.bf16.mxu0 %v2469
    %3151 = vmatpush1.bf16.msra.mxu0 %v2468
    %3152 = vmatprep.subr.bf16.mxu0 %v2463
    %3153 = vmatpush1.bf16.msra.mxu0 %v2462
    %3154 = vmatprep.subr.bf16.mxu0 %v2457
    %3155 = vmatpush1.bf16.msra.mxu0 %v2456
    %3156 = vmatprep.subr.bf16.mxu0 %v2451
    %3157 = vmatpush1.bf16.msra.mxu0 %v2450
    %3158 = vmatprep.subr.bf16.mxu0 %v2445
    %3159 = vmatpush1.bf16.msra.mxu0 %v2444
    %3160 = vmatprep.subr.bf16.mxu0 %v2439
    %3161 = vmatpush1.bf16.msra.mxu0 %v2438
    %3162 = vmatprep.subr.bf16.mxu0 %v2529
    %3163 = vmatpush2.bf16.msra.mxu0 %v2528
    %3164 = vmatprep.subr.bf16.mxu0 %v2523
    %3165 = vmatpush2.bf16.msra.mxu0 %v2522
    %3166 = vmatprep.subr.bf16.mxu0 %v2517
    %3167 = vmatpush2.bf16.msra.mxu0 %v2516
    %3168 = vmatprep.subr.bf16.mxu0 %v2511
    %3169 = vmatpush2.bf16.msra.mxu0 %v2510
    %3170 = vmatprep.subr.bf16.mxu0 %v2505
    %3171 = vmatpush2.bf16.msra.mxu0 %v2504
    %3172 = vmatprep.subr.bf16.mxu0 %v2499
    %3173 = vmatpush2.bf16.msra.mxu0 %v2498
    %3174 = vmatprep.subr.bf16.mxu0 %v2493
    %3175 = vmatpush2.bf16.msra.mxu0 %v2492
    %3176 = vmatprep.subr.bf16.mxu0 %v2487
    %3177 = vmatpush2.bf16.msra.mxu0 %v2486
    %3178 = vmatprep.mubr.bf16.mxu0 %v1369
    %3179 = vmatmul.mubr.bf16.gmra.mxu0 %v1355
    %v3180 = vpop.f32.mrf.mxu0
    %v3181 = vadd.f32 %v3140, %v3180
    %v3182 = vpop.f32.mrf.mxu0
    %v3183 = vadd.f32 %v3142, %v3182
    %v3184 = vpop.f32.mrf.mxu0
    %v3185 = vpop.f32.mrf.mxu0
    %3186 = vdwg.mxu0
    %v3187 = vtanh.pop %v2935
    %v3188 = vtanh.pop %v2937
    %v3189 = vtanh.pop %v3058
    %v3190 = vtanh.pop %v3060
    %v3191 = vtanh.pop %v3181
    %v3192 = vtanh.pop %v3183
    %s3193 = smul.u32 4, 96
    %s3194 = smul.u32 %s3193, 8
    %s3195 = sshll.u32 %s3194, 4
    %3196 = dma.done [#allocation4], %s3195
    %v3197 = vpack.c.bf16 %v3187, %v3187
    %v3198 = vpack.c.bf16 %v3188, %v3188
    %v3199 = vpack.c.bf16 %v3189, %v3189
    %v3200 = vpack.c.bf16 %v3190, %v3190
    %v3201 = vpack.c.bf16 %v3191, %v3191
    %v3202 = vpack.c.bf16 %v3192, %v3192
    %v3203 = vld [vmem:[#allocation2] sm:$0xff]
    %v3204 = vld [vmem:[#allocation2 + $0x8] sm:$0xff]
    %v3205 = vld [vmem:[#allocation2 + $0x10] sm:$0xff]
    %v3206 = vld [vmem:[#allocation2 + $0x18] sm:$0xff]
    %v3207 = vld [vmem:[#allocation2 + $0x20] sm:$0xff]
    %v3208 = vld [vmem:[#allocation2 + $0x28] sm:$0xff]
    %v3209 = vld [vmem:[#allocation2 + $0x30] sm:$0xff]
    %v3210 = vld [vmem:[#allocation2 + $0x38] sm:$0xff]
    %v3211 = vld [vmem:[#allocation2 + $0x40] sm:$0xff]
    %v3212 = vld [vmem:[#allocation2 + $0x48] sm:$0xff]
    %v3213 = vld [vmem:[#allocation2 + $0x50] sm:$0xff]
    %v3214 = vld [vmem:[#allocation2 + $0x58] sm:$0xff]
    %v3215 = vld [vmem:[#allocation2 + $0x60] sm:$0xff]
    %v3216 = vld [vmem:[#allocation2 + $0x68] sm:$0xff]
    %v3217 = vld [vmem:[#allocation2 + $0x70] sm:$0xff]
    %v3218 = vld [vmem:[#allocation2 + $0x78] sm:$0xff]
    %v3219 = vld [vmem:[#allocation2 + $0x80] sm:$0xff]
    %v3220 = vld [vmem:[#allocation2 + $0x88] sm:$0xff]
    %v3221 = vld [vmem:[#allocation2 + $0x90] sm:$0xff]
    %v3222 = vld [vmem:[#allocation2 + $0x98] sm:$0xff]
    %v3223 = vld [vmem:[#allocation2 + $0xa0] sm:$0xff]
    %v3224 = vld [vmem:[#allocation2 + $0xa8] sm:$0xff]
    %v3225 = vld [vmem:[#allocation2 + $0xb0] sm:$0xff]
    %v3226 = vld [vmem:[#allocation2 + $0xb8] sm:$0xff]
    %v3227 = vld [vmem:[#allocation2 + $0xc0] sm:$0xff]
    %v3228 = vld [vmem:[#allocation2 + $0xc8] sm:$0xff]
    %v3229 = vld [vmem:[#allocation2 + $0xd0] sm:$0xff]
    %v3230 = vld [vmem:[#allocation2 + $0xd8] sm:$0xff]
    %v3231 = vld [vmem:[#allocation2 + $0xe0] sm:$0xff]
    %v3232 = vld [vmem:[#allocation2 + $0xe8] sm:$0xff]
    %v3233 = vld [vmem:[#allocation2 + $0xf0] sm:$0xff]
    %v3234 = vld [vmem:[#allocation2 + $0xf8] sm:$0xff]
    %v3235 = vld [vmem:[#allocation2 + $0x100] sm:$0xff]
    %v3236 = vld [vmem:[#allocation2 + $0x108] sm:$0xff]
    %v3237 = vld [vmem:[#allocation2 + $0x110] sm:$0xff]
    %v3238 = vld [vmem:[#allocation2 + $0x118] sm:$0xff]
    %v3239 = vld [vmem:[#allocation2 + $0x120] sm:$0xff]
    %v3240 = vld [vmem:[#allocation2 + $0x128] sm:$0xff]
    %v3241 = vld [vmem:[#allocation2 + $0x130] sm:$0xff]
    %v3242 = vld [vmem:[#allocation2 + $0x138] sm:$0xff]
    %v3243 = vld [vmem:[#allocation2 + $0x140] sm:$0xff]
    %v3244 = vld [vmem:[#allocation2 + $0x148] sm:$0xff]
    %v3245 = vld [vmem:[#allocation2 + $0x150] sm:$0xff]
    %v3246 = vld [vmem:[#allocation2 + $0x158] sm:$0xff]
    %v3247 = vld [vmem:[#allocation2 + $0x160] sm:$0xff]
    %v3248 = vld [vmem:[#allocation2 + $0x168] sm:$0xff]
    %v3249 = vld [vmem:[#allocation2 + $0x170] sm:$0xff]
    %v3250 = vld [vmem:[#allocation2 + $0x178] sm:$0xff]
    %v3251 = vld [vmem:[#allocation2 + $0x180] sm:$0xff]
    %v3252 = vld [vmem:[#allocation2 + $0x188] sm:$0xff]
    %v3253 = vld [vmem:[#allocation2 + $0x190] sm:$0xff]
    %v3254 = vld [vmem:[#allocation2 + $0x198] sm:$0xff]
    %v3255 = vld [vmem:[#allocation2 + $0x1a0] sm:$0xff]
    %v3256 = vld [vmem:[#allocation2 + $0x1a8] sm:$0xff]
    %v3257 = vld [vmem:[#allocation2 + $0x1b0] sm:$0xff]
    %v3258 = vld [vmem:[#allocation2 + $0x1b8] sm:$0xff]
    %v3259 = vld [vmem:[#allocation2 + $0x1c0] sm:$0xff]
    %v3260 = vld [vmem:[#allocation2 + $0x1c8] sm:$0xff]
    %v3261 = vld [vmem:[#allocation2 + $0x1d0] sm:$0xff]
    %v3262 = vld [vmem:[#allocation2 + $0x1d8] sm:$0xff]
    %v3263 = vld [vmem:[#allocation2 + $0x1e0] sm:$0xff]
    %v3264 = vld [vmem:[#allocation2 + $0x1e8] sm:$0xff]
    %v3265 = vld [vmem:[#allocation2 + $0x1f0] sm:$0xff]
    %v3266 = vld [vmem:[#allocation2 + $0x1f8] sm:$0xff]
    %v3267 = vld [vmem:[#allocation2 + $0x200] sm:$0xff]
    %v3268 = vld [vmem:[#allocation2 + $0x208] sm:$0xff]
    %v3269 = vld [vmem:[#allocation2 + $0x210] sm:$0xff]
    %v3270 = vld [vmem:[#allocation2 + $0x218] sm:$0xff]
    %v3271 = vld [vmem:[#allocation2 + $0x220] sm:$0xff]
    %v3272 = vld [vmem:[#allocation2 + $0x228] sm:$0xff]
    %v3273 = vld [vmem:[#allocation2 + $0x230] sm:$0xff]
    %v3274 = vld [vmem:[#allocation2 + $0x238] sm:$0xff]
    %v3275 = vld [vmem:[#allocation2 + $0x240] sm:$0xff]
    %v3276 = vld [vmem:[#allocation2 + $0x248] sm:$0xff]
    %v3277 = vld [vmem:[#allocation2 + $0x250] sm:$0xff]
    %v3278 = vld [vmem:[#allocation2 + $0x258] sm:$0xff]
    %v3279 = vld [vmem:[#allocation2 + $0x260] sm:$0xff]
    %v3280 = vld [vmem:[#allocation2 + $0x268] sm:$0xff]
    %v3281 = vld [vmem:[#allocation2 + $0x270] sm:$0xff]
    %v3282 = vld [vmem:[#allocation2 + $0x278] sm:$0xff]
    %v3283 = vld [vmem:[#allocation2 + $0x280] sm:$0xff]
    %v3284 = vld [vmem:[#allocation2 + $0x288] sm:$0xff]
    %v3285 = vld [vmem:[#allocation2 + $0x290] sm:$0xff]
    %v3286 = vld [vmem:[#allocation2 + $0x298] sm:$0xff]
    %v3287 = vld [vmem:[#allocation2 + $0x2a0] sm:$0xff]
    %v3288 = vld [vmem:[#allocation2 + $0x2a8] sm:$0xff]
    %v3289 = vld [vmem:[#allocation2 + $0x2b0] sm:$0xff]
    %v3290 = vld [vmem:[#allocation2 + $0x2b8] sm:$0xff]
    %v3291 = vld [vmem:[#allocation2 + $0x2c0] sm:$0xff]
    %v3292 = vld [vmem:[#allocation2 + $0x2c8] sm:$0xff]
    %v3293 = vld [vmem:[#allocation2 + $0x2d0] sm:$0xff]
    %v3294 = vld [vmem:[#allocation2 + $0x2d8] sm:$0xff]
    %v3295 = vld [vmem:[#allocation2 + $0x2e0] sm:$0xff]
    %v3296 = vld [vmem:[#allocation2 + $0x2e8] sm:$0xff]
    %v3297 = vld [vmem:[#allocation2 + $0x2f0] sm:$0xff]
    %v3298 = vld [vmem:[#allocation2 + $0x2f8] sm:$0xff]
    %v3299 = vld [vmem:[#allocation2 + $0x300] sm:$0xff]
    %v3300 = vld [vmem:[#allocation2 + $0x308] sm:$0xff]
    %v3301 = vld [vmem:[#allocation2 + $0x310] sm:$0xff]
    %v3302 = vld [vmem:[#allocation2 + $0x318] sm:$0xff]
    %v3303 = vld [vmem:[#allocation2 + $0x320] sm:$0xff]
    %v3304 = vld [vmem:[#allocation2 + $0x328] sm:$0xff]
    %v3305 = vld [vmem:[#allocation2 + $0x330] sm:$0xff]
    %v3306 = vld [vmem:[#allocation2 + $0x338] sm:$0xff]
    %v3307 = vld [vmem:[#allocation2 + $0x340] sm:$0xff]
    %v3308 = vld [vmem:[#allocation2 + $0x348] sm:$0xff]
    %v3309 = vld [vmem:[#allocation2 + $0x350] sm:$0xff]
    %v3310 = vld [vmem:[#allocation2 + $0x358] sm:$0xff]
    %v3311 = vld [vmem:[#allocation2 + $0x360] sm:$0xff]
    %v3312 = vld [vmem:[#allocation2 + $0x368] sm:$0xff]
    %v3313 = vld [vmem:[#allocation2 + $0x370] sm:$0xff]
    %v3314 = vld [vmem:[#allocation2 + $0x378] sm:$0xff]
    %v3315 = vld [vmem:[#allocation2 + $0x380] sm:$0xff]
    %v3316 = vld [vmem:[#allocation2 + $0x388] sm:$0xff]
    %v3317 = vld [vmem:[#allocation2 + $0x390] sm:$0xff]
    %v3318 = vld [vmem:[#allocation2 + $0x398] sm:$0xff]
    %v3319 = vld [vmem:[#allocation2 + $0x3a0] sm:$0xff]
    %v3320 = vld [vmem:[#allocation2 + $0x3a8] sm:$0xff]
    %v3321 = vld [vmem:[#allocation2 + $0x3b0] sm:$0xff]
    %v3322 = vld [vmem:[#allocation2 + $0x3b8] sm:$0xff]
    %v3323 = vld [vmem:[#allocation2 + $0x3c0] sm:$0xff]
    %v3324 = vld [vmem:[#allocation2 + $0x3c8] sm:$0xff]
    %v3325 = vld [vmem:[#allocation2 + $0x3d0] sm:$0xff]
    %v3326 = vld [vmem:[#allocation2 + $0x3d8] sm:$0xff]
    %v3327 = vld [vmem:[#allocation2 + $0x3e0] sm:$0xff]
    %v3328 = vld [vmem:[#allocation2 + $0x3e8] sm:$0xff]
    %v3329 = vld [vmem:[#allocation2 + $0x3f0] sm:$0xff]
    %v3330 = vld [vmem:[#allocation2 + $0x3f8] sm:$0xff]
    %v3331 = vld [vmem:[#allocation2 + $0x400] sm:$0xff]
    %v3332 = vld [vmem:[#allocation2 + $0x408] sm:$0xff]
    %v3333 = vld [vmem:[#allocation2 + $0x410] sm:$0xff]
    %v3334 = vld [vmem:[#allocation2 + $0x418] sm:$0xff]
    %v3335 = vld [vmem:[#allocation2 + $0x420] sm:$0xff]
    %v3336 = vld [vmem:[#allocation2 + $0x428] sm:$0xff]
    %v3337 = vld [vmem:[#allocation2 + $0x430] sm:$0xff]
    %v3338 = vld [vmem:[#allocation2 + $0x438] sm:$0xff]
    %v3339 = vld [vmem:[#allocation2 + $0x440] sm:$0xff]
    %v3340 = vld [vmem:[#allocation2 + $0x448] sm:$0xff]
    %v3341 = vld [vmem:[#allocation2 + $0x450] sm:$0xff]
    %v3342 = vld [vmem:[#allocation2 + $0x458] sm:$0xff]
    %v3343 = vld [vmem:[#allocation2 + $0x460] sm:$0xff]
    %v3344 = vld [vmem:[#allocation2 + $0x468] sm:$0xff]
    %v3345 = vld [vmem:[#allocation2 + $0x470] sm:$0xff]
    %v3346 = vld [vmem:[#allocation2 + $0x478] sm:$0xff]
    %v3347 = vld [vmem:[#allocation2 + $0x480] sm:$0xff]
    %v3348 = vld [vmem:[#allocation2 + $0x488] sm:$0xff]
    %v3349 = vld [vmem:[#allocation2 + $0x490] sm:$0xff]
    %v3350 = vld [vmem:[#allocation2 + $0x498] sm:$0xff]
    %v3351 = vld [vmem:[#allocation2 + $0x4a0] sm:$0xff]
    %v3352 = vld [vmem:[#allocation2 + $0x4a8] sm:$0xff]
    %v3353 = vld [vmem:[#allocation2 + $0x4b0] sm:$0xff]
    %v3354 = vld [vmem:[#allocation2 + $0x4b8] sm:$0xff]
    %v3355 = vld [vmem:[#allocation2 + $0x4c0] sm:$0xff]
    %v3356 = vld [vmem:[#allocation2 + $0x4c8] sm:$0xff]
    %v3357 = vld [vmem:[#allocation2 + $0x4d0] sm:$0xff]
    %v3358 = vld [vmem:[#allocation2 + $0x4d8] sm:$0xff]
    %v3359 = vld [vmem:[#allocation2 + $0x4e0] sm:$0xff]
    %v3360 = vld [vmem:[#allocation2 + $0x4e8] sm:$0xff]
    %v3361 = vld [vmem:[#allocation2 + $0x4f0] sm:$0xff]
    %v3362 = vld [vmem:[#allocation2 + $0x4f8] sm:$0xff]
    %v3363 = vld [vmem:[#allocation2 + $0x500] sm:$0xff]
    %v3364 = vld [vmem:[#allocation2 + $0x508] sm:$0xff]
    %v3365 = vld [vmem:[#allocation2 + $0x510] sm:$0xff]
    %v3366 = vld [vmem:[#allocation2 + $0x518] sm:$0xff]
    %v3367 = vld [vmem:[#allocation2 + $0x520] sm:$0xff]
    %v3368 = vld [vmem:[#allocation2 + $0x528] sm:$0xff]
    %v3369 = vld [vmem:[#allocation2 + $0x530] sm:$0xff]
    %v3370 = vld [vmem:[#allocation2 + $0x538] sm:$0xff]
    %v3371 = vld [vmem:[#allocation2 + $0x540] sm:$0xff]
    %v3372 = vld [vmem:[#allocation2 + $0x548] sm:$0xff]
    %v3373 = vld [vmem:[#allocation2 + $0x550] sm:$0xff]
    %v3374 = vld [vmem:[#allocation2 + $0x558] sm:$0xff]
    %v3375 = vld [vmem:[#allocation2 + $0x560] sm:$0xff]
    %v3376 = vld [vmem:[#allocation2 + $0x568] sm:$0xff]
    %v3377 = vld [vmem:[#allocation2 + $0x570] sm:$0xff]
    %v3378 = vld [vmem:[#allocation2 + $0x578] sm:$0xff]
    %v3379 = vld [vmem:[#allocation2 + $0x580] sm:$0xff]
    %v3380 = vld [vmem:[#allocation2 + $0x588] sm:$0xff]
    %v3381 = vld [vmem:[#allocation2 + $0x590] sm:$0xff]
    %v3382 = vld [vmem:[#allocation2 + $0x598] sm:$0xff]
    %v3383 = vld [vmem:[#allocation2 + $0x5a0] sm:$0xff]
    %v3384 = vld [vmem:[#allocation2 + $0x5a8] sm:$0xff]
    %v3385 = vld [vmem:[#allocation2 + $0x5b0] sm:$0xff]
    %v3386 = vld [vmem:[#allocation2 + $0x5b8] sm:$0xff]
    %v3387 = vld [vmem:[#allocation2 + $0x5c0] sm:$0xff]
    %v3388 = vld [vmem:[#allocation2 + $0x5c8] sm:$0xff]
    %v3389 = vld [vmem:[#allocation2 + $0x5d0] sm:$0xff]
    %v3390 = vld [vmem:[#allocation2 + $0x5d8] sm:$0xff]
    %v3391 = vld [vmem:[#allocation2 + $0x5e0] sm:$0xff]
    %v3392 = vld [vmem:[#allocation2 + $0x5e8] sm:$0xff]
    %v3393 = vld [vmem:[#allocation2 + $0x5f0] sm:$0xff]
    %v3394 = vld [vmem:[#allocation2 + $0x5f8] sm:$0xff]
    %v3395 = vld [vmem:[#allocation2 + $0x600] sm:$0xff]
    %v3396 = vld [vmem:[#allocation2 + $0x608] sm:$0xff]
    %v3397 = vld [vmem:[#allocation2 + $0x610] sm:$0xff]
    %v3398 = vld [vmem:[#allocation2 + $0x618] sm:$0xff]
    %v3399 = vld [vmem:[#allocation2 + $0x620] sm:$0xff]
    %v3400 = vld [vmem:[#allocation2 + $0x628] sm:$0xff]
    %v3401 = vld [vmem:[#allocation2 + $0x630] sm:$0xff]
    %v3402 = vld [vmem:[#allocation2 + $0x638] sm:$0xff]
    %v3403 = vld [vmem:[#allocation2 + $0x640] sm:$0xff]
    %v3404 = vld [vmem:[#allocation2 + $0x648] sm:$0xff]
    %v3405 = vld [vmem:[#allocation2 + $0x650] sm:$0xff]
    %v3406 = vld [vmem:[#allocation2 + $0x658] sm:$0xff]
    %v3407 = vld [vmem:[#allocation2 + $0x660] sm:$0xff]
    %v3408 = vld [vmem:[#allocation2 + $0x668] sm:$0xff]
    %v3409 = vld [vmem:[#allocation2 + $0x670] sm:$0xff]
    %v3410 = vld [vmem:[#allocation2 + $0x678] sm:$0xff]
    %v3411 = vld [vmem:[#allocation2 + $0x680] sm:$0xff]
    %v3412 = vld [vmem:[#allocation2 + $0x688] sm:$0xff]
    %v3413 = vld [vmem:[#allocation2 + $0x690] sm:$0xff]
    %v3414 = vld [vmem:[#allocation2 + $0x698] sm:$0xff]
    %v3415 = vld [vmem:[#allocation2 + $0x6a0] sm:$0xff]
    %v3416 = vld [vmem:[#allocation2 + $0x6a8] sm:$0xff]
    %v3417 = vld [vmem:[#allocation2 + $0x6b0] sm:$0xff]
    %v3418 = vld [vmem:[#allocation2 + $0x6b8] sm:$0xff]
    %v3419 = vld [vmem:[#allocation2 + $0x6c0] sm:$0xff]
    %v3420 = vld [vmem:[#allocation2 + $0x6c8] sm:$0xff]
    %v3421 = vld [vmem:[#allocation2 + $0x6d0] sm:$0xff]
    %v3422 = vld [vmem:[#allocation2 + $0x6d8] sm:$0xff]
    %v3423 = vld [vmem:[#allocation2 + $0x6e0] sm:$0xff]
    %v3424 = vld [vmem:[#allocation2 + $0x6e8] sm:$0xff]
    %v3425 = vld [vmem:[#allocation2 + $0x6f0] sm:$0xff]
    %v3426 = vld [vmem:[#allocation2 + $0x6f8] sm:$0xff]
    %v3427 = vld [vmem:[#allocation2 + $0x700] sm:$0xff]
    %v3428 = vld [vmem:[#allocation2 + $0x708] sm:$0xff]
    %v3429 = vld [vmem:[#allocation2 + $0x710] sm:$0xff]
    %v3430 = vld [vmem:[#allocation2 + $0x718] sm:$0xff]
    %v3431 = vld [vmem:[#allocation2 + $0x720] sm:$0xff]
    %v3432 = vld [vmem:[#allocation2 + $0x728] sm:$0xff]
    %v3433 = vld [vmem:[#allocation2 + $0x730] sm:$0xff]
    %v3434 = vld [vmem:[#allocation2 + $0x738] sm:$0xff]
    %v3435 = vld [vmem:[#allocation2 + $0x740] sm:$0xff]
    %v3436 = vld [vmem:[#allocation2 + $0x748] sm:$0xff]
    %v3437 = vld [vmem:[#allocation2 + $0x750] sm:$0xff]
    %v3438 = vld [vmem:[#allocation2 + $0x758] sm:$0xff]
    %v3439 = vld [vmem:[#allocation2 + $0x760] sm:$0xff]
    %v3440 = vld [vmem:[#allocation2 + $0x768] sm:$0xff]
    %v3441 = vld [vmem:[#allocation2 + $0x770] sm:$0xff]
    %v3442 = vld [vmem:[#allocation2 + $0x778] sm:$0xff]
    %v3443 = vld [vmem:[#allocation2 + $0x780] sm:$0xff]
    %v3444 = vld [vmem:[#allocation2 + $0x788] sm:$0xff]
    %v3445 = vld [vmem:[#allocation2 + $0x790] sm:$0xff]
    %v3446 = vld [vmem:[#allocation2 + $0x798] sm:$0xff]
    %v3447 = vld [vmem:[#allocation2 + $0x7a0] sm:$0xff]
    %v3448 = vld [vmem:[#allocation2 + $0x7a8] sm:$0xff]
    %v3449 = vld [vmem:[#allocation2 + $0x7b0] sm:$0xff]
    %v3450 = vld [vmem:[#allocation2 + $0x7b8] sm:$0xff]
    %v3451 = vld [vmem:[#allocation2 + $0x7c0] sm:$0xff]
    %v3452 = vld [vmem:[#allocation2 + $0x7c8] sm:$0xff]
    %v3453 = vld [vmem:[#allocation2 + $0x7d0] sm:$0xff]
    %v3454 = vld [vmem:[#allocation2 + $0x7d8] sm:$0xff]
    %v3455 = vld [vmem:[#allocation2 + $0x7e0] sm:$0xff]
    %v3456 = vld [vmem:[#allocation2 + $0x7e8] sm:$0xff]
    %v3457 = vld [vmem:[#allocation2 + $0x7f0] sm:$0xff]
    %v3458 = vld [vmem:[#allocation2 + $0x7f8] sm:$0xff]
    %v3459 = vld [vmem:[#allocation2 + $0x800] sm:$0xff]
    %v3460 = vld [vmem:[#allocation2 + $0x808] sm:$0xff]
    %v3461 = vld [vmem:[#allocation2 + $0x810] sm:$0xff]
    %v3462 = vld [vmem:[#allocation2 + $0x818] sm:$0xff]
    %v3463 = vld [vmem:[#allocation2 + $0x820] sm:$0xff]
    %v3464 = vld [vmem:[#allocation2 + $0x828] sm:$0xff]
    %v3465 = vld [vmem:[#allocation2 + $0x830] sm:$0xff]
    %v3466 = vld [vmem:[#allocation2 + $0x838] sm:$0xff]
    %v3467 = vld [vmem:[#allocation2 + $0x840] sm:$0xff]
    %v3468 = vld [vmem:[#allocation2 + $0x848] sm:$0xff]
    %v3469 = vld [vmem:[#allocation2 + $0x850] sm:$0xff]
    %v3470 = vld [vmem:[#allocation2 + $0x858] sm:$0xff]
    %v3471 = vld [vmem:[#allocation2 + $0x860] sm:$0xff]
    %v3472 = vld [vmem:[#allocation2 + $0x868] sm:$0xff]
    %v3473 = vld [vmem:[#allocation2 + $0x870] sm:$0xff]
    %v3474 = vld [vmem:[#allocation2 + $0x878] sm:$0xff]
    %v3475 = vld [vmem:[#allocation2 + $0x880] sm:$0xff]
    %v3476 = vld [vmem:[#allocation2 + $0x888] sm:$0xff]
    %v3477 = vld [vmem:[#allocation2 + $0x890] sm:$0xff]
    %v3478 = vld [vmem:[#allocation2 + $0x898] sm:$0xff]
    %v3479 = vld [vmem:[#allocation2 + $0x8a0] sm:$0xff]
    %v3480 = vld [vmem:[#allocation2 + $0x8a8] sm:$0xff]
    %v3481 = vld [vmem:[#allocation2 + $0x8b0] sm:$0xff]
    %v3482 = vld [vmem:[#allocation2 + $0x8b8] sm:$0xff]
    %v3483 = vld [vmem:[#allocation2 + $0x8c0] sm:$0xff]
    %v3484 = vld [vmem:[#allocation2 + $0x8c8] sm:$0xff]
    %v3485 = vld [vmem:[#allocation2 + $0x8d0] sm:$0xff]
    %v3486 = vld [vmem:[#allocation2 + $0x8d8] sm:$0xff]
    %v3487 = vld [vmem:[#allocation2 + $0x8e0] sm:$0xff]
    %v3488 = vld [vmem:[#allocation2 + $0x8e8] sm:$0xff]
    %v3489 = vld [vmem:[#allocation2 + $0x8f0] sm:$0xff]
    %v3490 = vld [vmem:[#allocation2 + $0x8f8] sm:$0xff]
    %v3491 = vld [vmem:[#allocation2 + $0x900] sm:$0xff]
    %v3492 = vld [vmem:[#allocation2 + $0x908] sm:$0xff]
    %v3493 = vld [vmem:[#allocation2 + $0x910] sm:$0xff]
    %v3494 = vld [vmem:[#allocation2 + $0x918] sm:$0xff]
    %v3495 = vld [vmem:[#allocation2 + $0x920] sm:$0xff]
    %v3496 = vld [vmem:[#allocation2 + $0x928] sm:$0xff]
    %v3497 = vld [vmem:[#allocation2 + $0x930] sm:$0xff]
    %v3498 = vld [vmem:[#allocation2 + $0x938] sm:$0xff]
    %v3499 = vld [vmem:[#allocation2 + $0x940] sm:$0xff]
    %v3500 = vld [vmem:[#allocation2 + $0x948] sm:$0xff]
    %v3501 = vld [vmem:[#allocation2 + $0x950] sm:$0xff]
    %v3502 = vld [vmem:[#allocation2 + $0x958] sm:$0xff]
    %v3503 = vld [vmem:[#allocation2 + $0x960] sm:$0xff]
    %v3504 = vld [vmem:[#allocation2 + $0x968] sm:$0xff]
    %v3505 = vld [vmem:[#allocation2 + $0x970] sm:$0xff]
    %v3506 = vld [vmem:[#allocation2 + $0x978] sm:$0xff]
    %v3507 = vld [vmem:[#allocation2 + $0x980] sm:$0xff]
    %v3508 = vld [vmem:[#allocation2 + $0x988] sm:$0xff]
    %v3509 = vld [vmem:[#allocation2 + $0x990] sm:$0xff]
    %v3510 = vld [vmem:[#allocation2 + $0x998] sm:$0xff]
    %v3511 = vld [vmem:[#allocation2 + $0x9a0] sm:$0xff]
    %v3512 = vld [vmem:[#allocation2 + $0x9a8] sm:$0xff]
    %v3513 = vld [vmem:[#allocation2 + $0x9b0] sm:$0xff]
    %v3514 = vld [vmem:[#allocation2 + $0x9b8] sm:$0xff]
    %v3515 = vld [vmem:[#allocation2 + $0x9c0] sm:$0xff]
    %v3516 = vld [vmem:[#allocation2 + $0x9c8] sm:$0xff]
    %v3517 = vld [vmem:[#allocation2 + $0x9d0] sm:$0xff]
    %v3518 = vld [vmem:[#allocation2 + $0x9d8] sm:$0xff]
    %v3519 = vld [vmem:[#allocation2 + $0x9e0] sm:$0xff]
    %v3520 = vld [vmem:[#allocation2 + $0x9e8] sm:$0xff]
    %v3521 = vld [vmem:[#allocation2 + $0x9f0] sm:$0xff]
    %v3522 = vld [vmem:[#allocation2 + $0x9f8] sm:$0xff]
    %v3523 = vld [vmem:[#allocation2 + $0xa00] sm:$0xff]
    %v3524 = vld [vmem:[#allocation2 + $0xa08] sm:$0xff]
    %v3525 = vld [vmem:[#allocation2 + $0xa10] sm:$0xff]
    %v3526 = vld [vmem:[#allocation2 + $0xa18] sm:$0xff]
    %v3527 = vld [vmem:[#allocation2 + $0xa20] sm:$0xff]
    %v3528 = vld [vmem:[#allocation2 + $0xa28] sm:$0xff]
    %v3529 = vld [vmem:[#allocation2 + $0xa30] sm:$0xff]
    %v3530 = vld [vmem:[#allocation2 + $0xa38] sm:$0xff]
    %v3531 = vld [vmem:[#allocation2 + $0xa40] sm:$0xff]
    %v3532 = vld [vmem:[#allocation2 + $0xa48] sm:$0xff]
    %v3533 = vld [vmem:[#allocation2 + $0xa50] sm:$0xff]
    %v3534 = vld [vmem:[#allocation2 + $0xa58] sm:$0xff]
    %v3535 = vld [vmem:[#allocation2 + $0xa60] sm:$0xff]
    %v3536 = vld [vmem:[#allocation2 + $0xa68] sm:$0xff]
    %v3537 = vld [vmem:[#allocation2 + $0xa70] sm:$0xff]
    %v3538 = vld [vmem:[#allocation2 + $0xa78] sm:$0xff]
    %v3539 = vld [vmem:[#allocation2 + $0xa80] sm:$0xff]
    %v3540 = vld [vmem:[#allocation2 + $0xa88] sm:$0xff]
    %v3541 = vld [vmem:[#allocation2 + $0xa90] sm:$0xff]
    %v3542 = vld [vmem:[#allocation2 + $0xa98] sm:$0xff]
    %v3543 = vld [vmem:[#allocation2 + $0xaa0] sm:$0xff]
    %v3544 = vld [vmem:[#allocation2 + $0xaa8] sm:$0xff]
    %v3545 = vld [vmem:[#allocation2 + $0xab0] sm:$0xff]
    %v3546 = vld [vmem:[#allocation2 + $0xab8] sm:$0xff]
    %v3547 = vld [vmem:[#allocation2 + $0xac0] sm:$0xff]
    %v3548 = vld [vmem:[#allocation2 + $0xac8] sm:$0xff]
    %v3549 = vld [vmem:[#allocation2 + $0xad0] sm:$0xff]
    %v3550 = vld [vmem:[#allocation2 + $0xad8] sm:$0xff]
    %v3551 = vld [vmem:[#allocation2 + $0xae0] sm:$0xff]
    %v3552 = vld [vmem:[#allocation2 + $0xae8] sm:$0xff]
    %v3553 = vld [vmem:[#allocation2 + $0xaf0] sm:$0xff]
    %v3554 = vld [vmem:[#allocation2 + $0xaf8] sm:$0xff]
    %v3555 = vld [vmem:[#allocation2 + $0xb00] sm:$0xff]
    %v3556 = vld [vmem:[#allocation2 + $0xb08] sm:$0xff]
    %v3557 = vld [vmem:[#allocation2 + $0xb10] sm:$0xff]
    %v3558 = vld [vmem:[#allocation2 + $0xb18] sm:$0xff]
    %v3559 = vld [vmem:[#allocation2 + $0xb20] sm:$0xff]
    %v3560 = vld [vmem:[#allocation2 + $0xb28] sm:$0xff]
    %v3561 = vld [vmem:[#allocation2 + $0xb30] sm:$0xff]
    %v3562 = vld [vmem:[#allocation2 + $0xb38] sm:$0xff]
    %v3563 = vld [vmem:[#allocation2 + $0xb40] sm:$0xff]
    %v3564 = vld [vmem:[#allocation2 + $0xb48] sm:$0xff]
    %v3565 = vld [vmem:[#allocation2 + $0xb50] sm:$0xff]
    %v3566 = vld [vmem:[#allocation2 + $0xb58] sm:$0xff]
    %v3567 = vld [vmem:[#allocation2 + $0xb60] sm:$0xff]
    %v3568 = vld [vmem:[#allocation2 + $0xb68] sm:$0xff]
    %v3569 = vld [vmem:[#allocation2 + $0xb70] sm:$0xff]
    %v3570 = vld [vmem:[#allocation2 + $0xb78] sm:$0xff]
    %v3571 = vld [vmem:[#allocation2 + $0xb80] sm:$0xff]
    %v3572 = vld [vmem:[#allocation2 + $0xb88] sm:$0xff]
    %v3573 = vld [vmem:[#allocation2 + $0xb90] sm:$0xff]
    %v3574 = vld [vmem:[#allocation2 + $0xb98] sm:$0xff]
    %v3575 = vld [vmem:[#allocation2 + $0xba0] sm:$0xff]
    %v3576 = vld [vmem:[#allocation2 + $0xba8] sm:$0xff]
    %v3577 = vld [vmem:[#allocation2 + $0xbb0] sm:$0xff]
    %v3578 = vld [vmem:[#allocation2 + $0xbb8] sm:$0xff]
    %v3579 = vld [vmem:[#allocation2 + $0xbc0] sm:$0xff]
    %v3580 = vld [vmem:[#allocation2 + $0xbc8] sm:$0xff]
    %v3581 = vld [vmem:[#allocation2 + $0xbd0] sm:$0xff]
    %v3582 = vld [vmem:[#allocation2 + $0xbd8] sm:$0xff]
    %v3583 = vld [vmem:[#allocation2 + $0xbe0] sm:$0xff]
    %v3584 = vld [vmem:[#allocation2 + $0xbe8] sm:$0xff]
    %v3585 = vld [vmem:[#allocation2 + $0xbf0] sm:$0xff]
    %v3586 = vld [vmem:[#allocation2 + $0xbf8] sm:$0xff]
    %v3587 = vld [vmem:[%s3] sm:$0xff]
    %v3589 = vlaneseq
    %v3590 = vshrl.u32 %v3589, 7
    %v3591 = vsub.s32 0, %v3590
    %v3592 = vrot.slane %v3587, %v3591
    %v3593 = vlaneseq
    %v3594 = vshrl.u32 %v3593, 7
    %v3595 = vsub.s32 1, %v3594
    %v3596 = vrot.slane %v3587, %v3595
    %v3597 = vlaneseq
    %v3598 = vshrl.u32 %v3597, 7
    %v3599 = vsub.s32 2, %v3598
    %v3600 = vrot.slane %v3587, %v3599
    %v3601 = vlaneseq
    %v3602 = vshrl.u32 %v3601, 7
    %v3603 = vsub.s32 3, %v3602
    %v3604 = vrot.slane %v3587, %v3603
    %v3605 = vlaneseq
    %v3606 = vshrl.u32 %v3605, 7
    %v3607 = vsub.s32 4, %v3606
    %v3608 = vrot.slane %v3587, %v3607
    %v3609 = vlaneseq
    %v3610 = vshrl.u32 %v3609, 7
    %v3611 = vsub.s32 5, %v3610
    %v3612 = vrot.slane %v3587, %v3611
    %v3613 = vlaneseq
    %v3614 = vshrl.u32 %v3613, 7
    %v3615 = vsub.s32 6, %v3614
    %v3616 = vrot.slane %v3587, %v3615
    %v3617 = vlaneseq
    %v3618 = vshrl.u32 %v3617, 7
    %v3619 = vsub.s32 7, %v3618
    %v3620 = vrot.slane %v3587, %v3619
    %v4013 = vunpack.c.l.b16 %v3203
    %v4014 = vunpack.c.h.b16 %v3203
    %v4015 = vunpack.c.l.b16 %v3204
    %v4016 = vunpack.c.h.b16 %v3204
    %v4017 = vunpack.c.l.b16 %v3205
    %v4018 = vunpack.c.h.b16 %v3205
    %v4019 = vunpack.c.l.b16 %v3206
    %v4020 = vunpack.c.h.b16 %v3206
    %v4021 = vunpack.c.l.b16 %v3207
    %v4022 = vunpack.c.h.b16 %v3207
    %v4023 = vunpack.c.l.b16 %v3208
    %v4024 = vunpack.c.h.b16 %v3208
    %v4025 = vunpack.c.l.b16 %v3209
    %v4026 = vunpack.c.h.b16 %v3209
    %v4027 = vunpack.c.l.b16 %v3210
    %v4028 = vunpack.c.h.b16 %v3210
    %v4029 = vunpack.c.l.b16 %v3211
    %v4030 = vunpack.c.h.b16 %v3211
    %v4031 = vunpack.c.l.b16 %v3212
    %v4032 = vunpack.c.h.b16 %v3212
    %v4033 = vunpack.c.l.b16 %v3213
    %v4034 = vunpack.c.h.b16 %v3213
    %v4035 = vunpack.c.l.b16 %v3214
    %v4036 = vunpack.c.h.b16 %v3214
    %v4037 = vunpack.c.l.b16 %v3215
    %v4038 = vunpack.c.h.b16 %v3215
    %v4039 = vunpack.c.l.b16 %v3216
    %v4040 = vunpack.c.h.b16 %v3216
    %v4041 = vunpack.c.l.b16 %v3217
    %v4042 = vunpack.c.h.b16 %v3217
    %v4043 = vunpack.c.l.b16 %v3218
    %v4044 = vunpack.c.h.b16 %v3218
    %v4045 = vunpack.c.l.b16 %v3219
    %v4046 = vunpack.c.h.b16 %v3219
    %v4047 = vunpack.c.l.b16 %v3220
    %v4048 = vunpack.c.h.b16 %v3220
    %v4049 = vunpack.c.l.b16 %v3221
    %v4050 = vunpack.c.h.b16 %v3221
    %v4051 = vunpack.c.l.b16 %v3222
    %v4052 = vunpack.c.h.b16 %v3222
    %v4053 = vunpack.c.l.b16 %v3223
    %v4054 = vunpack.c.h.b16 %v3223
    %v4055 = vunpack.c.l.b16 %v3224
    %v4056 = vunpack.c.h.b16 %v3224
    %v4057 = vunpack.c.l.b16 %v3225
    %v4058 = vunpack.c.h.b16 %v3225
    %v4059 = vunpack.c.l.b16 %v3226
    %v4060 = vunpack.c.h.b16 %v3226
    %v4061 = vunpack.c.l.b16 %v3227
    %v4062 = vunpack.c.h.b16 %v3227
    %v4063 = vunpack.c.l.b16 %v3228
    %v4064 = vunpack.c.h.b16 %v3228
    %v4065 = vunpack.c.l.b16 %v3229
    %v4066 = vunpack.c.h.b16 %v3229
    %v4067 = vunpack.c.l.b16 %v3230
    %v4068 = vunpack.c.h.b16 %v3230
    %v4069 = vunpack.c.l.b16 %v3231
    %v4070 = vunpack.c.h.b16 %v3231
    %v4071 = vunpack.c.l.b16 %v3232
    %v4072 = vunpack.c.h.b16 %v3232
    %v4073 = vunpack.c.l.b16 %v3233
    %v4074 = vunpack.c.h.b16 %v3233
    %v4075 = vunpack.c.l.b16 %v3234
    %v4076 = vunpack.c.h.b16 %v3234
    %v4077 = vunpack.c.l.b16 %v3235
    %v4078 = vunpack.c.h.b16 %v3235
    %v4079 = vunpack.c.l.b16 %v3236
    %v4080 = vunpack.c.h.b16 %v3236
    %v4081 = vunpack.c.l.b16 %v3237
    %v4082 = vunpack.c.h.b16 %v3237
    %v4083 = vunpack.c.l.b16 %v3238
    %v4084 = vunpack.c.h.b16 %v3238
    %v4085 = vunpack.c.l.b16 %v3239
    %v4086 = vunpack.c.h.b16 %v3239
    %v4087 = vunpack.c.l.b16 %v3240
    %v4088 = vunpack.c.h.b16 %v3240
    %v4089 = vunpack.c.l.b16 %v3241
    %v4090 = vunpack.c.h.b16 %v3241
    %v4091 = vunpack.c.l.b16 %v3242
    %v4092 = vunpack.c.h.b16 %v3242
    %v4093 = vunpack.c.l.b16 %v3243
    %v4094 = vunpack.c.h.b16 %v3243
    %v4095 = vunpack.c.l.b16 %v3244
    %v4096 = vunpack.c.h.b16 %v3244
    %v4097 = vunpack.c.l.b16 %v3245
    %v4098 = vunpack.c.h.b16 %v3245
    %v4099 = vunpack.c.l.b16 %v3246
    %v4100 = vunpack.c.h.b16 %v3246
    %v4101 = vunpack.c.l.b16 %v3247
    %v4102 = vunpack.c.h.b16 %v3247
    %v4103 = vunpack.c.l.b16 %v3248
    %v4104 = vunpack.c.h.b16 %v3248
    %v4105 = vunpack.c.l.b16 %v3249
    %v4106 = vunpack.c.h.b16 %v3249
    %v4107 = vunpack.c.l.b16 %v3250
    %v4108 = vunpack.c.h.b16 %v3250
    %v4109 = vunpack.c.l.b16 %v3251
    %v4110 = vunpack.c.h.b16 %v3251
    %v4111 = vunpack.c.l.b16 %v3252
    %v4112 = vunpack.c.h.b16 %v3252
    %v4113 = vunpack.c.l.b16 %v3253
    %v4114 = vunpack.c.h.b16 %v3253
    %v4115 = vunpack.c.l.b16 %v3254
    %v4116 = vunpack.c.h.b16 %v3254
    %v4117 = vunpack.c.l.b16 %v3255
    %v4118 = vunpack.c.h.b16 %v3255
    %v4119 = vunpack.c.l.b16 %v3256
    %v4120 = vunpack.c.h.b16 %v3256
    %v4121 = vunpack.c.l.b16 %v3257
    %v4122 = vunpack.c.h.b16 %v3257
    %v4123 = vunpack.c.l.b16 %v3258
    %v4124 = vunpack.c.h.b16 %v3258
    %v4125 = vunpack.c.l.b16 %v3259
    %v4126 = vunpack.c.h.b16 %v3259
    %v4127 = vunpack.c.l.b16 %v3260
    %v4128 = vunpack.c.h.b16 %v3260
    %v4129 = vunpack.c.l.b16 %v3261
    %v4130 = vunpack.c.h.b16 %v3261
    %v4131 = vunpack.c.l.b16 %v3262
    %v4132 = vunpack.c.h.b16 %v3262
    %v4133 = vunpack.c.l.b16 %v3263
    %v4134 = vunpack.c.h.b16 %v3263
    %v4135 = vunpack.c.l.b16 %v3264
    %v4136 = vunpack.c.h.b16 %v3264
    %v4137 = vunpack.c.l.b16 %v3265
    %v4138 = vunpack.c.h.b16 %v3265
    %v4139 = vunpack.c.l.b16 %v3266
    %v4140 = vunpack.c.h.b16 %v3266
    %v4141 = vunpack.c.l.b16 %v3267
    %v4142 = vunpack.c.h.b16 %v3267
    %v4143 = vunpack.c.l.b16 %v3268
    %v4144 = vunpack.c.h.b16 %v3268
    %v4145 = vunpack.c.l.b16 %v3269
    %v4146 = vunpack.c.h.b16 %v3269
    %v4147 = vunpack.c.l.b16 %v3270
    %v4148 = vunpack.c.h.b16 %v3270
    %v4149 = vunpack.c.l.b16 %v3271
    %v4150 = vunpack.c.h.b16 %v3271
    %v4151 = vunpack.c.l.b16 %v3272
    %v4152 = vunpack.c.h.b16 %v3272
    %v4153 = vunpack.c.l.b16 %v3273
    %v4154 = vunpack.c.h.b16 %v3273
    %v4155 = vunpack.c.l.b16 %v3274
    %v4156 = vunpack.c.h.b16 %v3274
    %v4157 = vunpack.c.l.b16 %v3275
    %v4158 = vunpack.c.h.b16 %v3275
    %v4159 = vunpack.c.l.b16 %v3276
    %v4160 = vunpack.c.h.b16 %v3276
    %v4161 = vunpack.c.l.b16 %v3277
    %v4162 = vunpack.c.h.b16 %v3277
    %v4163 = vunpack.c.l.b16 %v3278
    %v4164 = vunpack.c.h.b16 %v3278
    %v4165 = vunpack.c.l.b16 %v3279
    %v4166 = vunpack.c.h.b16 %v3279
    %v4167 = vunpack.c.l.b16 %v3280
    %v4168 = vunpack.c.h.b16 %v3280
    %v4169 = vunpack.c.l.b16 %v3281
    %v4170 = vunpack.c.h.b16 %v3281
    %v4171 = vunpack.c.l.b16 %v3282
    %v4172 = vunpack.c.h.b16 %v3282
    %v4173 = vunpack.c.l.b16 %v3283
    %v4174 = vunpack.c.h.b16 %v3283
    %v4175 = vunpack.c.l.b16 %v3284
    %v4176 = vunpack.c.h.b16 %v3284
    %v4177 = vunpack.c.l.b16 %v3285
    %v4178 = vunpack.c.h.b16 %v3285
    %v4179 = vunpack.c.l.b16 %v3286
    %v4180 = vunpack.c.h.b16 %v3286
    %v4181 = vunpack.c.l.b16 %v3287
    %v4182 = vunpack.c.h.b16 %v3287
    %v4183 = vunpack.c.l.b16 %v3288
    %v4184 = vunpack.c.h.b16 %v3288
    %v4185 = vunpack.c.l.b16 %v3289
    %v4186 = vunpack.c.h.b16 %v3289
    %v4187 = vunpack.c.l.b16 %v3290
    %v4188 = vunpack.c.h.b16 %v3290
    %v4189 = vunpack.c.l.b16 %v3291
    %v4190 = vunpack.c.h.b16 %v3291
    %v4191 = vunpack.c.l.b16 %v3292
    %v4192 = vunpack.c.h.b16 %v3292
    %v4193 = vunpack.c.l.b16 %v3293
    %v4194 = vunpack.c.h.b16 %v3293
    %v4195 = vunpack.c.l.b16 %v3294
    %v4196 = vunpack.c.h.b16 %v3294
    %v4197 = vunpack.c.l.b16 %v3295
    %v4198 = vunpack.c.h.b16 %v3295
    %v4199 = vunpack.c.l.b16 %v3296
    %v4200 = vunpack.c.h.b16 %v3296
    %v4201 = vunpack.c.l.b16 %v3297
    %v4202 = vunpack.c.h.b16 %v3297
    %v4203 = vunpack.c.l.b16 %v3298
    %v4204 = vunpack.c.h.b16 %v3298
    %v4205 = vunpack.c.l.b16 %v3299
    %v4206 = vunpack.c.h.b16 %v3299
    %v4207 = vunpack.c.l.b16 %v3300
    %v4208 = vunpack.c.h.b16 %v3300
    %v4209 = vunpack.c.l.b16 %v3301
    %v4210 = vunpack.c.h.b16 %v3301
    %v4211 = vunpack.c.l.b16 %v3302
    %v4212 = vunpack.c.h.b16 %v3302
    %v4213 = vunpack.c.l.b16 %v3303
    %v4214 = vunpack.c.h.b16 %v3303
    %v4215 = vunpack.c.l.b16 %v3304
    %v4216 = vunpack.c.h.b16 %v3304
    %v4217 = vunpack.c.l.b16 %v3305
    %v4218 = vunpack.c.h.b16 %v3305
    %v4219 = vunpack.c.l.b16 %v3306
    %v4220 = vunpack.c.h.b16 %v3306
    %v4221 = vunpack.c.l.b16 %v3307
    %v4222 = vunpack.c.h.b16 %v3307
    %v4223 = vunpack.c.l.b16 %v3308
    %v4224 = vunpack.c.h.b16 %v3308
    %v4225 = vunpack.c.l.b16 %v3309
    %v4226 = vunpack.c.h.b16 %v3309
    %v4227 = vunpack.c.l.b16 %v3310
    %v4228 = vunpack.c.h.b16 %v3310
    %v4229 = vunpack.c.l.b16 %v3311
    %v4230 = vunpack.c.h.b16 %v3311
    %v4231 = vunpack.c.l.b16 %v3312
    %v4232 = vunpack.c.h.b16 %v3312
    %v4233 = vunpack.c.l.b16 %v3313
    %v4234 = vunpack.c.h.b16 %v3313
    %v4235 = vunpack.c.l.b16 %v3314
    %v4236 = vunpack.c.h.b16 %v3314
    %v4237 = vunpack.c.l.b16 %v3315
    %v4238 = vunpack.c.h.b16 %v3315
    %v4239 = vunpack.c.l.b16 %v3316
    %v4240 = vunpack.c.h.b16 %v3316
    %v4241 = vunpack.c.l.b16 %v3317
    %v4242 = vunpack.c.h.b16 %v3317
    %v4243 = vunpack.c.l.b16 %v3318
    %v4244 = vunpack.c.h.b16 %v3318
    %v4245 = vunpack.c.l.b16 %v3319
    %v4246 = vunpack.c.h.b16 %v3319
    %v4247 = vunpack.c.l.b16 %v3320
    %v4248 = vunpack.c.h.b16 %v3320
    %v4249 = vunpack.c.l.b16 %v3321
    %v4250 = vunpack.c.h.b16 %v3321
    %v4251 = vunpack.c.l.b16 %v3322
    %v4252 = vunpack.c.h.b16 %v3322
    %v4253 = vunpack.c.l.b16 %v3323
    %v4254 = vunpack.c.h.b16 %v3323
    %v4255 = vunpack.c.l.b16 %v3324
    %v4256 = vunpack.c.h.b16 %v3324
    %v4257 = vunpack.c.l.b16 %v3325
    %v4258 = vunpack.c.h.b16 %v3325
    %v4259 = vunpack.c.l.b16 %v3326
    %v4260 = vunpack.c.h.b16 %v3326
    %v4261 = vunpack.c.l.b16 %v3327
    %v4262 = vunpack.c.h.b16 %v3327
    %v4263 = vunpack.c.l.b16 %v3328
    %v4264 = vunpack.c.h.b16 %v3328
    %v4265 = vunpack.c.l.b16 %v3329
    %v4266 = vunpack.c.h.b16 %v3329
    %v4267 = vunpack.c.l.b16 %v3330
    %v4268 = vunpack.c.h.b16 %v3330
    %v4269 = vunpack.c.l.b16 %v3331
    %v4270 = vunpack.c.h.b16 %v3331
    %v4271 = vunpack.c.l.b16 %v3332
    %v4272 = vunpack.c.h.b16 %v3332
    %v4273 = vunpack.c.l.b16 %v3333
    %v4274 = vunpack.c.h.b16 %v3333
    %v4275 = vunpack.c.l.b16 %v3334
    %v4276 = vunpack.c.h.b16 %v3334
    %v4277 = vunpack.c.l.b16 %v3335
    %v4278 = vunpack.c.h.b16 %v3335
    %v4279 = vunpack.c.l.b16 %v3336
    %v4280 = vunpack.c.h.b16 %v3336
    %v4281 = vunpack.c.l.b16 %v3337
    %v4282 = vunpack.c.h.b16 %v3337
    %v4283 = vunpack.c.l.b16 %v3338
    %v4284 = vunpack.c.h.b16 %v3338
    %v4285 = vunpack.c.l.b16 %v3339
    %v4286 = vunpack.c.h.b16 %v3339
    %v4287 = vunpack.c.l.b16 %v3340
    %v4288 = vunpack.c.h.b16 %v3340
    %v4289 = vunpack.c.l.b16 %v3341
    %v4290 = vunpack.c.h.b16 %v3341
    %v4291 = vunpack.c.l.b16 %v3342
    %v4292 = vunpack.c.h.b16 %v3342
    %v4293 = vunpack.c.l.b16 %v3343
    %v4294 = vunpack.c.h.b16 %v3343
    %v4295 = vunpack.c.l.b16 %v3344
    %v4296 = vunpack.c.h.b16 %v3344
    %v4297 = vunpack.c.l.b16 %v3345
    %v4298 = vunpack.c.h.b16 %v3345
    %v4299 = vunpack.c.l.b16 %v3346
    %v4300 = vunpack.c.h.b16 %v3346
    %v4301 = vunpack.c.l.b16 %v3347
    %v4302 = vunpack.c.h.b16 %v3347
    %v4303 = vunpack.c.l.b16 %v3348
    %v4304 = vunpack.c.h.b16 %v3348
    %v4305 = vunpack.c.l.b16 %v3349
    %v4306 = vunpack.c.h.b16 %v3349
    %v4307 = vunpack.c.l.b16 %v3350
    %v4308 = vunpack.c.h.b16 %v3350
    %v4309 = vunpack.c.l.b16 %v3351
    %v4310 = vunpack.c.h.b16 %v3351
    %v4311 = vunpack.c.l.b16 %v3352
    %v4312 = vunpack.c.h.b16 %v3352
    %v4313 = vunpack.c.l.b16 %v3353
    %v4314 = vunpack.c.h.b16 %v3353
    %v4315 = vunpack.c.l.b16 %v3354
    %v4316 = vunpack.c.h.b16 %v3354
    %v4317 = vunpack.c.l.b16 %v3355
    %v4318 = vunpack.c.h.b16 %v3355
    %v4319 = vunpack.c.l.b16 %v3356
    %v4320 = vunpack.c.h.b16 %v3356
    %v4321 = vunpack.c.l.b16 %v3357
    %v4322 = vunpack.c.h.b16 %v3357
    %v4323 = vunpack.c.l.b16 %v3358
    %v4324 = vunpack.c.h.b16 %v3358
    %v4325 = vunpack.c.l.b16 %v3359
    %v4326 = vunpack.c.h.b16 %v3359
    %v4327 = vunpack.c.l.b16 %v3360
    %v4328 = vunpack.c.h.b16 %v3360
    %v4329 = vunpack.c.l.b16 %v3361
    %v4330 = vunpack.c.h.b16 %v3361
    %v4331 = vunpack.c.l.b16 %v3362
    %v4332 = vunpack.c.h.b16 %v3362
    %v4333 = vunpack.c.l.b16 %v3363
    %v4334 = vunpack.c.h.b16 %v3363
    %v4335 = vunpack.c.l.b16 %v3364
    %v4336 = vunpack.c.h.b16 %v3364
    %v4337 = vunpack.c.l.b16 %v3365
    %v4338 = vunpack.c.h.b16 %v3365
    %v4339 = vunpack.c.l.b16 %v3366
    %v4340 = vunpack.c.h.b16 %v3366
    %v4341 = vunpack.c.l.b16 %v3367
    %v4342 = vunpack.c.h.b16 %v3367
    %v4343 = vunpack.c.l.b16 %v3368
    %v4344 = vunpack.c.h.b16 %v3368
    %v4345 = vunpack.c.l.b16 %v3369
    %v4346 = vunpack.c.h.b16 %v3369
    %v4347 = vunpack.c.l.b16 %v3370
    %v4348 = vunpack.c.h.b16 %v3370
    %v4349 = vunpack.c.l.b16 %v3371
    %v4350 = vunpack.c.h.b16 %v3371
    %v4351 = vunpack.c.l.b16 %v3372
    %v4352 = vunpack.c.h.b16 %v3372
    %v4353 = vunpack.c.l.b16 %v3373
    %v4354 = vunpack.c.h.b16 %v3373
    %v4355 = vunpack.c.l.b16 %v3374
    %v4356 = vunpack.c.h.b16 %v3374
    %v4357 = vunpack.c.l.b16 %v3375
    %v4358 = vunpack.c.h.b16 %v3375
    %v4359 = vunpack.c.l.b16 %v3376
    %v4360 = vunpack.c.h.b16 %v3376
    %v4361 = vunpack.c.l.b16 %v3377
    %v4362 = vunpack.c.h.b16 %v3377
    %v4363 = vunpack.c.l.b16 %v3378
    %v4364 = vunpack.c.h.b16 %v3378
    %v4365 = vunpack.c.l.b16 %v3379
    %v4366 = vunpack.c.h.b16 %v3379
    %v4367 = vunpack.c.l.b16 %v3380
    %v4368 = vunpack.c.h.b16 %v3380
    %v4369 = vunpack.c.l.b16 %v3381
    %v4370 = vunpack.c.h.b16 %v3381
    %v4371 = vunpack.c.l.b16 %v3382
    %v4372 = vunpack.c.h.b16 %v3382
    %v4373 = vunpack.c.l.b16 %v3383
    %v4374 = vunpack.c.h.b16 %v3383
    %v4375 = vunpack.c.l.b16 %v3384
    %v4376 = vunpack.c.h.b16 %v3384
    %v4377 = vunpack.c.l.b16 %v3385
    %v4378 = vunpack.c.h.b16 %v3385
    %v4379 = vunpack.c.l.b16 %v3386
    %v4380 = vunpack.c.h.b16 %v3386
    %v4381 = vunpack.c.l.b16 %v3387
    %v4382 = vunpack.c.h.b16 %v3387
    %v4383 = vunpack.c.l.b16 %v3388
    %v4384 = vunpack.c.h.b16 %v3388
    %v4385 = vunpack.c.l.b16 %v3389
    %v4386 = vunpack.c.h.b16 %v3389
    %v4387 = vunpack.c.l.b16 %v3390
    %v4388 = vunpack.c.h.b16 %v3390
    %v4389 = vunpack.c.l.b16 %v3391
    %v4390 = vunpack.c.h.b16 %v3391
    %v4391 = vunpack.c.l.b16 %v3392
    %v4392 = vunpack.c.h.b16 %v3392
    %v4393 = vunpack.c.l.b16 %v3393
    %v4394 = vunpack.c.h.b16 %v3393
    %v4395 = vunpack.c.l.b16 %v3394
    %v4396 = vunpack.c.h.b16 %v3394
    %v4397 = vunpack.c.l.b16 %v3395
    %v4398 = vunpack.c.h.b16 %v3395
    %v4399 = vunpack.c.l.b16 %v3396
    %v4400 = vunpack.c.h.b16 %v3396
    %v4401 = vunpack.c.l.b16 %v3397
    %v4402 = vunpack.c.h.b16 %v3397
    %v4403 = vunpack.c.l.b16 %v3398
    %v4404 = vunpack.c.h.b16 %v3398
    %v4405 = vunpack.c.l.b16 %v3399
    %v4406 = vunpack.c.h.b16 %v3399
    %v4407 = vunpack.c.l.b16 %v3400
    %v4408 = vunpack.c.h.b16 %v3400
    %v4409 = vunpack.c.l.b16 %v3401
    %v4410 = vunpack.c.h.b16 %v3401
    %v4411 = vunpack.c.l.b16 %v3402
    %v4412 = vunpack.c.h.b16 %v3402
    %v4413 = vunpack.c.l.b16 %v3403
    %v4414 = vunpack.c.h.b16 %v3403
    %v4415 = vunpack.c.l.b16 %v3404
    %v4416 = vunpack.c.h.b16 %v3404
    %v4417 = vunpack.c.l.b16 %v3405
    %v4418 = vunpack.c.h.b16 %v3405
    %v4419 = vunpack.c.l.b16 %v3406
    %v4420 = vunpack.c.h.b16 %v3406
    %v4421 = vunpack.c.l.b16 %v3407
    %v4422 = vunpack.c.h.b16 %v3407
    %v4423 = vunpack.c.l.b16 %v3408
    %v4424 = vunpack.c.h.b16 %v3408
    %v4425 = vunpack.c.l.b16 %v3409
    %v4426 = vunpack.c.h.b16 %v3409
    %v4427 = vunpack.c.l.b16 %v3410
    %v4428 = vunpack.c.h.b16 %v3410
    %v4429 = vunpack.c.l.b16 %v3411
    %v4430 = vunpack.c.h.b16 %v3411
    %v4431 = vunpack.c.l.b16 %v3412
    %v4432 = vunpack.c.h.b16 %v3412
    %v4433 = vunpack.c.l.b16 %v3413
    %v4434 = vunpack.c.h.b16 %v3413
    %v4435 = vunpack.c.l.b16 %v3414
    %v4436 = vunpack.c.h.b16 %v3414
    %v4437 = vunpack.c.l.b16 %v3415
    %v4438 = vunpack.c.h.b16 %v3415
    %v4439 = vunpack.c.l.b16 %v3416
    %v4440 = vunpack.c.h.b16 %v3416
    %v4441 = vunpack.c.l.b16 %v3417
    %v4442 = vunpack.c.h.b16 %v3417
    %v4443 = vunpack.c.l.b16 %v3418
    %v4444 = vunpack.c.h.b16 %v3418
    %v4445 = vunpack.c.l.b16 %v3419
    %v4446 = vunpack.c.h.b16 %v3419
    %v4447 = vunpack.c.l.b16 %v3420
    %v4448 = vunpack.c.h.b16 %v3420
    %v4449 = vunpack.c.l.b16 %v3421
    %v4450 = vunpack.c.h.b16 %v3421
    %v4451 = vunpack.c.l.b16 %v3422
    %v4452 = vunpack.c.h.b16 %v3422
    %v4453 = vunpack.c.l.b16 %v3423
    %v4454 = vunpack.c.h.b16 %v3423
    %v4455 = vunpack.c.l.b16 %v3424
    %v4456 = vunpack.c.h.b16 %v3424
    %v4457 = vunpack.c.l.b16 %v3425
    %v4458 = vunpack.c.h.b16 %v3425
    %v4459 = vunpack.c.l.b16 %v3426
    %v4460 = vunpack.c.h.b16 %v3426
    %v4461 = vunpack.c.l.b16 %v3427
    %v4462 = vunpack.c.h.b16 %v3427
    %v4463 = vunpack.c.l.b16 %v3428
    %v4464 = vunpack.c.h.b16 %v3428
    %v4465 = vunpack.c.l.b16 %v3429
    %v4466 = vunpack.c.h.b16 %v3429
    %v4467 = vunpack.c.l.b16 %v3430
    %v4468 = vunpack.c.h.b16 %v3430
    %v4469 = vunpack.c.l.b16 %v3431
    %v4470 = vunpack.c.h.b16 %v3431
    %v4471 = vunpack.c.l.b16 %v3432
    %v4472 = vunpack.c.h.b16 %v3432
    %v4473 = vunpack.c.l.b16 %v3433
    %v4474 = vunpack.c.h.b16 %v3433
    %v4475 = vunpack.c.l.b16 %v3434
    %v4476 = vunpack.c.h.b16 %v3434
    %v4477 = vunpack.c.l.b16 %v3435
    %v4478 = vunpack.c.h.b16 %v3435
    %v4479 = vunpack.c.l.b16 %v3436
    %v4480 = vunpack.c.h.b16 %v3436
    %v4481 = vunpack.c.l.b16 %v3437
    %v4482 = vunpack.c.h.b16 %v3437
    %v4483 = vunpack.c.l.b16 %v3438
    %v4484 = vunpack.c.h.b16 %v3438
    %v4485 = vunpack.c.l.b16 %v3439
    %v4486 = vunpack.c.h.b16 %v3439
    %v4487 = vunpack.c.l.b16 %v3440
    %v4488 = vunpack.c.h.b16 %v3440
    %v4489 = vunpack.c.l.b16 %v3441
    %v4490 = vunpack.c.h.b16 %v3441
    %v4491 = vunpack.c.l.b16 %v3442
    %v4492 = vunpack.c.h.b16 %v3442
    %v4493 = vunpack.c.l.b16 %v3443
    %v4494 = vunpack.c.h.b16 %v3443
    %v4495 = vunpack.c.l.b16 %v3444
    %v4496 = vunpack.c.h.b16 %v3444
    %v4497 = vunpack.c.l.b16 %v3445
    %v4498 = vunpack.c.h.b16 %v3445
    %v4499 = vunpack.c.l.b16 %v3446
    %v4500 = vunpack.c.h.b16 %v3446
    %v4501 = vunpack.c.l.b16 %v3447
    %v4502 = vunpack.c.h.b16 %v3447
    %v4503 = vunpack.c.l.b16 %v3448
    %v4504 = vunpack.c.h.b16 %v3448
    %v4505 = vunpack.c.l.b16 %v3449
    %v4506 = vunpack.c.h.b16 %v3449
    %v4507 = vunpack.c.l.b16 %v3450
    %v4508 = vunpack.c.h.b16 %v3450
    %v4509 = vunpack.c.l.b16 %v3451
    %v4510 = vunpack.c.h.b16 %v3451
    %v4511 = vunpack.c.l.b16 %v3452
    %v4512 = vunpack.c.h.b16 %v3452
    %v4513 = vunpack.c.l.b16 %v3453
    %v4514 = vunpack.c.h.b16 %v3453
    %v4515 = vunpack.c.l.b16 %v3454
    %v4516 = vunpack.c.h.b16 %v3454
    %v4517 = vunpack.c.l.b16 %v3455
    %v4518 = vunpack.c.h.b16 %v3455
    %v4519 = vunpack.c.l.b16 %v3456
    %v4520 = vunpack.c.h.b16 %v3456
    %v4521 = vunpack.c.l.b16 %v3457
    %v4522 = vunpack.c.h.b16 %v3457
    %v4523 = vunpack.c.l.b16 %v3458
    %v4524 = vunpack.c.h.b16 %v3458
    %v4525 = vunpack.c.l.b16 %v3459
    %v4526 = vunpack.c.h.b16 %v3459
    %v4527 = vunpack.c.l.b16 %v3460
    %v4528 = vunpack.c.h.b16 %v3460
    %v4529 = vunpack.c.l.b16 %v3461
    %v4530 = vunpack.c.h.b16 %v3461
    %v4531 = vunpack.c.l.b16 %v3462
    %v4532 = vunpack.c.h.b16 %v3462
    %v4533 = vunpack.c.l.b16 %v3463
    %v4534 = vunpack.c.h.b16 %v3463
    %v4535 = vunpack.c.l.b16 %v3464
    %v4536 = vunpack.c.h.b16 %v3464
    %v4537 = vunpack.c.l.b16 %v3465
    %v4538 = vunpack.c.h.b16 %v3465
    %v4539 = vunpack.c.l.b16 %v3466
    %v4540 = vunpack.c.h.b16 %v3466
    %v4541 = vunpack.c.l.b16 %v3467
    %v4542 = vunpack.c.h.b16 %v3467
    %v4543 = vunpack.c.l.b16 %v3468
    %v4544 = vunpack.c.h.b16 %v3468
    %v4545 = vunpack.c.l.b16 %v3469
    %v4546 = vunpack.c.h.b16 %v3469
    %v4547 = vunpack.c.l.b16 %v3470
    %v4548 = vunpack.c.h.b16 %v3470
    %v4549 = vunpack.c.l.b16 %v3471
    %v4550 = vunpack.c.h.b16 %v3471
    %v4551 = vunpack.c.l.b16 %v3472
    %v4552 = vunpack.c.h.b16 %v3472
    %v4553 = vunpack.c.l.b16 %v3473
    %v4554 = vunpack.c.h.b16 %v3473
    %v4555 = vunpack.c.l.b16 %v3474
    %v4556 = vunpack.c.h.b16 %v3474
    %v4557 = vunpack.c.l.b16 %v3475
    %v4558 = vunpack.c.h.b16 %v3475
    %v4559 = vunpack.c.l.b16 %v3476
    %v4560 = vunpack.c.h.b16 %v3476
    %v4561 = vunpack.c.l.b16 %v3477
    %v4562 = vunpack.c.h.b16 %v3477
    %v4563 = vunpack.c.l.b16 %v3478
    %v4564 = vunpack.c.h.b16 %v3478
    %v4565 = vunpack.c.l.b16 %v3479
    %v4566 = vunpack.c.h.b16 %v3479
    %v4567 = vunpack.c.l.b16 %v3480
    %v4568 = vunpack.c.h.b16 %v3480
    %v4569 = vunpack.c.l.b16 %v3481
    %v4570 = vunpack.c.h.b16 %v3481
    %v4571 = vunpack.c.l.b16 %v3482
    %v4572 = vunpack.c.h.b16 %v3482
    %v4573 = vunpack.c.l.b16 %v3483
    %v4574 = vunpack.c.h.b16 %v3483
    %v4575 = vunpack.c.l.b16 %v3484
    %v4576 = vunpack.c.h.b16 %v3484
    %v4577 = vunpack.c.l.b16 %v3485
    %v4578 = vunpack.c.h.b16 %v3485
    %v4579 = vunpack.c.l.b16 %v3486
    %v4580 = vunpack.c.h.b16 %v3486
    %v4581 = vunpack.c.l.b16 %v3487
    %v4582 = vunpack.c.h.b16 %v3487
    %v4583 = vunpack.c.l.b16 %v3488
    %v4584 = vunpack.c.h.b16 %v3488
    %v4585 = vunpack.c.l.b16 %v3489
    %v4586 = vunpack.c.h.b16 %v3489
    %v4587 = vunpack.c.l.b16 %v3490
    %v4588 = vunpack.c.h.b16 %v3490
    %v4589 = vunpack.c.l.b16 %v3491
    %v4590 = vunpack.c.h.b16 %v3491
    %v4591 = vunpack.c.l.b16 %v3492
    %v4592 = vunpack.c.h.b16 %v3492
    %v4593 = vunpack.c.l.b16 %v3493
    %v4594 = vunpack.c.h.b16 %v3493
    %v4595 = vunpack.c.l.b16 %v3494
    %v4596 = vunpack.c.h.b16 %v3494
    %v4597 = vunpack.c.l.b16 %v3495
    %v4598 = vunpack.c.h.b16 %v3495
    %v4599 = vunpack.c.l.b16 %v3496
    %v4600 = vunpack.c.h.b16 %v3496
    %v4601 = vunpack.c.l.b16 %v3497
    %v4602 = vunpack.c.h.b16 %v3497
    %v4603 = vunpack.c.l.b16 %v3498
    %v4604 = vunpack.c.h.b16 %v3498
    %v4605 = vunpack.c.l.b16 %v3499
    %v4606 = vunpack.c.h.b16 %v3499
    %v4607 = vunpack.c.l.b16 %v3500
    %v4608 = vunpack.c.h.b16 %v3500
    %v4609 = vunpack.c.l.b16 %v3501
    %v4610 = vunpack.c.h.b16 %v3501
    %v4611 = vunpack.c.l.b16 %v3502
    %v4612 = vunpack.c.h.b16 %v3502
    %v4613 = vunpack.c.l.b16 %v3503
    %v4614 = vunpack.c.h.b16 %v3503
    %v4615 = vunpack.c.l.b16 %v3504
    %v4616 = vunpack.c.h.b16 %v3504
    %v4617 = vunpack.c.l.b16 %v3505
    %v4618 = vunpack.c.h.b16 %v3505
    %v4619 = vunpack.c.l.b16 %v3506
    %v4620 = vunpack.c.h.b16 %v3506
    %v4621 = vunpack.c.l.b16 %v3507
    %v4622 = vunpack.c.h.b16 %v3507
    %v4623 = vunpack.c.l.b16 %v3508
    %v4624 = vunpack.c.h.b16 %v3508
    %v4625 = vunpack.c.l.b16 %v3509
    %v4626 = vunpack.c.h.b16 %v3509
    %v4627 = vunpack.c.l.b16 %v3510
    %v4628 = vunpack.c.h.b16 %v3510
    %v4629 = vunpack.c.l.b16 %v3511
    %v4630 = vunpack.c.h.b16 %v3511
    %v4631 = vunpack.c.l.b16 %v3512
    %v4632 = vunpack.c.h.b16 %v3512
    %v4633 = vunpack.c.l.b16 %v3513
    %v4634 = vunpack.c.h.b16 %v3513
    %v4635 = vunpack.c.l.b16 %v3514
    %v4636 = vunpack.c.h.b16 %v3514
    %v4637 = vunpack.c.l.b16 %v3515
    %v4638 = vunpack.c.h.b16 %v3515
    %v4639 = vunpack.c.l.b16 %v3516
    %v4640 = vunpack.c.h.b16 %v3516
    %v4641 = vunpack.c.l.b16 %v3517
    %v4642 = vunpack.c.h.b16 %v3517
    %v4643 = vunpack.c.l.b16 %v3518
    %v4644 = vunpack.c.h.b16 %v3518
    %v4645 = vunpack.c.l.b16 %v3519
    %v4646 = vunpack.c.h.b16 %v3519
    %v4647 = vunpack.c.l.b16 %v3520
    %v4648 = vunpack.c.h.b16 %v3520
    %v4649 = vunpack.c.l.b16 %v3521
    %v4650 = vunpack.c.h.b16 %v3521
    %v4651 = vunpack.c.l.b16 %v3522
    %v4652 = vunpack.c.h.b16 %v3522
    %v4653 = vunpack.c.l.b16 %v3523
    %v4654 = vunpack.c.h.b16 %v3523
    %v4655 = vunpack.c.l.b16 %v3524
    %v4656 = vunpack.c.h.b16 %v3524
    %v4657 = vunpack.c.l.b16 %v3525
    %v4658 = vunpack.c.h.b16 %v3525
    %v4659 = vunpack.c.l.b16 %v3526
    %v4660 = vunpack.c.h.b16 %v3526
    %v4661 = vunpack.c.l.b16 %v3527
    %v4662 = vunpack.c.h.b16 %v3527
    %v4663 = vunpack.c.l.b16 %v3528
    %v4664 = vunpack.c.h.b16 %v3528
    %v4665 = vunpack.c.l.b16 %v3529
    %v4666 = vunpack.c.h.b16 %v3529
    %v4667 = vunpack.c.l.b16 %v3530
    %v4668 = vunpack.c.h.b16 %v3530
    %v4669 = vunpack.c.l.b16 %v3531
    %v4670 = vunpack.c.h.b16 %v3531
    %v4671 = vunpack.c.l.b16 %v3532
    %v4672 = vunpack.c.h.b16 %v3532
    %v4673 = vunpack.c.l.b16 %v3533
    %v4674 = vunpack.c.h.b16 %v3533
    %v4675 = vunpack.c.l.b16 %v3534
    %v4676 = vunpack.c.h.b16 %v3534
    %v4677 = vunpack.c.l.b16 %v3535
    %v4678 = vunpack.c.h.b16 %v3535
    %v4679 = vunpack.c.l.b16 %v3536
    %v4680 = vunpack.c.h.b16 %v3536
    %v4681 = vunpack.c.l.b16 %v3537
    %v4682 = vunpack.c.h.b16 %v3537
    %v4683 = vunpack.c.l.b16 %v3538
    %v4684 = vunpack.c.h.b16 %v3538
    %v4685 = vunpack.c.l.b16 %v3539
    %v4686 = vunpack.c.h.b16 %v3539
    %v4687 = vunpack.c.l.b16 %v3540
    %v4688 = vunpack.c.h.b16 %v3540
    %v4689 = vunpack.c.l.b16 %v3541
    %v4690 = vunpack.c.h.b16 %v3541
    %v4691 = vunpack.c.l.b16 %v3542
    %v4692 = vunpack.c.h.b16 %v3542
    %v4693 = vunpack.c.l.b16 %v3543
    %v4694 = vunpack.c.h.b16 %v3543
    %v4695 = vunpack.c.l.b16 %v3544
    %v4696 = vunpack.c.h.b16 %v3544
    %v4697 = vunpack.c.l.b16 %v3545
    %v4698 = vunpack.c.h.b16 %v3545
    %v4699 = vunpack.c.l.b16 %v3546
    %v4700 = vunpack.c.h.b16 %v3546
    %v4701 = vunpack.c.l.b16 %v3547
    %v4702 = vunpack.c.h.b16 %v3547
    %v4703 = vunpack.c.l.b16 %v3548
    %v4704 = vunpack.c.h.b16 %v3548
    %v4705 = vunpack.c.l.b16 %v3549
    %v4706 = vunpack.c.h.b16 %v3549
    %v4707 = vunpack.c.l.b16 %v3550
    %v4708 = vunpack.c.h.b16 %v3550
    %v4709 = vunpack.c.l.b16 %v3551
    %v4710 = vunpack.c.h.b16 %v3551
    %v4711 = vunpack.c.l.b16 %v3552
    %v4712 = vunpack.c.h.b16 %v3552
    %v4713 = vunpack.c.l.b16 %v3553
    %v4714 = vunpack.c.h.b16 %v3553
    %v4715 = vunpack.c.l.b16 %v3554
    %v4716 = vunpack.c.h.b16 %v3554
    %v4717 = vunpack.c.l.b16 %v3555
    %v4718 = vunpack.c.h.b16 %v3555
    %v4719 = vunpack.c.l.b16 %v3556
    %v4720 = vunpack.c.h.b16 %v3556
    %v4721 = vunpack.c.l.b16 %v3557
    %v4722 = vunpack.c.h.b16 %v3557
    %v4723 = vunpack.c.l.b16 %v3558
    %v4724 = vunpack.c.h.b16 %v3558
    %v4725 = vunpack.c.l.b16 %v3559
    %v4726 = vunpack.c.h.b16 %v3559
    %v4727 = vunpack.c.l.b16 %v3560
    %v4728 = vunpack.c.h.b16 %v3560
    %v4729 = vunpack.c.l.b16 %v3561
    %v4730 = vunpack.c.h.b16 %v3561
    %v4731 = vunpack.c.l.b16 %v3562
    %v4732 = vunpack.c.h.b16 %v3562
    %v4733 = vunpack.c.l.b16 %v3563
    %v4734 = vunpack.c.h.b16 %v3563
    %v4735 = vunpack.c.l.b16 %v3564
    %v4736 = vunpack.c.h.b16 %v3564
    %v4737 = vunpack.c.l.b16 %v3565
    %v4738 = vunpack.c.h.b16 %v3565
    %v4739 = vunpack.c.l.b16 %v3566
    %v4740 = vunpack.c.h.b16 %v3566
    %v4741 = vunpack.c.l.b16 %v3567
    %v4742 = vunpack.c.h.b16 %v3567
    %v4743 = vunpack.c.l.b16 %v3568
    %v4744 = vunpack.c.h.b16 %v3568
    %v4745 = vunpack.c.l.b16 %v3569
    %v4746 = vunpack.c.h.b16 %v3569
    %v4747 = vunpack.c.l.b16 %v3570
    %v4748 = vunpack.c.h.b16 %v3570
    %v4749 = vunpack.c.l.b16 %v3571
    %v4750 = vunpack.c.h.b16 %v3571
    %v4751 = vunpack.c.l.b16 %v3572
    %v4752 = vunpack.c.h.b16 %v3572
    %v4753 = vunpack.c.l.b16 %v3573
    %v4754 = vunpack.c.h.b16 %v3573
    %v4755 = vunpack.c.l.b16 %v3574
    %v4756 = vunpack.c.h.b16 %v3574
    %v4757 = vunpack.c.l.b16 %v3575
    %v4758 = vunpack.c.h.b16 %v3575
    %v4759 = vunpack.c.l.b16 %v3576
    %v4760 = vunpack.c.h.b16 %v3576
    %v4761 = vunpack.c.l.b16 %v3577
    %v4762 = vunpack.c.h.b16 %v3577
    %v4763 = vunpack.c.l.b16 %v3578
    %v4764 = vunpack.c.h.b16 %v3578
    %v4765 = vunpack.c.l.b16 %v3579
    %v4766 = vunpack.c.h.b16 %v3579
    %v4767 = vunpack.c.l.b16 %v3580
    %v4768 = vunpack.c.h.b16 %v3580
    %v4769 = vunpack.c.l.b16 %v3581
    %v4770 = vunpack.c.h.b16 %v3581
    %v4771 = vunpack.c.l.b16 %v3582
    %v4772 = vunpack.c.h.b16 %v3582
    %v4773 = vunpack.c.l.b16 %v3583
    %v4774 = vunpack.c.h.b16 %v3583
    %v4775 = vunpack.c.l.b16 %v3584
    %v4776 = vunpack.c.h.b16 %v3584
    %v4777 = vunpack.c.l.b16 %v3585
    %v4778 = vunpack.c.h.b16 %v3585
    %v4779 = vunpack.c.l.b16 %v3586
    %v4780 = vunpack.c.h.b16 %v3586
    %v4781 = vpack.c.b16 %v4021, %v4013
    %v4782 = vpack.c.b16 %v4022, %v4014
    %v4783 = vpack.c.b16 %v4023, %v4015
    %v4784 = vpack.c.b16 %v4024, %v4016
    %v4785 = vpack.c.b16 %v4025, %v4017
    %v4786 = vpack.c.b16 %v4026, %v4018
    %v4787 = vpack.c.b16 %v4027, %v4019
    %v4788 = vpack.c.b16 %v4028, %v4020
    %v4789 = vpack.c.b16 %v4037, %v4029
    %v4790 = vpack.c.b16 %v4038, %v4030
    %v4791 = vpack.c.b16 %v4039, %v4031
    %v4792 = vpack.c.b16 %v4040, %v4032
    %v4793 = vpack.c.b16 %v4041, %v4033
    %v4794 = vpack.c.b16 %v4042, %v4034
    %v4795 = vpack.c.b16 %v4043, %v4035
    %v4796 = vpack.c.b16 %v4044, %v4036
    %v4797 = vpack.c.b16 %v4053, %v4045
    %v4798 = vpack.c.b16 %v4054, %v4046
    %v4799 = vpack.c.b16 %v4055, %v4047
    %v4800 = vpack.c.b16 %v4056, %v4048
    %v4801 = vpack.c.b16 %v4057, %v4049
    %v4802 = vpack.c.b16 %v4058, %v4050
    %v4803 = vpack.c.b16 %v4059, %v4051
    %v4804 = vpack.c.b16 %v4060, %v4052
    %v4805 = vpack.c.b16 %v4069, %v4061
    %v4806 = vpack.c.b16 %v4070, %v4062
    %v4807 = vpack.c.b16 %v4071, %v4063
    %v4808 = vpack.c.b16 %v4072, %v4064
    %v4809 = vpack.c.b16 %v4073, %v4065
    %v4810 = vpack.c.b16 %v4074, %v4066
    %v4811 = vpack.c.b16 %v4075, %v4067
    %v4812 = vpack.c.b16 %v4076, %v4068
    %v4813 = vpack.c.b16 %v4085, %v4077
    %v4814 = vpack.c.b16 %v4086, %v4078
    %v4815 = vpack.c.b16 %v4087, %v4079
    %v4816 = vpack.c.b16 %v4088, %v4080
    %v4817 = vpack.c.b16 %v4089, %v4081
    %v4818 = vpack.c.b16 %v4090, %v4082
    %v4819 = vpack.c.b16 %v4091, %v4083
    %v4820 = vpack.c.b16 %v4092, %v4084
    %v4821 = vpack.c.b16 %v4101, %v4093
    %v4822 = vpack.c.b16 %v4102, %v4094
    %v4823 = vpack.c.b16 %v4103, %v4095
    %v4824 = vpack.c.b16 %v4104, %v4096
    %v4825 = vpack.c.b16 %v4105, %v4097
    %v4826 = vpack.c.b16 %v4106, %v4098
    %v4827 = vpack.c.b16 %v4107, %v4099
    %v4828 = vpack.c.b16 %v4108, %v4100
    %v4829 = vpack.c.b16 %v4117, %v4109
    %v4830 = vpack.c.b16 %v4118, %v4110
    %v4831 = vpack.c.b16 %v4119, %v4111
    %v4832 = vpack.c.b16 %v4120, %v4112
    %v4833 = vpack.c.b16 %v4121, %v4113
    %v4834 = vpack.c.b16 %v4122, %v4114
    %v4835 = vpack.c.b16 %v4123, %v4115
    %v4836 = vpack.c.b16 %v4124, %v4116
    %v4837 = vpack.c.b16 %v4133, %v4125
    %v4838 = vpack.c.b16 %v4134, %v4126
    %v4839 = vpack.c.b16 %v4135, %v4127
    %v4840 = vpack.c.b16 %v4136, %v4128
    %v4841 = vpack.c.b16 %v4137, %v4129
    %v4842 = vpack.c.b16 %v4138, %v4130
    %v4843 = vpack.c.b16 %v4139, %v4131
    %v4844 = vpack.c.b16 %v4140, %v4132
    %v4845 = vpack.c.b16 %v4149, %v4141
    %v4846 = vpack.c.b16 %v4150, %v4142
    %v4847 = vpack.c.b16 %v4151, %v4143
    %v4848 = vpack.c.b16 %v4152, %v4144
    %v4849 = vpack.c.b16 %v4153, %v4145
    %v4850 = vpack.c.b16 %v4154, %v4146
    %v4851 = vpack.c.b16 %v4155, %v4147
    %v4852 = vpack.c.b16 %v4156, %v4148
    %v4853 = vpack.c.b16 %v4165, %v4157
    %v4854 = vpack.c.b16 %v4166, %v4158
    %v4855 = vpack.c.b16 %v4167, %v4159
    %v4856 = vpack.c.b16 %v4168, %v4160
    %v4857 = vpack.c.b16 %v4169, %v4161
    %v4858 = vpack.c.b16 %v4170, %v4162
    %v4859 = vpack.c.b16 %v4171, %v4163
    %v4860 = vpack.c.b16 %v4172, %v4164
    %v4861 = vpack.c.b16 %v4181, %v4173
    %v4862 = vpack.c.b16 %v4182, %v4174
    %v4863 = vpack.c.b16 %v4183, %v4175
    %v4864 = vpack.c.b16 %v4184, %v4176
    %v4865 = vpack.c.b16 %v4185, %v4177
    %v4866 = vpack.c.b16 %v4186, %v4178
    %v4867 = vpack.c.b16 %v4187, %v4179
    %v4868 = vpack.c.b16 %v4188, %v4180
    %v4869 = vpack.c.b16 %v4197, %v4189
    %v4870 = vpack.c.b16 %v4198, %v4190
    %v4871 = vpack.c.b16 %v4199, %v4191
    %v4872 = vpack.c.b16 %v4200, %v4192
    %v4873 = vpack.c.b16 %v4201, %v4193
    %v4874 = vpack.c.b16 %v4202, %v4194
    %v4875 = vpack.c.b16 %v4203, %v4195
    %v4876 = vpack.c.b16 %v4204, %v4196
    %v4877 = vpack.c.b16 %v4213, %v4205
    %v4878 = vpack.c.b16 %v4214, %v4206
    %v4879 = vpack.c.b16 %v4215, %v4207
    %v4880 = vpack.c.b16 %v4216, %v4208
    %v4881 = vpack.c.b16 %v4217, %v4209
    %v4882 = vpack.c.b16 %v4218, %v4210
    %v4883 = vpack.c.b16 %v4219, %v4211
    %v4884 = vpack.c.b16 %v4220, %v4212
    %v4885 = vpack.c.b16 %v4229, %v4221
    %v4886 = vpack.c.b16 %v4230, %v4222
    %v4887 = vpack.c.b16 %v4231, %v4223
    %v4888 = vpack.c.b16 %v4232, %v4224
    %v4889 = vpack.c.b16 %v4233, %v4225
    %v4890 = vpack.c.b16 %v4234, %v4226
    %v4891 = vpack.c.b16 %v4235, %v4227
    %v4892 = vpack.c.b16 %v4236, %v4228
    %v4893 = vpack.c.b16 %v4245, %v4237
    %v4894 = vpack.c.b16 %v4246, %v4238
    %v4895 = vpack.c.b16 %v4247, %v4239
    %v4896 = vpack.c.b16 %v4248, %v4240
    %v4897 = vpack.c.b16 %v4249, %v4241
    %v4898 = vpack.c.b16 %v4250, %v4242
    %v4899 = vpack.c.b16 %v4251, %v4243
    %v4900 = vpack.c.b16 %v4252, %v4244
    %v4901 = vpack.c.b16 %v4261, %v4253
    %v4902 = vpack.c.b16 %v4262, %v4254
    %v4903 = vpack.c.b16 %v4263, %v4255
    %v4904 = vpack.c.b16 %v4264, %v4256
    %v4905 = vpack.c.b16 %v4265, %v4257
    %v4906 = vpack.c.b16 %v4266, %v4258
    %v4907 = vpack.c.b16 %v4267, %v4259
    %v4908 = vpack.c.b16 %v4268, %v4260
    %v4909 = vpack.c.b16 %v4277, %v4269
    %v4910 = vpack.c.b16 %v4278, %v4270
    %v4911 = vpack.c.b16 %v4279, %v4271
    %v4912 = vpack.c.b16 %v4280, %v4272
    %v4913 = vpack.c.b16 %v4281, %v4273
    %v4914 = vpack.c.b16 %v4282, %v4274
    %v4915 = vpack.c.b16 %v4283, %v4275
    %v4916 = vpack.c.b16 %v4284, %v4276
    %v4917 = vpack.c.b16 %v4293, %v4285
    %v4918 = vpack.c.b16 %v4294, %v4286
    %v4919 = vpack.c.b16 %v4295, %v4287
    %v4920 = vpack.c.b16 %v4296, %v4288
    %v4921 = vpack.c.b16 %v4297, %v4289
    %v4922 = vpack.c.b16 %v4298, %v4290
    %v4923 = vpack.c.b16 %v4299, %v4291
    %v4924 = vpack.c.b16 %v4300, %v4292
    %v4925 = vpack.c.b16 %v4309, %v4301
    %v4926 = vpack.c.b16 %v4310, %v4302
    %v4927 = vpack.c.b16 %v4311, %v4303
    %v4928 = vpack.c.b16 %v4312, %v4304
    %v4929 = vpack.c.b16 %v4313, %v4305
    %v4930 = vpack.c.b16 %v4314, %v4306
    %v4931 = vpack.c.b16 %v4315, %v4307
    %v4932 = vpack.c.b16 %v4316, %v4308
    %v4933 = vpack.c.b16 %v4325, %v4317
    %v4934 = vpack.c.b16 %v4326, %v4318
    %v4935 = vpack.c.b16 %v4327, %v4319
    %v4936 = vpack.c.b16 %v4328, %v4320
    %v4937 = vpack.c.b16 %v4329, %v4321
    %v4938 = vpack.c.b16 %v4330, %v4322
    %v4939 = vpack.c.b16 %v4331, %v4323
    %v4940 = vpack.c.b16 %v4332, %v4324
    %v4941 = vpack.c.b16 %v4341, %v4333
    %v4942 = vpack.c.b16 %v4342, %v4334
    %v4943 = vpack.c.b16 %v4343, %v4335
    %v4944 = vpack.c.b16 %v4344, %v4336
    %v4945 = vpack.c.b16 %v4345, %v4337
    %v4946 = vpack.c.b16 %v4346, %v4338
    %v4947 = vpack.c.b16 %v4347, %v4339
    %v4948 = vpack.c.b16 %v4348, %v4340
    %v4949 = vpack.c.b16 %v4357, %v4349
    %v4950 = vpack.c.b16 %v4358, %v4350
    %v4951 = vpack.c.b16 %v4359, %v4351
    %v4952 = vpack.c.b16 %v4360, %v4352
    %v4953 = vpack.c.b16 %v4361, %v4353
    %v4954 = vpack.c.b16 %v4362, %v4354
    %v4955 = vpack.c.b16 %v4363, %v4355
    %v4956 = vpack.c.b16 %v4364, %v4356
    %v4957 = vpack.c.b16 %v4373, %v4365
    %v4958 = vpack.c.b16 %v4374, %v4366
    %v4959 = vpack.c.b16 %v4375, %v4367
    %v4960 = vpack.c.b16 %v4376, %v4368
    %v4961 = vpack.c.b16 %v4377, %v4369
    %v4962 = vpack.c.b16 %v4378, %v4370
    %v4963 = vpack.c.b16 %v4379, %v4371
    %v4964 = vpack.c.b16 %v4380, %v4372
    %v4965 = vpack.c.b16 %v4389, %v4381
    %v4966 = vpack.c.b16 %v4390, %v4382
    %v4967 = vpack.c.b16 %v4391, %v4383
    %v4968 = vpack.c.b16 %v4392, %v4384
    %v4969 = vpack.c.b16 %v4393, %v4385
    %v4970 = vpack.c.b16 %v4394, %v4386
    %v4971 = vpack.c.b16 %v4395, %v4387
    %v4972 = vpack.c.b16 %v4396, %v4388
    %v4973 = vpack.c.b16 %v4405, %v4397
    %v4974 = vpack.c.b16 %v4406, %v4398
    %v4975 = vpack.c.b16 %v4407, %v4399
    %v4976 = vpack.c.b16 %v4408, %v4400
    %v4977 = vpack.c.b16 %v4409, %v4401
    %v4978 = vpack.c.b16 %v4410, %v4402
    %v4979 = vpack.c.b16 %v4411, %v4403
    %v4980 = vpack.c.b16 %v4412, %v4404
    %v4981 = vpack.c.b16 %v4421, %v4413
    %v4982 = vpack.c.b16 %v4422, %v4414
    %v4983 = vpack.c.b16 %v4423, %v4415
    %v4984 = vpack.c.b16 %v4424, %v4416
    %v4985 = vpack.c.b16 %v4425, %v4417
    %v4986 = vpack.c.b16 %v4426, %v4418
    %v4987 = vpack.c.b16 %v4427, %v4419
    %v4988 = vpack.c.b16 %v4428, %v4420
    %v4989 = vpack.c.b16 %v4437, %v4429
    %v4990 = vpack.c.b16 %v4438, %v4430
    %v4991 = vpack.c.b16 %v4439, %v4431
    %v4992 = vpack.c.b16 %v4440, %v4432
    %v4993 = vpack.c.b16 %v4441, %v4433
    %v4994 = vpack.c.b16 %v4442, %v4434
    %v4995 = vpack.c.b16 %v4443, %v4435
    %v4996 = vpack.c.b16 %v4444, %v4436
    %v4997 = vpack.c.b16 %v4453, %v4445
    %v4998 = vpack.c.b16 %v4454, %v4446
    %v4999 = vpack.c.b16 %v4455, %v4447
    %v5000 = vpack.c.b16 %v4456, %v4448
    %v5001 = vpack.c.b16 %v4457, %v4449
    %v5002 = vpack.c.b16 %v4458, %v4450
    %v5003 = vpack.c.b16 %v4459, %v4451
    %v5004 = vpack.c.b16 %v4460, %v4452
    %v5005 = vpack.c.b16 %v4469, %v4461
    %v5006 = vpack.c.b16 %v4470, %v4462
    %v5007 = vpack.c.b16 %v4471, %v4463
    %v5008 = vpack.c.b16 %v4472, %v4464
    %v5009 = vpack.c.b16 %v4473, %v4465
    %v5010 = vpack.c.b16 %v4474, %v4466
    %v5011 = vpack.c.b16 %v4475, %v4467
    %v5012 = vpack.c.b16 %v4476, %v4468
    %v5013 = vpack.c.b16 %v4485, %v4477
    %v5014 = vpack.c.b16 %v4486, %v4478
    %v5015 = vpack.c.b16 %v4487, %v4479
    %v5016 = vpack.c.b16 %v4488, %v4480
    %v5017 = vpack.c.b16 %v4489, %v4481
    %v5018 = vpack.c.b16 %v4490, %v4482
    %v5019 = vpack.c.b16 %v4491, %v4483
    %v5020 = vpack.c.b16 %v4492, %v4484
    %v5021 = vpack.c.b16 %v4501, %v4493
    %v5022 = vpack.c.b16 %v4502, %v4494
    %v5023 = vpack.c.b16 %v4503, %v4495
    %v5024 = vpack.c.b16 %v4504, %v4496
    %v5025 = vpack.c.b16 %v4505, %v4497
    %v5026 = vpack.c.b16 %v4506, %v4498
    %v5027 = vpack.c.b16 %v4507, %v4499
    %v5028 = vpack.c.b16 %v4508, %v4500
    %v5029 = vpack.c.b16 %v4517, %v4509
    %v5030 = vpack.c.b16 %v4518, %v4510
    %v5031 = vpack.c.b16 %v4519, %v4511
    %v5032 = vpack.c.b16 %v4520, %v4512
    %v5033 = vpack.c.b16 %v4521, %v4513
    %v5034 = vpack.c.b16 %v4522, %v4514
    %v5035 = vpack.c.b16 %v4523, %v4515
    %v5036 = vpack.c.b16 %v4524, %v4516
    %v5037 = vpack.c.b16 %v4533, %v4525
    %v5038 = vpack.c.b16 %v4534, %v4526
    %v5039 = vpack.c.b16 %v4535, %v4527
    %v5040 = vpack.c.b16 %v4536, %v4528
    %v5041 = vpack.c.b16 %v4537, %v4529
    %v5042 = vpack.c.b16 %v4538, %v4530
    %v5043 = vpack.c.b16 %v4539, %v4531
    %v5044 = vpack.c.b16 %v4540, %v4532
    %v5045 = vpack.c.b16 %v4549, %v4541
    %v5046 = vpack.c.b16 %v4550, %v4542
    %v5047 = vpack.c.b16 %v4551, %v4543
    %v5048 = vpack.c.b16 %v4552, %v4544
    %v5049 = vpack.c.b16 %v4553, %v4545
    %v5050 = vpack.c.b16 %v4554, %v4546
    %v5051 = vpack.c.b16 %v4555, %v4547
    %v5052 = vpack.c.b16 %v4556, %v4548
    %v5053 = vpack.c.b16 %v4565, %v4557
    %v5054 = vpack.c.b16 %v4566, %v4558
    %v5055 = vpack.c.b16 %v4567, %v4559
    %v5056 = vpack.c.b16 %v4568, %v4560
    %v5057 = vpack.c.b16 %v4569, %v4561
    %v5058 = vpack.c.b16 %v4570, %v4562
    %v5059 = vpack.c.b16 %v4571, %v4563
    %v5060 = vpack.c.b16 %v4572, %v4564
    %v5061 = vpack.c.b16 %v4581, %v4573
    %v5062 = vpack.c.b16 %v4582, %v4574
    %v5063 = vpack.c.b16 %v4583, %v4575
    %v5064 = vpack.c.b16 %v4584, %v4576
    %v5065 = vpack.c.b16 %v4585, %v4577
    %v5066 = vpack.c.b16 %v4586, %v4578
    %v5067 = vpack.c.b16 %v4587, %v4579
    %v5068 = vpack.c.b16 %v4588, %v4580
    %v5069 = vpack.c.b16 %v4597, %v4589
    %v5070 = vpack.c.b16 %v4598, %v4590
    %v5071 = vpack.c.b16 %v4599, %v4591
    %v5072 = vpack.c.b16 %v4600, %v4592
    %v5073 = vpack.c.b16 %v4601, %v4593
    %v5074 = vpack.c.b16 %v4602, %v4594
    %v5075 = vpack.c.b16 %v4603, %v4595
    %v5076 = vpack.c.b16 %v4604, %v4596
    %v5077 = vpack.c.b16 %v4613, %v4605
    %v5078 = vpack.c.b16 %v4614, %v4606
    %v5079 = vpack.c.b16 %v4615, %v4607
    %v5080 = vpack.c.b16 %v4616, %v4608
    %v5081 = vpack.c.b16 %v4617, %v4609
    %v5082 = vpack.c.b16 %v4618, %v4610
    %v5083 = vpack.c.b16 %v4619, %v4611
    %v5084 = vpack.c.b16 %v4620, %v4612
    %v5085 = vpack.c.b16 %v4629, %v4621
    %v5086 = vpack.c.b16 %v4630, %v4622
    %v5087 = vpack.c.b16 %v4631, %v4623
    %v5088 = vpack.c.b16 %v4632, %v4624
    %v5089 = vpack.c.b16 %v4633, %v4625
    %v5090 = vpack.c.b16 %v4634, %v4626
    %v5091 = vpack.c.b16 %v4635, %v4627
    %v5092 = vpack.c.b16 %v4636, %v4628
    %v5093 = vpack.c.b16 %v4645, %v4637
    %v5094 = vpack.c.b16 %v4646, %v4638
    %v5095 = vpack.c.b16 %v4647, %v4639
    %v5096 = vpack.c.b16 %v4648, %v4640
    %v5097 = vpack.c.b16 %v4649, %v4641
    %v5098 = vpack.c.b16 %v4650, %v4642
    %v5099 = vpack.c.b16 %v4651, %v4643
    %v5100 = vpack.c.b16 %v4652, %v4644
    %v5101 = vpack.c.b16 %v4661, %v4653
    %v5102 = vpack.c.b16 %v4662, %v4654
    %v5103 = vpack.c.b16 %v4663, %v4655
    %v5104 = vpack.c.b16 %v4664, %v4656
    %v5105 = vpack.c.b16 %v4665, %v4657
    %v5106 = vpack.c.b16 %v4666, %v4658
    %v5107 = vpack.c.b16 %v4667, %v4659
    %v5108 = vpack.c.b16 %v4668, %v4660
    %v5109 = vpack.c.b16 %v4677, %v4669
    %v5110 = vpack.c.b16 %v4678, %v4670
    %v5111 = vpack.c.b16 %v4679, %v4671
    %v5112 = vpack.c.b16 %v4680, %v4672
    %v5113 = vpack.c.b16 %v4681, %v4673
    %v5114 = vpack.c.b16 %v4682, %v4674
    %v5115 = vpack.c.b16 %v4683, %v4675
    %v5116 = vpack.c.b16 %v4684, %v4676
    %v5117 = vpack.c.b16 %v4693, %v4685
    %v5118 = vpack.c.b16 %v4694, %v4686
    %v5119 = vpack.c.b16 %v4695, %v4687
    %v5120 = vpack.c.b16 %v4696, %v4688
    %v5121 = vpack.c.b16 %v4697, %v4689
    %v5122 = vpack.c.b16 %v4698, %v4690
    %v5123 = vpack.c.b16 %v4699, %v4691
    %v5124 = vpack.c.b16 %v4700, %v4692
    %v5125 = vpack.c.b16 %v4709, %v4701
    %v5126 = vpack.c.b16 %v4710, %v4702
    %v5127 = vpack.c.b16 %v4711, %v4703
    %v5128 = vpack.c.b16 %v4712, %v4704
    %v5129 = vpack.c.b16 %v4713, %v4705
    %v5130 = vpack.c.b16 %v4714, %v4706
    %v5131 = vpack.c.b16 %v4715, %v4707
    %v5132 = vpack.c.b16 %v4716, %v4708
    %v5133 = vpack.c.b16 %v4725, %v4717
    %v5134 = vpack.c.b16 %v4726, %v4718
    %v5135 = vpack.c.b16 %v4727, %v4719
    %v5136 = vpack.c.b16 %v4728, %v4720
    %v5137 = vpack.c.b16 %v4729, %v4721
    %v5138 = vpack.c.b16 %v4730, %v4722
    %v5139 = vpack.c.b16 %v4731, %v4723
    %v5140 = vpack.c.b16 %v4732, %v4724
    %v5141 = vpack.c.b16 %v4741, %v4733
    %v5142 = vpack.c.b16 %v4742, %v4734
    %v5143 = vpack.c.b16 %v4743, %v4735
    %v5144 = vpack.c.b16 %v4744, %v4736
    %v5145 = vpack.c.b16 %v4745, %v4737
    %v5146 = vpack.c.b16 %v4746, %v4738
    %v5147 = vpack.c.b16 %v4747, %v4739
    %v5148 = vpack.c.b16 %v4748, %v4740
    %v5149 = vpack.c.b16 %v4757, %v4749
    %v5150 = vpack.c.b16 %v4758, %v4750
    %v5151 = vpack.c.b16 %v4759, %v4751
    %v5152 = vpack.c.b16 %v4760, %v4752
    %v5153 = vpack.c.b16 %v4761, %v4753
    %v5154 = vpack.c.b16 %v4762, %v4754
    %v5155 = vpack.c.b16 %v4763, %v4755
    %v5156 = vpack.c.b16 %v4764, %v4756
    %v5157 = vpack.c.b16 %v4773, %v4765
    %v5158 = vpack.c.b16 %v4774, %v4766
    %v5159 = vpack.c.b16 %v4775, %v4767
    %v5160 = vpack.c.b16 %v4776, %v4768
    %v5161 = vpack.c.b16 %v4777, %v4769
    %v5162 = vpack.c.b16 %v4778, %v4770
    %v5163 = vpack.c.b16 %v4779, %v4771
    %v5164 = vpack.c.b16 %v4780, %v4772
    %5549 = vmatprep.subr.bf16.mxu0 %v4838
    %5550 = vmatpush1.bf16.msra.mxu0 %v4837
    %5551 = vmatprep.subr.bf16.mxu0 %v4830
    %5552 = vmatpush1.bf16.msra.mxu0 %v4829
    %5553 = vmatprep.subr.bf16.mxu0 %v4822
    %5554 = vmatpush1.bf16.msra.mxu0 %v4821
    %5555 = vmatprep.subr.bf16.mxu0 %v4814
    %5556 = vmatpush1.bf16.msra.mxu0 %v4813
    %5557 = vmatprep.subr.bf16.mxu0 %v4806
    %5558 = vmatpush1.bf16.msra.mxu0 %v4805
    %5559 = vmatprep.subr.bf16.mxu0 %v4798
    %5560 = vmatpush1.bf16.msra.mxu0 %v4797
    %5561 = vmatprep.subr.bf16.mxu0 %v4790
    %5562 = vmatpush1.bf16.msra.mxu0 %v4789
    %5563 = vmatprep.subr.bf16.mxu0 %v4782
    %5564 = vmatpush1.bf16.msra.mxu0 %v4781
    %5565 = vmatprep.subr.bf16.mxu0 %v4902
    %5566 = vmatpush2.bf16.msra.mxu0 %v4901
    %5567 = vmatprep.subr.bf16.mxu0 %v4894
    %5568 = vmatpush2.bf16.msra.mxu0 %v4893
    %5569 = vmatprep.subr.bf16.mxu0 %v4886
    %5570 = vmatpush2.bf16.msra.mxu0 %v4885
    %5571 = vmatprep.subr.bf16.mxu0 %v4878
    %5572 = vmatpush2.bf16.msra.mxu0 %v4877
    %5573 = vmatprep.subr.bf16.mxu0 %v4870
    %5574 = vmatpush2.bf16.msra.mxu0 %v4869
    %5575 = vmatprep.subr.bf16.mxu0 %v4862
    %5576 = vmatpush2.bf16.msra.mxu0 %v4861
    %5577 = vmatprep.subr.bf16.mxu0 %v4854
    %5578 = vmatpush2.bf16.msra.mxu0 %v4853
    %5579 = vmatprep.subr.bf16.mxu0 %v4846
    %5580 = vmatpush2.bf16.msra.mxu0 %v4845
    %5581 = vmatprep.mubr.bf16.mxu0 %v3198
    %5582 = vmatmul.mubr.bf16.gmra.mxu0 %v3197
    %v5583 = vpop.f32.mrf.mxu0
    %v5584 = vadd.f32 %v3592, %v5583
    %v5585 = vpop.f32.mrf.mxu0
    %v5586 = vadd.f32 %v3596, %v5585
    %v5587 = vpop.f32.mrf.mxu0
    %v5588 = vpop.f32.mrf.mxu0
    %5589 = vdwg.mxu0
    %5590 = vmatprep.subr.bf16.mxu0 %v4966
    %5591 = vmatpush1.bf16.msra.mxu0 %v4965
    %5592 = vmatprep.subr.bf16.mxu0 %v4958
    %5593 = vmatpush1.bf16.msra.mxu0 %v4957
    %5594 = vmatprep.subr.bf16.mxu0 %v4950
    %5595 = vmatpush1.bf16.msra.mxu0 %v4949
    %5596 = vmatprep.subr.bf16.mxu0 %v4942
    %5597 = vmatpush1.bf16.msra.mxu0 %v4941
    %5598 = vmatprep.subr.bf16.mxu0 %v4934
    %5599 = vmatpush1.bf16.msra.mxu0 %v4933
    %5600 = vmatprep.subr.bf16.mxu0 %v4926
    %5601 = vmatpush1.bf16.msra.mxu0 %v4925
    %5602 = vmatprep.subr.bf16.mxu0 %v4918
    %5603 = vmatpush1.bf16.msra.mxu0 %v4917
    %5604 = vmatprep.subr.bf16.mxu0 %v4910
    %5605 = vmatpush1.bf16.msra.mxu0 %v4909
    %5606 = vmatprep.subr.bf16.mxu0 %v5030
    %5607 = vmatpush2.bf16.msra.mxu0 %v5029
    %5608 = vmatprep.subr.bf16.mxu0 %v5022
    %5609 = vmatpush2.bf16.msra.mxu0 %v5021
    %5610 = vmatprep.subr.bf16.mxu0 %v5014
    %5611 = vmatpush2.bf16.msra.mxu0 %v5013
    %5612 = vmatprep.subr.bf16.mxu0 %v5006
    %5613 = vmatpush2.bf16.msra.mxu0 %v5005
    %5614 = vmatprep.subr.bf16.mxu0 %v4998
    %5615 = vmatpush2.bf16.msra.mxu0 %v4997
    %5616 = vmatprep.subr.bf16.mxu0 %v4990
    %5617 = vmatpush2.bf16.msra.mxu0 %v4989
    %5618 = vmatprep.subr.bf16.mxu0 %v4982
    %5619 = vmatpush2.bf16.msra.mxu0 %v4981
    %5620 = vmatprep.subr.bf16.mxu0 %v4974
    %5621 = vmatpush2.bf16.msra.mxu0 %v4973
    %5622 = vmatprep.mubr.bf16.mxu0 %v3200
    %5623 = vmatmul.mubr.bf16.gmra.mxu0 %v3199
    %v5624 = vpop.f32.mrf.mxu0
    %v5625 = vadd.f32 %v5584, %v5624
    %v5626 = vpop.f32.mrf.mxu0
    %v5627 = vadd.f32 %v5586, %v5626
    %v5628 = vpop.f32.mrf.mxu0
    %v5629 = vpop.f32.mrf.mxu0
    %5630 = vdwg.mxu0
    %5631 = vmatprep.subr.bf16.mxu0 %v5094
    %5632 = vmatpush1.bf16.msra.mxu0 %v5093
    %5633 = vmatprep.subr.bf16.mxu0 %v5086
    %5634 = vmatpush1.bf16.msra.mxu0 %v5085
    %5635 = vmatprep.subr.bf16.mxu0 %v5078
    %5636 = vmatpush1.bf16.msra.mxu0 %v5077
    %5637 = vmatprep.subr.bf16.mxu0 %v5070
    %5638 = vmatpush1.bf16.msra.mxu0 %v5069
    %5639 = vmatprep.subr.bf16.mxu0 %v5062
    %5640 = vmatpush1.bf16.msra.mxu0 %v5061
    %5641 = vmatprep.subr.bf16.mxu0 %v5054
    %5642 = vmatpush1.bf16.msra.mxu0 %v5053
    %5643 = vmatprep.subr.bf16.mxu0 %v5046
    %5644 = vmatpush1.bf16.msra.mxu0 %v5045
    %5645 = vmatprep.subr.bf16.mxu0 %v5038
    %5646 = vmatpush1.bf16.msra.mxu0 %v5037
    %5647 = vmatprep.subr.bf16.mxu0 %v5158
    %5648 = vmatpush2.bf16.msra.mxu0 %v5157
    %5649 = vmatprep.subr.bf16.mxu0 %v5150
    %5650 = vmatpush2.bf16.msra.mxu0 %v5149
    %5651 = vmatprep.subr.bf16.mxu0 %v5142
    %5652 = vmatpush2.bf16.msra.mxu0 %v5141
    %5653 = vmatprep.subr.bf16.mxu0 %v5134
    %5654 = vmatpush2.bf16.msra.mxu0 %v5133
    %5655 = vmatprep.subr.bf16.mxu0 %v5126
    %5656 = vmatpush2.bf16.msra.mxu0 %v5125
    %5657 = vmatprep.subr.bf16.mxu0 %v5118
    %5658 = vmatpush2.bf16.msra.mxu0 %v5117
    %5659 = vmatprep.subr.bf16.mxu0 %v5110
    %5660 = vmatpush2.bf16.msra.mxu0 %v5109
    %5661 = vmatprep.subr.bf16.mxu0 %v5102
    %5662 = vmatpush2.bf16.msra.mxu0 %v5101
    %5663 = vmatprep.mubr.bf16.mxu0 %v3202
    %5664 = vmatmul.mubr.bf16.gmra.mxu0 %v3201
    %v5665 = vpop.f32.mrf.mxu0
    %v5666 = vadd.f32 %v5625, %v5665
    %v5667 = vpop.f32.mrf.mxu0
    %v5668 = vadd.f32 %v5627, %v5667
    %v5669 = vpop.f32.mrf.mxu0
    %v5670 = vpop.f32.mrf.mxu0
    %5671 = vdwg.mxu0
    %5672 = vmatprep.subr.bf16.mxu0 %v4840
    %5673 = vmatpush1.bf16.msra.mxu0 %v4839
    %5674 = vmatprep.subr.bf16.mxu0 %v4832
    %5675 = vmatpush1.bf16.msra.mxu0 %v4831
    %5676 = vmatprep.subr.bf16.mxu0 %v4824
    %5677 = vmatpush1.bf16.msra.mxu0 %v4823
    %5678 = vmatprep.subr.bf16.mxu0 %v4816
    %5679 = vmatpush1.bf16.msra.mxu0 %v4815
    %5680 = vmatprep.subr.bf16.mxu0 %v4808
    %5681 = vmatpush1.bf16.msra.mxu0 %v4807
    %5682 = vmatprep.subr.bf16.mxu0 %v4800
    %5683 = vmatpush1.bf16.msra.mxu0 %v4799
    %5684 = vmatprep.subr.bf16.mxu0 %v4792
    %5685 = vmatpush1.bf16.msra.mxu0 %v4791
    %5686 = vmatprep.subr.bf16.mxu0 %v4784
    %5687 = vmatpush1.bf16.msra.mxu0 %v4783
    %5688 = vmatprep.subr.bf16.mxu0 %v4904
    %5689 = vmatpush2.bf16.msra.mxu0 %v4903
    %5690 = vmatprep.subr.bf16.mxu0 %v4896
    %5691 = vmatpush2.bf16.msra.mxu0 %v4895
    %5692 = vmatprep.subr.bf16.mxu0 %v4888
    %5693 = vmatpush2.bf16.msra.mxu0 %v4887
    %5694 = vmatprep.subr.bf16.mxu0 %v4880
    %5695 = vmatpush2.bf16.msra.mxu0 %v4879
    %5696 = vmatprep.subr.bf16.mxu0 %v4872
    %5697 = vmatpush2.bf16.msra.mxu0 %v4871
    %5698 = vmatprep.subr.bf16.mxu0 %v4864
    %5699 = vmatpush2.bf16.msra.mxu0 %v4863
    %5700 = vmatprep.subr.bf16.mxu0 %v4856
    %5701 = vmatpush2.bf16.msra.mxu0 %v4855
    %5702 = vmatprep.subr.bf16.mxu0 %v4848
    %5703 = vmatpush2.bf16.msra.mxu0 %v4847
    %5704 = vmatprep.mubr.bf16.mxu0 %v3198
    %5705 = vmatmul.mubr.bf16.gmra.mxu0 %v3197
    %v5706 = vpop.f32.mrf.mxu0
    %v5707 = vadd.f32 %v3600, %v5706
    %v5708 = vpop.f32.mrf.mxu0
    %v5709 = vadd.f32 %v3604, %v5708
    %v5710 = vpop.f32.mrf.mxu0
    %v5711 = vpop.f32.mrf.mxu0
    %5712 = vdwg.mxu0
    %5713 = vmatprep.subr.bf16.mxu0 %v4968
    %5714 = vmatpush1.bf16.msra.mxu0 %v4967
    %5715 = vmatprep.subr.bf16.mxu0 %v4960
    %5716 = vmatpush1.bf16.msra.mxu0 %v4959
    %5717 = vmatprep.subr.bf16.mxu0 %v4952
    %5718 = vmatpush1.bf16.msra.mxu0 %v4951
    %5719 = vmatprep.subr.bf16.mxu0 %v4944
    %5720 = vmatpush1.bf16.msra.mxu0 %v4943
    %5721 = vmatprep.subr.bf16.mxu0 %v4936
    %5722 = vmatpush1.bf16.msra.mxu0 %v4935
    %5723 = vmatprep.subr.bf16.mxu0 %v4928
    %5724 = vmatpush1.bf16.msra.mxu0 %v4927
    %5725 = vmatprep.subr.bf16.mxu0 %v4920
    %5726 = vmatpush1.bf16.msra.mxu0 %v4919
    %5727 = vmatprep.subr.bf16.mxu0 %v4912
    %5728 = vmatpush1.bf16.msra.mxu0 %v4911
    %5729 = vmatprep.subr.bf16.mxu0 %v5032
    %5730 = vmatpush2.bf16.msra.mxu0 %v5031
    %5731 = vmatprep.subr.bf16.mxu0 %v5024
    %5732 = vmatpush2.bf16.msra.mxu0 %v5023
    %5733 = vmatprep.subr.bf16.mxu0 %v5016
    %5734 = vmatpush2.bf16.msra.mxu0 %v5015
    %5735 = vmatprep.subr.bf16.mxu0 %v5008
    %5736 = vmatpush2.bf16.msra.mxu0 %v5007
    %5737 = vmatprep.subr.bf16.mxu0 %v5000
    %5738 = vmatpush2.bf16.msra.mxu0 %v4999
    %5739 = vmatprep.subr.bf16.mxu0 %v4992
    %5740 = vmatpush2.bf16.msra.mxu0 %v4991
    %5741 = vmatprep.subr.bf16.mxu0 %v4984
    %5742 = vmatpush2.bf16.msra.mxu0 %v4983
    %5743 = vmatprep.subr.bf16.mxu0 %v4976
    %5744 = vmatpush2.bf16.msra.mxu0 %v4975
    %5745 = vmatprep.mubr.bf16.mxu0 %v3200
    %5746 = vmatmul.mubr.bf16.gmra.mxu0 %v3199
    %v5747 = vpop.f32.mrf.mxu0
    %v5748 = vadd.f32 %v5707, %v5747
    %v5749 = vpop.f32.mrf.mxu0
    %v5750 = vadd.f32 %v5709, %v5749
    %v5751 = vpop.f32.mrf.mxu0
    %v5752 = vpop.f32.mrf.mxu0
    %5753 = vdwg.mxu0
    %5754 = vmatprep.subr.bf16.mxu0 %v5096
    %5755 = vmatpush1.bf16.msra.mxu0 %v5095
    %5756 = vmatprep.subr.bf16.mxu0 %v5088
    %5757 = vmatpush1.bf16.msra.mxu0 %v5087
    %5758 = vmatprep.subr.bf16.mxu0 %v5080
    %5759 = vmatpush1.bf16.msra.mxu0 %v5079
    %5760 = vmatprep.subr.bf16.mxu0 %v5072
    %5761 = vmatpush1.bf16.msra.mxu0 %v5071
    %5762 = vmatprep.subr.bf16.mxu0 %v5064
    %5763 = vmatpush1.bf16.msra.mxu0 %v5063
    %5764 = vmatprep.subr.bf16.mxu0 %v5056
    %5765 = vmatpush1.bf16.msra.mxu0 %v5055
    %5766 = vmatprep.subr.bf16.mxu0 %v5048
    %5767 = vmatpush1.bf16.msra.mxu0 %v5047
    %5768 = vmatprep.subr.bf16.mxu0 %v5040
    %5769 = vmatpush1.bf16.msra.mxu0 %v5039
    %5770 = vmatprep.subr.bf16.mxu0 %v5160
    %5771 = vmatpush2.bf16.msra.mxu0 %v5159
    %5772 = vmatprep.subr.bf16.mxu0 %v5152
    %5773 = vmatpush2.bf16.msra.mxu0 %v5151
    %5774 = vmatprep.subr.bf16.mxu0 %v5144
    %5775 = vmatpush2.bf16.msra.mxu0 %v5143
    %5776 = vmatprep.subr.bf16.mxu0 %v5136
    %5777 = vmatpush2.bf16.msra.mxu0 %v5135
    %5778 = vmatprep.subr.bf16.mxu0 %v5128
    %5779 = vmatpush2.bf16.msra.mxu0 %v5127
    %5780 = vmatprep.subr.bf16.mxu0 %v5120
    %5781 = vmatpush2.bf16.msra.mxu0 %v5119
    %5782 = vmatprep.subr.bf16.mxu0 %v5112
    %5783 = vmatpush2.bf16.msra.mxu0 %v5111
    %5784 = vmatprep.subr.bf16.mxu0 %v5104
    %5785 = vmatpush2.bf16.msra.mxu0 %v5103
    %5786 = vmatprep.mubr.bf16.mxu0 %v3202
    %5787 = vmatmul.mubr.bf16.gmra.mxu0 %v3201
    %v5788 = vpop.f32.mrf.mxu0
    %v5789 = vadd.f32 %v5748, %v5788
    %v5790 = vpop.f32.mrf.mxu0
    %v5791 = vadd.f32 %v5750, %v5790
    %v5792 = vpop.f32.mrf.mxu0
    %v5793 = vpop.f32.mrf.mxu0
    %5794 = vdwg.mxu0
    %5795 = vmatprep.subr.bf16.mxu0 %v4842
    %5796 = vmatpush1.bf16.msra.mxu0 %v4841
    %5797 = vmatprep.subr.bf16.mxu0 %v4834
    %5798 = vmatpush1.bf16.msra.mxu0 %v4833
    %5799 = vmatprep.subr.bf16.mxu0 %v4826
    %5800 = vmatpush1.bf16.msra.mxu0 %v4825
    %5801 = vmatprep.subr.bf16.mxu0 %v4818
    %5802 = vmatpush1.bf16.msra.mxu0 %v4817
    %5803 = vmatprep.subr.bf16.mxu0 %v4810
    %5804 = vmatpush1.bf16.msra.mxu0 %v4809
    %5805 = vmatprep.subr.bf16.mxu0 %v4802
    %5806 = vmatpush1.bf16.msra.mxu0 %v4801
    %5807 = vmatprep.subr.bf16.mxu0 %v4794
    %5808 = vmatpush1.bf16.msra.mxu0 %v4793
    %5809 = vmatprep.subr.bf16.mxu0 %v4786
    %5810 = vmatpush1.bf16.msra.mxu0 %v4785
    %5811 = vmatprep.subr.bf16.mxu0 %v4906
    %5812 = vmatpush2.bf16.msra.mxu0 %v4905
    %5813 = vmatprep.subr.bf16.mxu0 %v4898
    %5814 = vmatpush2.bf16.msra.mxu0 %v4897
    %5815 = vmatprep.subr.bf16.mxu0 %v4890
    %5816 = vmatpush2.bf16.msra.mxu0 %v4889
    %5817 = vmatprep.subr.bf16.mxu0 %v4882
    %5818 = vmatpush2.bf16.msra.mxu0 %v4881
    %5819 = vmatprep.subr.bf16.mxu0 %v4874
    %5820 = vmatpush2.bf16.msra.mxu0 %v4873
    %5821 = vmatprep.subr.bf16.mxu0 %v4866
    %5822 = vmatpush2.bf16.msra.mxu0 %v4865
    %5823 = vmatprep.subr.bf16.mxu0 %v4858
    %5824 = vmatpush2.bf16.msra.mxu0 %v4857
    %5825 = vmatprep.subr.bf16.mxu0 %v4850
    %5826 = vmatpush2.bf16.msra.mxu0 %v4849
    %5827 = vmatprep.mubr.bf16.mxu0 %v3198
    %5828 = vmatmul.mubr.bf16.gmra.mxu0 %v3197
    %v5829 = vpop.f32.mrf.mxu0
    %v5830 = vadd.f32 %v3608, %v5829
    %v5831 = vpop.f32.mrf.mxu0
    %v5832 = vadd.f32 %v3612, %v5831
    %v5833 = vpop.f32.mrf.mxu0
    %v5834 = vpop.f32.mrf.mxu0
    %5835 = vdwg.mxu0
    %5836 = vmatprep.subr.bf16.mxu0 %v4970
    %5837 = vmatpush1.bf16.msra.mxu0 %v4969
    %5838 = vmatprep.subr.bf16.mxu0 %v4962
    %5839 = vmatpush1.bf16.msra.mxu0 %v4961
    %5840 = vmatprep.subr.bf16.mxu0 %v4954
    %5841 = vmatpush1.bf16.msra.mxu0 %v4953
    %5842 = vmatprep.subr.bf16.mxu0 %v4946
    %5843 = vmatpush1.bf16.msra.mxu0 %v4945
    %5844 = vmatprep.subr.bf16.mxu0 %v4938
    %5845 = vmatpush1.bf16.msra.mxu0 %v4937
    %5846 = vmatprep.subr.bf16.mxu0 %v4930
    %5847 = vmatpush1.bf16.msra.mxu0 %v4929
    %5848 = vmatprep.subr.bf16.mxu0 %v4922
    %5849 = vmatpush1.bf16.msra.mxu0 %v4921
    %5850 = vmatprep.subr.bf16.mxu0 %v4914
    %5851 = vmatpush1.bf16.msra.mxu0 %v4913
    %5852 = vmatprep.subr.bf16.mxu0 %v5034
    %5853 = vmatpush2.bf16.msra.mxu0 %v5033
    %5854 = vmatprep.subr.bf16.mxu0 %v5026
    %5855 = vmatpush2.bf16.msra.mxu0 %v5025
    %5856 = vmatprep.subr.bf16.mxu0 %v5018
    %5857 = vmatpush2.bf16.msra.mxu0 %v5017
    %5858 = vmatprep.subr.bf16.mxu0 %v5010
    %5859 = vmatpush2.bf16.msra.mxu0 %v5009
    %5860 = vmatprep.subr.bf16.mxu0 %v5002
    %5861 = vmatpush2.bf16.msra.mxu0 %v5001
    %5862 = vmatprep.subr.bf16.mxu0 %v4994
    %5863 = vmatpush2.bf16.msra.mxu0 %v4993
    %5864 = vmatprep.subr.bf16.mxu0 %v4986
    %5865 = vmatpush2.bf16.msra.mxu0 %v4985
    %5866 = vmatprep.subr.bf16.mxu0 %v4978
    %5867 = vmatpush2.bf16.msra.mxu0 %v4977
    %5868 = vmatprep.mubr.bf16.mxu0 %v3200
    %5869 = vmatmul.mubr.bf16.gmra.mxu0 %v3199
    %v5870 = vpop.f32.mrf.mxu0
    %v5871 = vadd.f32 %v5830, %v5870
    %v5872 = vpop.f32.mrf.mxu0
    %v5873 = vadd.f32 %v5832, %v5872
    %v5874 = vpop.f32.mrf.mxu0
    %v5875 = vpop.f32.mrf.mxu0
    %5876 = vdwg.mxu0
    %5877 = vmatprep.subr.bf16.mxu0 %v5098
    %5878 = vmatpush1.bf16.msra.mxu0 %v5097
    %5879 = vmatprep.subr.bf16.mxu0 %v5090
    %5880 = vmatpush1.bf16.msra.mxu0 %v5089
    %5881 = vmatprep.subr.bf16.mxu0 %v5082
    %5882 = vmatpush1.bf16.msra.mxu0 %v5081
    %5883 = vmatprep.subr.bf16.mxu0 %v5074
    %5884 = vmatpush1.bf16.msra.mxu0 %v5073
    %5885 = vmatprep.subr.bf16.mxu0 %v5066
    %5886 = vmatpush1.bf16.msra.mxu0 %v5065
    %5887 = vmatprep.subr.bf16.mxu0 %v5058
    %5888 = vmatpush1.bf16.msra.mxu0 %v5057
    %5889 = vmatprep.subr.bf16.mxu0 %v5050
    %5890 = vmatpush1.bf16.msra.mxu0 %v5049
    %5891 = vmatprep.subr.bf16.mxu0 %v5042
    %5892 = vmatpush1.bf16.msra.mxu0 %v5041
    %5893 = vmatprep.subr.bf16.mxu0 %v5162
    %5894 = vmatpush2.bf16.msra.mxu0 %v5161
    %5895 = vmatprep.subr.bf16.mxu0 %v5154
    %5896 = vmatpush2.bf16.msra.mxu0 %v5153
    %5897 = vmatprep.subr.bf16.mxu0 %v5146
    %5898 = vmatpush2.bf16.msra.mxu0 %v5145
    %5899 = vmatprep.subr.bf16.mxu0 %v5138
    %5900 = vmatpush2.bf16.msra.mxu0 %v5137
    %5901 = vmatprep.subr.bf16.mxu0 %v5130
    %5902 = vmatpush2.bf16.msra.mxu0 %v5129
    %5903 = vmatprep.subr.bf16.mxu0 %v5122
    %5904 = vmatpush2.bf16.msra.mxu0 %v5121
    %5905 = vmatprep.subr.bf16.mxu0 %v5114
    %5906 = vmatpush2.bf16.msra.mxu0 %v5113
    %5907 = vmatprep.subr.bf16.mxu0 %v5106
    %5908 = vmatpush2.bf16.msra.mxu0 %v5105
    %5909 = vmatprep.mubr.bf16.mxu0 %v3202
    %5910 = vmatmul.mubr.bf16.gmra.mxu0 %v3201
    %v5911 = vpop.f32.mrf.mxu0
    %v5912 = vadd.f32 %v5871, %v5911
    %v5913 = vpop.f32.mrf.mxu0
    %v5914 = vadd.f32 %v5873, %v5913
    %v5915 = vpop.f32.mrf.mxu0
    %v5916 = vpop.f32.mrf.mxu0
    %5917 = vdwg.mxu0
    %5918 = vmatprep.subr.bf16.mxu0 %v4844
    %5919 = vmatpush1.bf16.msra.mxu0 %v4843
    %5920 = vmatprep.subr.bf16.mxu0 %v4836
    %5921 = vmatpush1.bf16.msra.mxu0 %v4835
    %5922 = vmatprep.subr.bf16.mxu0 %v4828
    %5923 = vmatpush1.bf16.msra.mxu0 %v4827
    %5924 = vmatprep.subr.bf16.mxu0 %v4820
    %5925 = vmatpush1.bf16.msra.mxu0 %v4819
    %5926 = vmatprep.subr.bf16.mxu0 %v4812
    %5927 = vmatpush1.bf16.msra.mxu0 %v4811
    %5928 = vmatprep.subr.bf16.mxu0 %v4804
    %5929 = vmatpush1.bf16.msra.mxu0 %v4803
    %5930 = vmatprep.subr.bf16.mxu0 %v4796
    %5931 = vmatpush1.bf16.msra.mxu0 %v4795
    %5932 = vmatprep.subr.bf16.mxu0 %v4788
    %5933 = vmatpush1.bf16.msra.mxu0 %v4787
    %5934 = vmatprep.subr.bf16.mxu0 %v4908
    %5935 = vmatpush2.bf16.msra.mxu0 %v4907
    %5936 = vmatprep.subr.bf16.mxu0 %v4900
    %5937 = vmatpush2.bf16.msra.mxu0 %v4899
    %5938 = vmatprep.subr.bf16.mxu0 %v4892
    %5939 = vmatpush2.bf16.msra.mxu0 %v4891
    %5940 = vmatprep.subr.bf16.mxu0 %v4884
    %5941 = vmatpush2.bf16.msra.mxu0 %v4883
    %5942 = vmatprep.subr.bf16.mxu0 %v4876
    %5943 = vmatpush2.bf16.msra.mxu0 %v4875
    %5944 = vmatprep.subr.bf16.mxu0 %v4868
    %5945 = vmatpush2.bf16.msra.mxu0 %v4867
    %5946 = vmatprep.subr.bf16.mxu0 %v4860
    %5947 = vmatpush2.bf16.msra.mxu0 %v4859
    %5948 = vmatprep.subr.bf16.mxu0 %v4852
    %5949 = vmatpush2.bf16.msra.mxu0 %v4851
    %5950 = vmatprep.mubr.bf16.mxu0 %v3198
    %5951 = vmatmul.mubr.bf16.gmra.mxu0 %v3197
    %v5952 = vpop.f32.mrf.mxu0
    %v5953 = vadd.f32 %v3616, %v5952
    %v5954 = vpop.f32.mrf.mxu0
    %v5955 = vadd.f32 %v3620, %v5954
    %v5956 = vpop.f32.mrf.mxu0
    %v5957 = vpop.f32.mrf.mxu0
    %5958 = vdwg.mxu0
    %5959 = vmatprep.subr.bf16.mxu0 %v4972
    %5960 = vmatpush1.bf16.msra.mxu0 %v4971
    %5961 = vmatprep.subr.bf16.mxu0 %v4964
    %5962 = vmatpush1.bf16.msra.mxu0 %v4963
    %5963 = vmatprep.subr.bf16.mxu0 %v4956
    %5964 = vmatpush1.bf16.msra.mxu0 %v4955
    %5965 = vmatprep.subr.bf16.mxu0 %v4948
    %5966 = vmatpush1.bf16.msra.mxu0 %v4947
    %5967 = vmatprep.subr.bf16.mxu0 %v4940
    %5968 = vmatpush1.bf16.msra.mxu0 %v4939
    %5969 = vmatprep.subr.bf16.mxu0 %v4932
    %5970 = vmatpush1.bf16.msra.mxu0 %v4931
    %5971 = vmatprep.subr.bf16.mxu0 %v4924
    %5972 = vmatpush1.bf16.msra.mxu0 %v4923
    %5973 = vmatprep.subr.bf16.mxu0 %v4916
    %5974 = vmatpush1.bf16.msra.mxu0 %v4915
    %5975 = vmatprep.subr.bf16.mxu0 %v5036
    %5976 = vmatpush2.bf16.msra.mxu0 %v5035
    %5977 = vmatprep.subr.bf16.mxu0 %v5028
    %5978 = vmatpush2.bf16.msra.mxu0 %v5027
    %5979 = vmatprep.subr.bf16.mxu0 %v5020
    %5980 = vmatpush2.bf16.msra.mxu0 %v5019
    %5981 = vmatprep.subr.bf16.mxu0 %v5012
    %5982 = vmatpush2.bf16.msra.mxu0 %v5011
    %5983 = vmatprep.subr.bf16.mxu0 %v5004
    %5984 = vmatpush2.bf16.msra.mxu0 %v5003
    %5985 = vmatprep.subr.bf16.mxu0 %v4996
    %5986 = vmatpush2.bf16.msra.mxu0 %v4995
    %5987 = vmatprep.subr.bf16.mxu0 %v4988
    %5988 = vmatpush2.bf16.msra.mxu0 %v4987
    %5989 = vmatprep.subr.bf16.mxu0 %v4980
    %5990 = vmatpush2.bf16.msra.mxu0 %v4979
    %5991 = vmatprep.mubr.bf16.mxu0 %v3200
    %5992 = vmatmul.mubr.bf16.gmra.mxu0 %v3199
    %v5993 = vpop.f32.mrf.mxu0
    %v5994 = vadd.f32 %v5953, %v5993
    %v5995 = vpop.f32.mrf.mxu0
    %v5996 = vadd.f32 %v5955, %v5995
    %v5997 = vpop.f32.mrf.mxu0
    %v5998 = vpop.f32.mrf.mxu0
    %5999 = vdwg.mxu0
    %6000 = vmatprep.subr.bf16.mxu0 %v5100
    %6001 = vmatpush1.bf16.msra.mxu0 %v5099
    %6002 = vmatprep.subr.bf16.mxu0 %v5092
    %6003 = vmatpush1.bf16.msra.mxu0 %v5091
    %6004 = vmatprep.subr.bf16.mxu0 %v5084
    %6005 = vmatpush1.bf16.msra.mxu0 %v5083
    %6006 = vmatprep.subr.bf16.mxu0 %v5076
    %6007 = vmatpush1.bf16.msra.mxu0 %v5075
    %6008 = vmatprep.subr.bf16.mxu0 %v5068
    %6009 = vmatpush1.bf16.msra.mxu0 %v5067
    %6010 = vmatprep.subr.bf16.mxu0 %v5060
    %6011 = vmatpush1.bf16.msra.mxu0 %v5059
    %6012 = vmatprep.subr.bf16.mxu0 %v5052
    %6013 = vmatpush1.bf16.msra.mxu0 %v5051
    %6014 = vmatprep.subr.bf16.mxu0 %v5044
    %6015 = vmatpush1.bf16.msra.mxu0 %v5043
    %6016 = vmatprep.subr.bf16.mxu0 %v5164
    %6017 = vmatpush2.bf16.msra.mxu0 %v5163
    %6018 = vmatprep.subr.bf16.mxu0 %v5156
    %6019 = vmatpush2.bf16.msra.mxu0 %v5155
    %6020 = vmatprep.subr.bf16.mxu0 %v5148
    %6021 = vmatpush2.bf16.msra.mxu0 %v5147
    %6022 = vmatprep.subr.bf16.mxu0 %v5140
    %6023 = vmatpush2.bf16.msra.mxu0 %v5139
    %6024 = vmatprep.subr.bf16.mxu0 %v5132
    %6025 = vmatpush2.bf16.msra.mxu0 %v5131
    %6026 = vmatprep.subr.bf16.mxu0 %v5124
    %6027 = vmatpush2.bf16.msra.mxu0 %v5123
    %6028 = vmatprep.subr.bf16.mxu0 %v5116
    %6029 = vmatpush2.bf16.msra.mxu0 %v5115
    %6030 = vmatprep.subr.bf16.mxu0 %v5108
    %6031 = vmatpush2.bf16.msra.mxu0 %v5107
    %6032 = vmatprep.mubr.bf16.mxu0 %v3202
    %6033 = vmatmul.mubr.bf16.gmra.mxu0 %v3201
    %v6034 = vpop.f32.mrf.mxu0
    %v6035 = vadd.f32 %v5994, %v6034
    %v6036 = vpop.f32.mrf.mxu0
    %v6037 = vadd.f32 %v5996, %v6036
    %v6038 = vpop.f32.mrf.mxu0
    %v6039 = vpop.f32.mrf.mxu0
    %6040 = vdwg.mxu0
    %v6041 = vmax.f32 %v5666, 0.0
    %v6042 = vmax.f32 %v5668, 0.0
    %v6043 = vmax.f32 %v5789, 0.0
    %v6044 = vmax.f32 %v5791, 0.0
    %v6045 = vmax.f32 %v5912, 0.0
    %v6046 = vmax.f32 %v5914, 0.0
    %v6047 = vmax.f32 %v6035, 0.0
    %v6048 = vmax.f32 %v6037, 0.0
    %s6049 = smul.u32 4, 128
    %s6050 = smul.u32 %s6049, 1
    %s6051 = sshll.u32 %s6050, 4
    %6052 = dma.done %s833, %s6051
    %v6053 = vpack.c.bf16 %v6041, %v6041
    %v6054 = vpack.c.bf16 %v6042, %v6042
    %v6055 = vpack.c.bf16 %v6043, %v6043
    %v6056 = vpack.c.bf16 %v6044, %v6044
    %v6057 = vpack.c.bf16 %v6045, %v6045
    %v6058 = vpack.c.bf16 %v6046, %v6046
    %v6059 = vpack.c.bf16 %v6047, %v6047
    %v6060 = vpack.c.bf16 %v6048, %v6048
    %v6061 = vld [vmem:[#allocation3] sm:$0xf]
    %v6062 = vld [vmem:[#allocation3 + $0x4] sm:$0xf]
    %v6063 = vld [vmem:[#allocation3 + $0x8] sm:$0xf]
    %v6064 = vld [vmem:[#allocation3 + $0xc] sm:$0xf]
    %v6065 = vld [vmem:[#allocation3 + $0x10] sm:$0xf]
    %v6066 = vld [vmem:[#allocation3 + $0x14] sm:$0xf]
    %v6067 = vld [vmem:[#allocation3 + $0x18] sm:$0xf]
    %v6068 = vld [vmem:[#allocation3 + $0x1c] sm:$0xf]
    %v6069 = vld [vmem:[#allocation3 + $0x20] sm:$0xf]
    %v6070 = vld [vmem:[#allocation3 + $0x24] sm:$0xf]
    %v6071 = vld [vmem:[#allocation3 + $0x28] sm:$0xf]
    %v6072 = vld [vmem:[#allocation3 + $0x2c] sm:$0xf]
    %v6073 = vld [vmem:[#allocation3 + $0x30] sm:$0xf]
    %v6074 = vld [vmem:[#allocation3 + $0x34] sm:$0xf]
    %v6075 = vld [vmem:[#allocation3 + $0x38] sm:$0xf]
    %v6076 = vld [vmem:[#allocation3 + $0x3c] sm:$0xf]
    %v6077 = vld [vmem:[#allocation3 + $0x40] sm:$0xf]
    %v6078 = vld [vmem:[#allocation3 + $0x44] sm:$0xf]
    %v6079 = vld [vmem:[#allocation3 + $0x48] sm:$0xf]
    %v6080 = vld [vmem:[#allocation3 + $0x4c] sm:$0xf]
    %v6081 = vld [vmem:[#allocation3 + $0x50] sm:$0xf]
    %v6082 = vld [vmem:[#allocation3 + $0x54] sm:$0xf]
    %v6083 = vld [vmem:[#allocation3 + $0x58] sm:$0xf]
    %v6084 = vld [vmem:[#allocation3 + $0x5c] sm:$0xf]
    %v6085 = vld [vmem:[#allocation3 + $0x60] sm:$0xf]
    %v6086 = vld [vmem:[#allocation3 + $0x64] sm:$0xf]
    %v6087 = vld [vmem:[#allocation3 + $0x68] sm:$0xf]
    %v6088 = vld [vmem:[#allocation3 + $0x6c] sm:$0xf]
    %v6089 = vld [vmem:[#allocation3 + $0x70] sm:$0xf]
    %v6090 = vld [vmem:[#allocation3 + $0x74] sm:$0xf]
    %v6091 = vld [vmem:[#allocation3 + $0x78] sm:$0xf]
    %v6092 = vld [vmem:[#allocation3 + $0x7c] sm:$0xf]
    %v6093 = vld [vmem:[#allocation3 + $0x80] sm:$0xf]
    %v6094 = vld [vmem:[#allocation3 + $0x84] sm:$0xf]
    %v6095 = vld [vmem:[#allocation3 + $0x88] sm:$0xf]
    %v6096 = vld [vmem:[#allocation3 + $0x8c] sm:$0xf]
    %v6097 = vld [vmem:[#allocation3 + $0x90] sm:$0xf]
    %v6098 = vld [vmem:[#allocation3 + $0x94] sm:$0xf]
    %v6099 = vld [vmem:[#allocation3 + $0x98] sm:$0xf]
    %v6100 = vld [vmem:[#allocation3 + $0x9c] sm:$0xf]
    %v6101 = vld [vmem:[#allocation3 + $0xa0] sm:$0xf]
    %v6102 = vld [vmem:[#allocation3 + $0xa4] sm:$0xf]
    %v6103 = vld [vmem:[#allocation3 + $0xa8] sm:$0xf]
    %v6104 = vld [vmem:[#allocation3 + $0xac] sm:$0xf]
    %v6105 = vld [vmem:[#allocation3 + $0xb0] sm:$0xf]
    %v6106 = vld [vmem:[#allocation3 + $0xb4] sm:$0xf]
    %v6107 = vld [vmem:[#allocation3 + $0xb8] sm:$0xf]
    %v6108 = vld [vmem:[#allocation3 + $0xbc] sm:$0xf]
    %v6109 = vld [vmem:[#allocation3 + $0xc0] sm:$0xf]
    %v6110 = vld [vmem:[#allocation3 + $0xc4] sm:$0xf]
    %v6111 = vld [vmem:[#allocation3 + $0xc8] sm:$0xf]
    %v6112 = vld [vmem:[#allocation3 + $0xcc] sm:$0xf]
    %v6113 = vld [vmem:[#allocation3 + $0xd0] sm:$0xf]
    %v6114 = vld [vmem:[#allocation3 + $0xd4] sm:$0xf]
    %v6115 = vld [vmem:[#allocation3 + $0xd8] sm:$0xf]
    %v6116 = vld [vmem:[#allocation3 + $0xdc] sm:$0xf]
    %v6117 = vld [vmem:[#allocation3 + $0xe0] sm:$0xf]
    %v6118 = vld [vmem:[#allocation3 + $0xe4] sm:$0xf]
    %v6119 = vld [vmem:[#allocation3 + $0xe8] sm:$0xf]
    %v6120 = vld [vmem:[#allocation3 + $0xec] sm:$0xf]
    %v6121 = vld [vmem:[#allocation3 + $0xf0] sm:$0xf]
    %v6122 = vld [vmem:[#allocation3 + $0xf4] sm:$0xf]
    %v6123 = vld [vmem:[#allocation3 + $0xf8] sm:$0xf]
    %v6124 = vld [vmem:[#allocation3 + $0xfc] sm:$0xf]
    %v6125 = vld [vmem:[#allocation3 + $0x100] sm:$0xf]
    %v6126 = vld [vmem:[#allocation3 + $0x104] sm:$0xf]
    %v6127 = vld [vmem:[#allocation3 + $0x108] sm:$0xf]
    %v6128 = vld [vmem:[#allocation3 + $0x10c] sm:$0xf]
    %v6129 = vld [vmem:[#allocation3 + $0x110] sm:$0xf]
    %v6130 = vld [vmem:[#allocation3 + $0x114] sm:$0xf]
    %v6131 = vld [vmem:[#allocation3 + $0x118] sm:$0xf]
    %v6132 = vld [vmem:[#allocation3 + $0x11c] sm:$0xf]
    %v6133 = vld [vmem:[#allocation3 + $0x120] sm:$0xf]
    %v6134 = vld [vmem:[#allocation3 + $0x124] sm:$0xf]
    %v6135 = vld [vmem:[#allocation3 + $0x128] sm:$0xf]
    %v6136 = vld [vmem:[#allocation3 + $0x12c] sm:$0xf]
    %v6137 = vld [vmem:[#allocation3 + $0x130] sm:$0xf]
    %v6138 = vld [vmem:[#allocation3 + $0x134] sm:$0xf]
    %v6139 = vld [vmem:[#allocation3 + $0x138] sm:$0xf]
    %v6140 = vld [vmem:[#allocation3 + $0x13c] sm:$0xf]
    %v6141 = vld [vmem:[#allocation3 + $0x140] sm:$0xf]
    %v6142 = vld [vmem:[#allocation3 + $0x144] sm:$0xf]
    %v6143 = vld [vmem:[#allocation3 + $0x148] sm:$0xf]
    %v6144 = vld [vmem:[#allocation3 + $0x14c] sm:$0xf]
    %v6145 = vld [vmem:[#allocation3 + $0x150] sm:$0xf]
    %v6146 = vld [vmem:[#allocation3 + $0x154] sm:$0xf]
    %v6147 = vld [vmem:[#allocation3 + $0x158] sm:$0xf]
    %v6148 = vld [vmem:[#allocation3 + $0x15c] sm:$0xf]
    %v6149 = vld [vmem:[#allocation3 + $0x160] sm:$0xf]
    %v6150 = vld [vmem:[#allocation3 + $0x164] sm:$0xf]
    %v6151 = vld [vmem:[#allocation3 + $0x168] sm:$0xf]
    %v6152 = vld [vmem:[#allocation3 + $0x16c] sm:$0xf]
    %v6153 = vld [vmem:[#allocation3 + $0x170] sm:$0xf]
    %v6154 = vld [vmem:[#allocation3 + $0x174] sm:$0xf]
    %v6155 = vld [vmem:[#allocation3 + $0x178] sm:$0xf]
    %v6156 = vld [vmem:[#allocation3 + $0x17c] sm:$0xf]
    %v6157 = vld [vmem:[#allocation3 + $0x180] sm:$0xf]
    %v6158 = vld [vmem:[#allocation3 + $0x184] sm:$0xf]
    %v6159 = vld [vmem:[#allocation3 + $0x188] sm:$0xf]
    %v6160 = vld [vmem:[#allocation3 + $0x18c] sm:$0xf]
    %v6161 = vld [vmem:[#allocation3 + $0x190] sm:$0xf]
    %v6162 = vld [vmem:[#allocation3 + $0x194] sm:$0xf]
    %v6163 = vld [vmem:[#allocation3 + $0x198] sm:$0xf]
    %v6164 = vld [vmem:[#allocation3 + $0x19c] sm:$0xf]
    %v6165 = vld [vmem:[#allocation3 + $0x1a0] sm:$0xf]
    %v6166 = vld [vmem:[#allocation3 + $0x1a4] sm:$0xf]
    %v6167 = vld [vmem:[#allocation3 + $0x1a8] sm:$0xf]
    %v6168 = vld [vmem:[#allocation3 + $0x1ac] sm:$0xf]
    %v6169 = vld [vmem:[#allocation3 + $0x1b0] sm:$0xf]
    %v6170 = vld [vmem:[#allocation3 + $0x1b4] sm:$0xf]
    %v6171 = vld [vmem:[#allocation3 + $0x1b8] sm:$0xf]
    %v6172 = vld [vmem:[#allocation3 + $0x1bc] sm:$0xf]
    %v6173 = vld [vmem:[#allocation3 + $0x1c0] sm:$0xf]
    %v6174 = vld [vmem:[#allocation3 + $0x1c4] sm:$0xf]
    %v6175 = vld [vmem:[#allocation3 + $0x1c8] sm:$0xf]
    %v6176 = vld [vmem:[#allocation3 + $0x1cc] sm:$0xf]
    %v6177 = vld [vmem:[#allocation3 + $0x1d0] sm:$0xf]
    %v6178 = vld [vmem:[#allocation3 + $0x1d4] sm:$0xf]
    %v6179 = vld [vmem:[#allocation3 + $0x1d8] sm:$0xf]
    %v6180 = vld [vmem:[#allocation3 + $0x1dc] sm:$0xf]
    %v6181 = vld [vmem:[#allocation3 + $0x1e0] sm:$0xf]
    %v6182 = vld [vmem:[#allocation3 + $0x1e4] sm:$0xf]
    %v6183 = vld [vmem:[#allocation3 + $0x1e8] sm:$0xf]
    %v6184 = vld [vmem:[#allocation3 + $0x1ec] sm:$0xf]
    %v6185 = vld [vmem:[#allocation3 + $0x1f0] sm:$0xf]
    %v6186 = vld [vmem:[#allocation3 + $0x1f4] sm:$0xf]
    %v6187 = vld [vmem:[#allocation3 + $0x1f8] sm:$0xf]
    %v6188 = vld [vmem:[#allocation3 + $0x1fc] sm:$0xf]
    %v6189 = vld [vmem:[%s4] sm:$0x1]
    %v6191 = vlaneseq
    %v6192 = vshrl.u32 %v6191, 7
    %v6193 = vsub.s32 0, %v6192
    %v6194 = vrot.slane %v6189, %v6193
    %v6324 = vunpack.c.l.b16 %v6061
    %v6325 = vunpack.c.l.b16 %v6062
    %v6326 = vunpack.c.l.b16 %v6063
    %v6327 = vunpack.c.l.b16 %v6064
    %v6328 = vunpack.c.l.b16 %v6065
    %v6329 = vunpack.c.l.b16 %v6066
    %v6330 = vunpack.c.l.b16 %v6067
    %v6331 = vunpack.c.l.b16 %v6068
    %v6332 = vunpack.c.l.b16 %v6069
    %v6333 = vunpack.c.l.b16 %v6070
    %v6334 = vunpack.c.l.b16 %v6071
    %v6335 = vunpack.c.l.b16 %v6072
    %v6336 = vunpack.c.l.b16 %v6073
    %v6337 = vunpack.c.l.b16 %v6074
    %v6338 = vunpack.c.l.b16 %v6075
    %v6339 = vunpack.c.l.b16 %v6076
    %v6340 = vunpack.c.l.b16 %v6077
    %v6341 = vunpack.c.l.b16 %v6078
    %v6342 = vunpack.c.l.b16 %v6079
    %v6343 = vunpack.c.l.b16 %v6080
    %v6344 = vunpack.c.l.b16 %v6081
    %v6345 = vunpack.c.l.b16 %v6082
    %v6346 = vunpack.c.l.b16 %v6083
    %v6347 = vunpack.c.l.b16 %v6084
    %v6348 = vunpack.c.l.b16 %v6085
    %v6349 = vunpack.c.l.b16 %v6086
    %v6350 = vunpack.c.l.b16 %v6087
    %v6351 = vunpack.c.l.b16 %v6088
    %v6352 = vunpack.c.l.b16 %v6089
    %v6353 = vunpack.c.l.b16 %v6090
    %v6354 = vunpack.c.l.b16 %v6091
    %v6355 = vunpack.c.l.b16 %v6092
    %v6356 = vunpack.c.l.b16 %v6093
    %v6357 = vunpack.c.l.b16 %v6094
    %v6358 = vunpack.c.l.b16 %v6095
    %v6359 = vunpack.c.l.b16 %v6096
    %v6360 = vunpack.c.l.b16 %v6097
    %v6361 = vunpack.c.l.b16 %v6098
    %v6362 = vunpack.c.l.b16 %v6099
    %v6363 = vunpack.c.l.b16 %v6100
    %v6364 = vunpack.c.l.b16 %v6101
    %v6365 = vunpack.c.l.b16 %v6102
    %v6366 = vunpack.c.l.b16 %v6103
    %v6367 = vunpack.c.l.b16 %v6104
    %v6368 = vunpack.c.l.b16 %v6105
    %v6369 = vunpack.c.l.b16 %v6106
    %v6370 = vunpack.c.l.b16 %v6107
    %v6371 = vunpack.c.l.b16 %v6108
    %v6372 = vunpack.c.l.b16 %v6109
    %v6373 = vunpack.c.l.b16 %v6110
    %v6374 = vunpack.c.l.b16 %v6111
    %v6375 = vunpack.c.l.b16 %v6112
    %v6376 = vunpack.c.l.b16 %v6113
    %v6377 = vunpack.c.l.b16 %v6114
    %v6378 = vunpack.c.l.b16 %v6115
    %v6379 = vunpack.c.l.b16 %v6116
    %v6380 = vunpack.c.l.b16 %v6117
    %v6381 = vunpack.c.l.b16 %v6118
    %v6382 = vunpack.c.l.b16 %v6119
    %v6383 = vunpack.c.l.b16 %v6120
    %v6384 = vunpack.c.l.b16 %v6121
    %v6385 = vunpack.c.l.b16 %v6122
    %v6386 = vunpack.c.l.b16 %v6123
    %v6387 = vunpack.c.l.b16 %v6124
    %v6388 = vunpack.c.l.b16 %v6125
    %v6389 = vunpack.c.l.b16 %v6126
    %v6390 = vunpack.c.l.b16 %v6127
    %v6391 = vunpack.c.l.b16 %v6128
    %v6392 = vunpack.c.l.b16 %v6129
    %v6393 = vunpack.c.l.b16 %v6130
    %v6394 = vunpack.c.l.b16 %v6131
    %v6395 = vunpack.c.l.b16 %v6132
    %v6396 = vunpack.c.l.b16 %v6133
    %v6397 = vunpack.c.l.b16 %v6134
    %v6398 = vunpack.c.l.b16 %v6135
    %v6399 = vunpack.c.l.b16 %v6136
    %v6400 = vunpack.c.l.b16 %v6137
    %v6401 = vunpack.c.l.b16 %v6138
    %v6402 = vunpack.c.l.b16 %v6139
    %v6403 = vunpack.c.l.b16 %v6140
    %v6404 = vunpack.c.l.b16 %v6141
    %v6405 = vunpack.c.l.b16 %v6142
    %v6406 = vunpack.c.l.b16 %v6143
    %v6407 = vunpack.c.l.b16 %v6144
    %v6408 = vunpack.c.l.b16 %v6145
    %v6409 = vunpack.c.l.b16 %v6146
    %v6410 = vunpack.c.l.b16 %v6147
    %v6411 = vunpack.c.l.b16 %v6148
    %v6412 = vunpack.c.l.b16 %v6149
    %v6413 = vunpack.c.l.b16 %v6150
    %v6414 = vunpack.c.l.b16 %v6151
    %v6415 = vunpack.c.l.b16 %v6152
    %v6416 = vunpack.c.l.b16 %v6153
    %v6417 = vunpack.c.l.b16 %v6154
    %v6418 = vunpack.c.l.b16 %v6155
    %v6419 = vunpack.c.l.b16 %v6156
    %v6420 = vunpack.c.l.b16 %v6157
    %v6421 = vunpack.c.l.b16 %v6158
    %v6422 = vunpack.c.l.b16 %v6159
    %v6423 = vunpack.c.l.b16 %v6160
    %v6424 = vunpack.c.l.b16 %v6161
    %v6425 = vunpack.c.l.b16 %v6162
    %v6426 = vunpack.c.l.b16 %v6163
    %v6427 = vunpack.c.l.b16 %v6164
    %v6428 = vunpack.c.l.b16 %v6165
    %v6429 = vunpack.c.l.b16 %v6166
    %v6430 = vunpack.c.l.b16 %v6167
    %v6431 = vunpack.c.l.b16 %v6168
    %v6432 = vunpack.c.l.b16 %v6169
    %v6433 = vunpack.c.l.b16 %v6170
    %v6434 = vunpack.c.l.b16 %v6171
    %v6435 = vunpack.c.l.b16 %v6172
    %v6436 = vunpack.c.l.b16 %v6173
    %v6437 = vunpack.c.l.b16 %v6174
    %v6438 = vunpack.c.l.b16 %v6175
    %v6439 = vunpack.c.l.b16 %v6176
    %v6440 = vunpack.c.l.b16 %v6177
    %v6441 = vunpack.c.l.b16 %v6178
    %v6442 = vunpack.c.l.b16 %v6179
    %v6443 = vunpack.c.l.b16 %v6180
    %v6444 = vunpack.c.l.b16 %v6181
    %v6445 = vunpack.c.l.b16 %v6182
    %v6446 = vunpack.c.l.b16 %v6183
    %v6447 = vunpack.c.l.b16 %v6184
    %v6448 = vunpack.c.l.b16 %v6185
    %v6449 = vunpack.c.l.b16 %v6186
    %v6450 = vunpack.c.l.b16 %v6187
    %v6451 = vunpack.c.l.b16 %v6188
    %v6452 = vpack.c.b16 %v6325, %v6324
    %v6453 = vpack.c.b16 %v6327, %v6326
    %v6454 = vpack.c.b16 %v6329, %v6328
    %v6455 = vpack.c.b16 %v6331, %v6330
    %v6456 = vpack.c.b16 %v6333, %v6332
    %v6457 = vpack.c.b16 %v6335, %v6334
    %v6458 = vpack.c.b16 %v6337, %v6336
    %v6459 = vpack.c.b16 %v6339, %v6338
    %v6460 = vpack.c.b16 %v6341, %v6340
    %v6461 = vpack.c.b16 %v6343, %v6342
    %v6462 = vpack.c.b16 %v6345, %v6344
    %v6463 = vpack.c.b16 %v6347, %v6346
    %v6464 = vpack.c.b16 %v6349, %v6348
    %v6465 = vpack.c.b16 %v6351, %v6350
    %v6466 = vpack.c.b16 %v6353, %v6352
    %v6467 = vpack.c.b16 %v6355, %v6354
    %v6468 = vpack.c.b16 %v6357, %v6356
    %v6469 = vpack.c.b16 %v6359, %v6358
    %v6470 = vpack.c.b16 %v6361, %v6360
    %v6471 = vpack.c.b16 %v6363, %v6362
    %v6472 = vpack.c.b16 %v6365, %v6364
    %v6473 = vpack.c.b16 %v6367, %v6366
    %v6474 = vpack.c.b16 %v6369, %v6368
    %v6475 = vpack.c.b16 %v6371, %v6370
    %v6476 = vpack.c.b16 %v6373, %v6372
    %v6477 = vpack.c.b16 %v6375, %v6374
    %v6478 = vpack.c.b16 %v6377, %v6376
    %v6479 = vpack.c.b16 %v6379, %v6378
    %v6480 = vpack.c.b16 %v6381, %v6380
    %v6481 = vpack.c.b16 %v6383, %v6382
    %v6482 = vpack.c.b16 %v6385, %v6384
    %v6483 = vpack.c.b16 %v6387, %v6386
    %v6484 = vpack.c.b16 %v6389, %v6388
    %v6485 = vpack.c.b16 %v6391, %v6390
    %v6486 = vpack.c.b16 %v6393, %v6392
    %v6487 = vpack.c.b16 %v6395, %v6394
    %v6488 = vpack.c.b16 %v6397, %v6396
    %v6489 = vpack.c.b16 %v6399, %v6398
    %v6490 = vpack.c.b16 %v6401, %v6400
    %v6491 = vpack.c.b16 %v6403, %v6402
    %v6492 = vpack.c.b16 %v6405, %v6404
    %v6493 = vpack.c.b16 %v6407, %v6406
    %v6494 = vpack.c.b16 %v6409, %v6408
    %v6495 = vpack.c.b16 %v6411, %v6410
    %v6496 = vpack.c.b16 %v6413, %v6412
    %v6497 = vpack.c.b16 %v6415, %v6414
    %v6498 = vpack.c.b16 %v6417, %v6416
    %v6499 = vpack.c.b16 %v6419, %v6418
    %v6500 = vpack.c.b16 %v6421, %v6420
    %v6501 = vpack.c.b16 %v6423, %v6422
    %v6502 = vpack.c.b16 %v6425, %v6424
    %v6503 = vpack.c.b16 %v6427, %v6426
    %v6504 = vpack.c.b16 %v6429, %v6428
    %v6505 = vpack.c.b16 %v6431, %v6430
    %v6506 = vpack.c.b16 %v6433, %v6432
    %v6507 = vpack.c.b16 %v6435, %v6434
    %v6508 = vpack.c.b16 %v6437, %v6436
    %v6509 = vpack.c.b16 %v6439, %v6438
    %v6510 = vpack.c.b16 %v6441, %v6440
    %v6511 = vpack.c.b16 %v6443, %v6442
    %v6512 = vpack.c.b16 %v6445, %v6444
    %v6513 = vpack.c.b16 %v6447, %v6446
    %v6514 = vpack.c.b16 %v6449, %v6448
    %v6515 = vpack.c.b16 %v6451, %v6450
    %6580 = vmatprep.subr.bf16.mxu0 0
    %6581 = vmatpush1.bf16.msra.mxu0 %v6459
    %6582 = vmatprep.subr.bf16.mxu0 0
    %6583 = vmatpush1.bf16.msra.mxu0 %v6458
    %6584 = vmatprep.subr.bf16.mxu0 0
    %6585 = vmatpush1.bf16.msra.mxu0 %v6457
    %6586 = vmatprep.subr.bf16.mxu0 0
    %6587 = vmatpush1.bf16.msra.mxu0 %v6456
    %6588 = vmatprep.subr.bf16.mxu0 0
    %6589 = vmatpush1.bf16.msra.mxu0 %v6455
    %6590 = vmatprep.subr.bf16.mxu0 0
    %6591 = vmatpush1.bf16.msra.mxu0 %v6454
    %6592 = vmatprep.subr.bf16.mxu0 0
    %6593 = vmatpush1.bf16.msra.mxu0 %v6453
    %6594 = vmatprep.subr.bf16.mxu0 0
    %6595 = vmatpush1.bf16.msra.mxu0 %v6452
    %6596 = vmatprep.subr.bf16.mxu0 0
    %6597 = vmatpush2.bf16.msra.mxu0 %v6467
    %6598 = vmatprep.subr.bf16.mxu0 0
    %6599 = vmatpush2.bf16.msra.mxu0 %v6466
    %6600 = vmatprep.subr.bf16.mxu0 0
    %6601 = vmatpush2.bf16.msra.mxu0 %v6465
    %6602 = vmatprep.subr.bf16.mxu0 0
    %6603 = vmatpush2.bf16.msra.mxu0 %v6464
    %6604 = vmatprep.subr.bf16.mxu0 0
    %6605 = vmatpush2.bf16.msra.mxu0 %v6463
    %6606 = vmatprep.subr.bf16.mxu0 0
    %6607 = vmatpush2.bf16.msra.mxu0 %v6462
    %6608 = vmatprep.subr.bf16.mxu0 0
    %6609 = vmatpush2.bf16.msra.mxu0 %v6461
    %6610 = vmatprep.subr.bf16.mxu0 0
    %6611 = vmatpush2.bf16.msra.mxu0 %v6460
    %6612 = vmatprep.mubr.bf16.mxu0 %v6054
    %6613 = vmatmul.mubr.bf16.gmra.mxu0 %v6053
    %v6614 = vpop.f32.mrf.mxu0
    %v6615 = vadd.f32 %v6194, %v6614
    %v6616 = vpop.f32.mrf.mxu0
    %v6617 = vpop.f32.mrf.mxu0
    %v6618 = vpop.f32.mrf.mxu0
    %6619 = vdwg.mxu0
    %6620 = vmatprep.subr.bf16.mxu0 0
    %6621 = vmatpush1.bf16.msra.mxu0 %v6475
    %6622 = vmatprep.subr.bf16.mxu0 0
    %6623 = vmatpush1.bf16.msra.mxu0 %v6474
    %6624 = vmatprep.subr.bf16.mxu0 0
    %6625 = vmatpush1.bf16.msra.mxu0 %v6473
    %6626 = vmatprep.subr.bf16.mxu0 0
    %6627 = vmatpush1.bf16.msra.mxu0 %v6472
    %6628 = vmatprep.subr.bf16.mxu0 0
    %6629 = vmatpush1.bf16.msra.mxu0 %v6471
    %6630 = vmatprep.subr.bf16.mxu0 0
    %6631 = vmatpush1.bf16.msra.mxu0 %v6470
    %6632 = vmatprep.subr.bf16.mxu0 0
    %6633 = vmatpush1.bf16.msra.mxu0 %v6469
    %6634 = vmatprep.subr.bf16.mxu0 0
    %6635 = vmatpush1.bf16.msra.mxu0 %v6468
    %6636 = vmatprep.subr.bf16.mxu0 0
    %6637 = vmatpush2.bf16.msra.mxu0 %v6483
    %6638 = vmatprep.subr.bf16.mxu0 0
    %6639 = vmatpush2.bf16.msra.mxu0 %v6482
    %6640 = vmatprep.subr.bf16.mxu0 0
    %6641 = vmatpush2.bf16.msra.mxu0 %v6481
    %6642 = vmatprep.subr.bf16.mxu0 0
    %6643 = vmatpush2.bf16.msra.mxu0 %v6480
    %6644 = vmatprep.subr.bf16.mxu0 0
    %6645 = vmatpush2.bf16.msra.mxu0 %v6479
    %6646 = vmatprep.subr.bf16.mxu0 0
    %6647 = vmatpush2.bf16.msra.mxu0 %v6478
    %6648 = vmatprep.subr.bf16.mxu0 0
    %6649 = vmatpush2.bf16.msra.mxu0 %v6477
    %6650 = vmatprep.subr.bf16.mxu0 0
    %6651 = vmatpush2.bf16.msra.mxu0 %v6476
    %6652 = vmatprep.mubr.bf16.mxu0 %v6056
    %6653 = vmatmul.mubr.bf16.gmra.mxu0 %v6055
    %v6654 = vpop.f32.mrf.mxu0
    %v6655 = vadd.f32 %v6615, %v6654
    %v6656 = vpop.f32.mrf.mxu0
    %v6657 = vpop.f32.mrf.mxu0
    %v6658 = vpop.f32.mrf.mxu0
    %6659 = vdwg.mxu0
    %6660 = vmatprep.subr.bf16.mxu0 0
    %6661 = vmatpush1.bf16.msra.mxu0 %v6491
    %6662 = vmatprep.subr.bf16.mxu0 0
    %6663 = vmatpush1.bf16.msra.mxu0 %v6490
    %6664 = vmatprep.subr.bf16.mxu0 0
    %6665 = vmatpush1.bf16.msra.mxu0 %v6489
    %6666 = vmatprep.subr.bf16.mxu0 0
    %6667 = vmatpush1.bf16.msra.mxu0 %v6488
    %6668 = vmatprep.subr.bf16.mxu0 0
    %6669 = vmatpush1.bf16.msra.mxu0 %v6487
    %6670 = vmatprep.subr.bf16.mxu0 0
    %6671 = vmatpush1.bf16.msra.mxu0 %v6486
    %6672 = vmatprep.subr.bf16.mxu0 0
    %6673 = vmatpush1.bf16.msra.mxu0 %v6485
    %6674 = vmatprep.subr.bf16.mxu0 0
    %6675 = vmatpush1.bf16.msra.mxu0 %v6484
    %6676 = vmatprep.subr.bf16.mxu0 0
    %6677 = vmatpush2.bf16.msra.mxu0 %v6499
    %6678 = vmatprep.subr.bf16.mxu0 0
    %6679 = vmatpush2.bf16.msra.mxu0 %v6498
    %6680 = vmatprep.subr.bf16.mxu0 0
    %6681 = vmatpush2.bf16.msra.mxu0 %v6497
    %6682 = vmatprep.subr.bf16.mxu0 0
    %6683 = vmatpush2.bf16.msra.mxu0 %v6496
    %6684 = vmatprep.subr.bf16.mxu0 0
    %6685 = vmatpush2.bf16.msra.mxu0 %v6495
    %6686 = vmatprep.subr.bf16.mxu0 0
    %6687 = vmatpush2.bf16.msra.mxu0 %v6494
    %6688 = vmatprep.subr.bf16.mxu0 0
    %6689 = vmatpush2.bf16.msra.mxu0 %v6493
    %6690 = vmatprep.subr.bf16.mxu0 0
    %6691 = vmatpush2.bf16.msra.mxu0 %v6492
    %6692 = vmatprep.mubr.bf16.mxu0 %v6058
    %6693 = vmatmul.mubr.bf16.gmra.mxu0 %v6057
    %v6694 = vpop.f32.mrf.mxu0
    %v6695 = vadd.f32 %v6655, %v6694
    %v6696 = vpop.f32.mrf.mxu0
    %v6697 = vpop.f32.mrf.mxu0
    %v6698 = vpop.f32.mrf.mxu0
    %6699 = vdwg.mxu0
    %6700 = vmatprep.subr.bf16.mxu0 0
    %6701 = vmatpush1.bf16.msra.mxu0 %v6507
    %6702 = vmatprep.subr.bf16.mxu0 0
    %6703 = vmatpush1.bf16.msra.mxu0 %v6506
    %6704 = vmatprep.subr.bf16.mxu0 0
    %6705 = vmatpush1.bf16.msra.mxu0 %v6505
    %6706 = vmatprep.subr.bf16.mxu0 0
    %6707 = vmatpush1.bf16.msra.mxu0 %v6504
    %6708 = vmatprep.subr.bf16.mxu0 0
    %6709 = vmatpush1.bf16.msra.mxu0 %v6503
    %6710 = vmatprep.subr.bf16.mxu0 0
    %6711 = vmatpush1.bf16.msra.mxu0 %v6502
    %6712 = vmatprep.subr.bf16.mxu0 0
    %6713 = vmatpush1.bf16.msra.mxu0 %v6501
    %6714 = vmatprep.subr.bf16.mxu0 0
    %6715 = vmatpush1.bf16.msra.mxu0 %v6500
    %6716 = vmatprep.subr.bf16.mxu0 0
    %6717 = vmatpush2.bf16.msra.mxu0 %v6515
    %6718 = vmatprep.subr.bf16.mxu0 0
    %6719 = vmatpush2.bf16.msra.mxu0 %v6514
    %6720 = vmatprep.subr.bf16.mxu0 0
    %6721 = vmatpush2.bf16.msra.mxu0 %v6513
    %6722 = vmatprep.subr.bf16.mxu0 0
    %6723 = vmatpush2.bf16.msra.mxu0 %v6512
    %6724 = vmatprep.subr.bf16.mxu0 0
    %6725 = vmatpush2.bf16.msra.mxu0 %v6511
    %6726 = vmatprep.subr.bf16.mxu0 0
    %6727 = vmatpush2.bf16.msra.mxu0 %v6510
    %6728 = vmatprep.subr.bf16.mxu0 0
    %6729 = vmatpush2.bf16.msra.mxu0 %v6509
    %6730 = vmatprep.subr.bf16.mxu0 0
    %6731 = vmatpush2.bf16.msra.mxu0 %v6508
    %6732 = vmatprep.mubr.bf16.mxu0 %v6060
    %6733 = vmatmul.mubr.bf16.gmra.mxu0 %v6059
    %v6734 = vpop.f32.mrf.mxu0
    %v6735 = vadd.f32 %v6695, %v6734
    %v6736 = vpop.f32.mrf.mxu0
    %v6737 = vpop.f32.mrf.mxu0
    %v6738 = vpop.f32.mrf.mxu0
    %6739 = vdwg.mxu0
    %vm6740 = vcmask 58368
    %v6741 = vsel %vm6740, %v6735, -inf
    %6742 = vmax.xlane.f32.xlu0 %v6741
    %v6743 = vpop.xlane.xlu0 %6742
    %v6744 = vsub.f32 %v6735, %v6743
    %v6745 = vmul.f32 %v6744, 1.442695
    %v6746 = vpow.pop %v6745
    %v6747 = vsel %vm6740, %v6746, 0.0
    %6748 = vadd.xlane.f32.xlu0 %v6747
    %v6749 = vpop.xlane.xlu0 %6748
    %v6750 = vlog2.pop %v6749
    %v6751 = vmul.f32 %v6750, 0.6931472
    %v6752 = vsub.f32 %v6744, %v6751
    %6753 = vst.msk [vmem:[#allocation5] sm:$0x3] %vm6740, %v6752
    // Predicated region
    $region90: #{hate_speech_bert_forward.1} parent=1 // pred_check
      _
    $region91: #{hate_speech_bert_forward.1} parent=1 // pred_check_branch
      %6755 = sbr.rel (0) target = $region93
    $region92: #{hate_speech_bert_forward.1} parent=1 // pred_region
      %s6757 = ssub.s32 32, 32
      %6758 = vsyncadd [#allocation6], %s6757
      %s6760 = sshll.u32 [#allocation5], 4
      %s6761 = int_to_ptr.vmem [resolvable:$true] %s6760
      %6763 = dma.vmem_to_hbm [thread:$0]  %s6761, 32, %s7, [#allocation6]
    $region93: #{hate_speech_bert_forward.1} parent=1 // pred_fallthru
      _
    // Predicated region
    $region94: #{hate_speech_bert_forward.1} parent=1 // pred_check
      _
    $region95: #{hate_speech_bert_forward.1} parent=1 // pred_check_branch
      %6765 = sbr.rel (0) target = $region97
    $region96: #{hate_speech_bert_forward.1} parent=1 // pred_region
      %6766 = dma.done [#allocation6], 32
    $region97: #{hate_speech_bert_forward.1} parent=1 // pred_fallthru
      _
    %6767 = vsyncpa [#allocation6], 1
  %6768 = vsyncmov [#allocation4]
  %s6769 = vpop.sfrf %6768
  %p6770 = scmp.eq.s32.totalorder %s6769, 0
  %p6771 = pneg %p6770
  %6773 = shalt.err (%p6771)
  %s6774 = scalar_lea.sflag [#allocation4], 1
  %6775 = vsyncmov %s6774
  %s6776 = vpop.sfrf %6775
  %p6777 = scmp.eq.s32.totalorder %s6776, 0
  %p6778 = pneg %p6777
  %6780 = shalt.err (%p6778)

</llo_original>
